<compile_context>
chip_gen: v7x
topology: tpu7x:2x2x1
jax: 0.10.0
libtpu: 0.0.40
codegen_flags: <defaults>
</compile_context>

<pallas_src>
import functools

import jax
import jax.numpy as jnp
from jax.experimental import pallas as pl
from jax.experimental.pallas import tpu as pltpu


def _split_channels(channels, num_groups):
    split = [channels // num_groups for _ in range(num_groups)]
    split[0] += channels - sum(split)
    return split


def _pick_channel_block(c, per_channel_bytes, budget=20 * 1024 * 1024):
    """Channel tile: lane-dense multiple of 128 when possible, else full C."""
    if c % 128 != 0:
        return c
    for cb in (512, 384, 256, 128):
        if c % cb == 0 and cb * per_channel_bytes <= budget:
            return cb
    return 128


def _mdconv_kernel(x_ref, w_ref, o_ref, xpad_ref, *, K, stride, pad,
                   out_h, out_w):
    """Fused mixed-depthwise conv for one (batch, channel-block) tile.

    x_ref:    (1, H, W, Cb)       NHWC input tile (channels on lanes)
    w_ref:    (K*K, Cb)           tap-major fused weights (all groups)
    o_ref:    (1, out_h, out_w, Cb)
    xpad_ref: (H+2*pad, W+2*pad, Cb)  VMEM scratch for in-kernel zero padding
    """
    h = x_ref.shape[1]
    w = x_ref.shape[2]
    cb = x_ref.shape[3]

    # In-VMEM zero padding: memset the halo'd scratch, copy the valid region.
    # (No HBM pad pass; the memset/copy are cheap VMEM traffic.)
    xpad_ref[...] = jnp.zeros_like(xpad_ref)
    xpad_ref[pad:pad + h, pad:pad + w, :] = x_ref[0]

    # Hoist all tap vectors out of the unrolled loop (JAX does not CSE the
    # broadcasts); each tap is a (1, 1, Cb) lane-aligned vector.
    taps = w_ref[...]                              # (K*K, Cb), loaded once
    tap_list = [taps[i].reshape(1, 1, cb) for i in range(K * K)]

    span_h = (out_h - 1) * stride + 1
    span_w = (out_w - 1) * stride + 1

    acc = jnp.zeros((out_h, out_w, cb), jnp.float32)
    for dy in range(K):                            # static K*K tap unroll
        for dx in range(K):
            patch = xpad_ref[dy:dy + span_h, dx:dx + span_w, :]
            if stride > 1:
                # stride hits H (untiled) / W (sublane) only — never the lanes.
                patch = patch[::stride, ::stride, :]
            acc = acc + patch.astype(jnp.float32) * tap_list[dy * K + dx]

    o_ref[0] = acc.astype(o_ref.dtype)


def mdconv_fused(x_nhwc, w_taps, K, stride):
    """x_nhwc: (N, H, W, C), w_taps: (K*K, C) -> (N, out_h, out_w, C)."""
    n, h, w, c = x_nhwc.shape
    pad = K // 2
    out_h = (h + 2 * pad - K) // stride + 1
    out_w = (w + 2 * pad - K) // stride + 1

    itemsize = jnp.dtype(x_nhwc.dtype).itemsize
    # per-channel live VMEM: 2x(in + out) buffers + padded scratch + f32 acc
    per_channel_bytes = (2 * (h * w + out_h * out_w) * itemsize
                         + (h + 2 * pad) * (w + 2 * pad) * itemsize
                         + out_h * out_w * 4)
    cb = _pick_channel_block(c, per_channel_bytes)

    est_bytes = cb * per_channel_bytes + 2 * K * K * cb * 4
    # Explicit VMEM budget with headroom (v7x has 64 MiB physical, 32 MiB default).
    vmem_limit = int(min(max(2 * est_bytes, 16 * 1024 * 1024), 48 * 1024 * 1024))

    kern = functools.partial(_mdconv_kernel, K=K, stride=stride, pad=pad,
                             out_h=out_h, out_w=out_w)

    # TODO(synk): for very large spatial planes (e.g. 112x112 with C not a
    # multiple of 128) add an out-row grid axis with an in-kernel halo so the
    # per-block VMEM stays bounded; not needed at these shapes.
    return pl.pallas_call(
        kern,
        out_shape=jax.ShapeDtypeStruct((n, out_h, out_w, c), x_nhwc.dtype),
        grid=(n, c // cb),
        in_specs=[
            pl.BlockSpec((1, h, w, cb), lambda i, j: (i, 0, 0, j)),
            pl.BlockSpec((K * K, cb), lambda i, j: (0, j)),
        ],
        out_specs=pl.BlockSpec((1, out_h, out_w, cb), lambda i, j: (i, 0, 0, j)),
        scratch_shapes=[
            pltpu.VMEM((h + 2 * pad, w + 2 * pad, cb), x_nhwc.dtype),
        ],
        compiler_params=pltpu.CompilerParams(
            dimension_semantics=("parallel", "parallel"),
            vmem_limit_bytes=vmem_limit),
    )(x_nhwc, w_taps)


class MDConv:
    """JAX/Pallas port of the PyTorch MDConv module (forward pass)."""

    def __init__(self, channels, kernel_size, stride, key):
        self.num_groups = len(kernel_size)
        self.split_channels = _split_channels(channels, self.num_groups)
        self.kernel_size = list(kernel_size)
        self.stride = stride

        if self.num_groups > 1:
            # Mixed parity kernel sizes give mismatched spatial sizes with
            # padding k//2 — torch.cat in the original module would fail too.
            assert len({k % 2 for k in self.kernel_size}) == 1, \
                "all kernel sizes must share parity when num_groups > 1"
        self.K = max(self.kernel_size)

        self.weights = []
        for cg, k in zip(self.split_channels, self.kernel_size):
            key, sub = jax.random.split(key)
            # NOTE: the PyTorch __init__ fills weights with 0.0 (trivial output);
            # we use deterministic random weights of the same shape (Cg, k, k)
            # so the kernel exercises real compute.
            w = jax.random.normal(sub, (cg, k, k), jnp.float32) * 0.1
            self.weights.append(w)

        # Fuse all groups: embed each group's k x k filter centered in a K x K
        # window (zeros elsewhere) -> one tap-major weight matrix (K*K, C).
        K = self.K
        taps = []
        for cg, k, w in zip(self.split_channels, self.kernel_size, self.weights):
            off = (K - k) // 2
            wk = jnp.zeros((K, K, cg), jnp.float32)
            wk = wk.at[off:off + k, off:off + k, :].set(
                jnp.transpose(w, (1, 2, 0)))
            taps.append(wk.reshape(K * K, cg))
        self.w_taps = jnp.concatenate(taps, axis=1)        # (K*K, C)

    def __call__(self, x):
        # x: NCHW (PyTorch layout). Run the kernel in NHWC so channels map to
        # the 128-lane axis; transpose back afterwards.
        x_nhwc = jnp.transpose(x, (0, 2, 3, 1))
        y_nhwc = mdconv_fused(x_nhwc, self.w_taps, self.K, self.stride)
        return jnp.transpose(y_nhwc, (0, 3, 1, 2))


def _reference_mdconv(x, mod):
    """Pure-JAX reference using lax.conv_general_dilated (per-group depthwise)."""
    outs = []
    start = 0
    for cg, k, w in zip(mod.split_channels, mod.kernel_size, mod.weights):
        xs = x[:, start:start + cg]
        w_oihw = w[:, None, :, :]                  # (Cg, 1, k, k)
        y = jax.lax.conv_general_dilated(
            xs, w_oihw,
            window_strides=(mod.stride, mod.stride),
            padding=[(k // 2, k // 2), (k // 2, k // 2)],
            dimension_numbers=("NCHW", "OIHW", "NCHW"),
            feature_group_count=cg,
        )
        outs.append(y)
        start += cg
    return jnp.concatenate(outs, axis=1)


if __name__ == "__main__":
    key = jax.random.PRNGKey(0)
    kx, kw = jax.random.split(key)

    # small shapes consistent with the module: N=2, C=4, H=W=16
    channels = 4
    kernel_size = [3, 5]   # 2 groups -> split_channels = [2, 2]
    stride = 1
    x = jax.random.normal(kx, (2, channels, 16, 16), jnp.float32)

    mdconv = MDConv(channels, kernel_size, stride, kw)

    out = jax.block_until_ready(mdconv(x))
    ref = jax.block_until_ready(_reference_mdconv(x, mdconv))

    assert out.shape == ref.shape == (2, channels, 16, 16), out.shape
    assert jnp.allclose(out, ref, atol=1e-5, rtol=1e-5), \
        float(jnp.max(jnp.abs(out - ref)))

    print("KERNEL_OK")
</pallas_src>

<mosaic_0001>
module attributes {stable_mosaic.version = 11 : i64} {
  func.func @_mdconv_kernel(%arg0: i32, %arg1: i32, %arg2: memref<1x16x16x4xf32, #tpu.memory_space<vmem>>, %arg3: memref<25x4xf32, #tpu.memory_space<vmem>>, %arg4: memref<1x16x16x4xf32, #tpu.memory_space<vmem>>, %arg5: memref<20x20x4xf32, #tpu.memory_space<vmem>>) attributes {dimension_semantics = [#tpu.dimension_semantics<parallel>, #tpu.dimension_semantics<parallel>], iteration_bounds = array<i64: 2, 1>, scalar_prefetch = 0 : i64, scratch_operands = 1 : i64, tpu.core_type = #tpu.core_type<tc>, window_params = [{transform_indices = @transform_0, window_bounds = array<i64: 1, 16, 16, 4>}, {transform_indices = @transform_1, window_bounds = array<i64: 25, 4>}, {transform_indices = @transform_2, window_bounds = array<i64: 1, 16, 16, 4>}]} {
    %cst = arith.constant 0.000000e+00 : f32
    %0 = vector.broadcast %cst : f32 to vector<20x20x4xf32>
    %c0 = arith.constant 0 : index
    %c0_0 = arith.constant 0 : index
    %c0_1 = arith.constant 0 : index
    %1 = vector.load %arg5[%c0, %c0_0, %c0_1] : memref<20x20x4xf32, #tpu.memory_space<vmem>>, vector<20x20x4xf32>
    tpu.vector_store %arg5[%c0, %c0_0, %c0_1], %0 {strides = array<i32>} : memref<20x20x4xf32, #tpu.memory_space<vmem>>, vector<20x20x4xf32>,
    %c0_2 = arith.constant 0 : index
    %c0_3 = arith.constant 0 : index
    %c0_4 = arith.constant 0 : index
    %c0_5 = arith.constant 0 : index
    %2 = vector.load %arg2[%c0_2, %c0_3, %c0_4, %c0_5] : memref<1x16x16x4xf32, #tpu.memory_space<vmem>>, vector<1x16x16x4xf32>
    %3 = vector.shape_cast %2 : vector<1x16x16x4xf32> to vector<16x16x4xf32>
    %c2 = arith.constant 2 : index
    %c2_6 = arith.constant 2 : index
    %c0_7 = arith.constant 0 : index
    %4 = vector.load %arg5[%c2, %c2_6, %c0_7] : memref<20x20x4xf32, #tpu.memory_space<vmem>>, vector<16x16x4xf32>
    tpu.vector_store %arg5[%c2, %c2_6, %c0_7], %3 {strides = array<i32>} : memref<20x20x4xf32, #tpu.memory_space<vmem>>, vector<16x16x4xf32>,
    %c0_8 = arith.constant 0 : index
    %c0_9 = arith.constant 0 : index
    %5 = vector.load %arg3[%c0_8, %c0_9] : memref<25x4xf32, #tpu.memory_space<vmem>>, vector<25x4xf32>
    %6 = vector.extract_strided_slice %5 {offsets = [0, 0], sizes = [1, 4], strides = [1, 1]} : vector<25x4xf32> to vector<1x4xf32>
    %7 = vector.shape_cast %6 : vector<1x4xf32> to vector<4xf32>
    %8 = vector.shape_cast %7 : vector<4xf32> to vector<1x1x4xf32>
    %9 = vector.extract_strided_slice %5 {offsets = [1, 0], sizes = [1, 4], strides = [1, 1]} : vector<25x4xf32> to vector<1x4xf32>
    %10 = vector.shape_cast %9 : vector<1x4xf32> to vector<4xf32>
    %11 = vector.shape_cast %10 : vector<4xf32> to vector<1x1x4xf32>
    %12 = vector.extract_strided_slice %5 {offsets = [2, 0], sizes = [1, 4], strides = [1, 1]} : vector<25x4xf32> to vector<1x4xf32>
    %13 = vector.shape_cast %12 : vector<1x4xf32> to vector<4xf32>
    %14 = vector.shape_cast %13 : vector<4xf32> to vector<1x1x4xf32>
    %15 = vector.extract_strided_slice %5 {offsets = [3, 0], sizes = [1, 4], strides = [1, 1]} : vector<25x4xf32> to vector<1x4xf32>
    %16 = vector.shape_cast %15 : vector<1x4xf32> to vector<4xf32>
    %17 = vector.shape_cast %16 : vector<4xf32> to vector<1x1x4xf32>
    %18 = vector.extract_strided_slice %5 {offsets = [4, 0], sizes = [1, 4], strides = [1, 1]} : vector<25x4xf32> to vector<1x4xf32>
    %19 = vector.shape_cast %18 : vector<1x4xf32> to vector<4xf32>
    %20 = vector.shape_cast %19 : vector<4xf32> to vector<1x1x4xf32>
    %21 = vector.extract_strided_slice %5 {offsets = [5, 0], sizes = [1, 4], strides = [1, 1]} : vector<25x4xf32> to vector<1x4xf32>
    %22 = vector.shape_cast %21 : vector<1x4xf32> to vector<4xf32>
    %23 = vector.shape_cast %22 : vector<4xf32> to vector<1x1x4xf32>
    %24 = vector.extract_strided_slice %5 {offsets = [6, 0], sizes = [1, 4], strides = [1, 1]} : vector<25x4xf32> to vector<1x4xf32>
    %25 = vector.shape_cast %24 : vector<1x4xf32> to vector<4xf32>
    %26 = vector.shape_cast %25 : vector<4xf32> to vector<1x1x4xf32>
    %27 = vector.extract_strided_slice %5 {offsets = [7, 0], sizes = [1, 4], strides = [1, 1]} : vector<25x4xf32> to vector<1x4xf32>
    %28 = vector.shape_cast %27 : vector<1x4xf32> to vector<4xf32>
    %29 = vector.shape_cast %28 : vector<4xf32> to vector<1x1x4xf32>
    %30 = vector.extract_strided_slice %5 {offsets = [8, 0], sizes = [1, 4], strides = [1, 1]} : vector<25x4xf32> to vector<1x4xf32>
    %31 = vector.shape_cast %30 : vector<1x4xf32> to vector<4xf32>
    %32 = vector.shape_cast %31 : vector<4xf32> to vector<1x1x4xf32>
    %33 = vector.extract_strided_slice %5 {offsets = [9, 0], sizes = [1, 4], strides = [1, 1]} : vector<25x4xf32> to vector<1x4xf32>
    %34 = vector.shape_cast %33 : vector<1x4xf32> to vector<4xf32>
    %35 = vector.shape_cast %34 : vector<4xf32> to vector<1x1x4xf32>
    %36 = vector.extract_strided_slice %5 {offsets = [10, 0], sizes = [1, 4], strides = [1, 1]} : vector<25x4xf32> to vector<1x4xf32>
    %37 = vector.shape_cast %36 : vector<1x4xf32> to vector<4xf32>
    %38 = vector.shape_cast %37 : vector<4xf32> to vector<1x1x4xf32>
    %39 = vector.extract_strided_slice %5 {offsets = [11, 0], sizes = [1, 4], strides = [1, 1]} : vector<25x4xf32> to vector<1x4xf32>
    %40 = vector.shape_cast %39 : vector<1x4xf32> to vector<4xf32>
    %41 = vector.shape_cast %40 : vector<4xf32> to vector<1x1x4xf32>
    %42 = vector.extract_strided_slice %5 {offsets = [12, 0], sizes = [1, 4], strides = [1, 1]} : vector<25x4xf32> to vector<1x4xf32>
    %43 = vector.shape_cast %42 : vector<1x4xf32> to vector<4xf32>
    %44 = vector.shape_cast %43 : vector<4xf32> to vector<1x1x4xf32>
    %45 = vector.extract_strided_slice %5 {offsets = [13, 0], sizes = [1, 4], strides = [1, 1]} : vector<25x4xf32> to vector<1x4xf32>
    %46 = vector.shape_cast %45 : vector<1x4xf32> to vector<4xf32>
    %47 = vector.shape_cast %46 : vector<4xf32> to vector<1x1x4xf32>
    %48 = vector.extract_strided_slice %5 {offsets = [14, 0], sizes = [1, 4], strides = [1, 1]} : vector<25x4xf32> to vector<1x4xf32>
    %49 = vector.shape_cast %48 : vector<1x4xf32> to vector<4xf32>
    %50 = vector.shape_cast %49 : vector<4xf32> to vector<1x1x4xf32>
    %51 = vector.extract_strided_slice %5 {offsets = [15, 0], sizes = [1, 4], strides = [1, 1]} : vector<25x4xf32> to vector<1x4xf32>
    %52 = vector.shape_cast %51 : vector<1x4xf32> to vector<4xf32>
    %53 = vector.shape_cast %52 : vector<4xf32> to vector<1x1x4xf32>
    %54 = vector.extract_strided_slice %5 {offsets = [16, 0], sizes = [1, 4], strides = [1, 1]} : vector<25x4xf32> to vector<1x4xf32>
    %55 = vector.shape_cast %54 : vector<1x4xf32> to vector<4xf32>
    %56 = vector.shape_cast %55 : vector<4xf32> to vector<1x1x4xf32>
    %57 = vector.extract_strided_slice %5 {offsets = [17, 0], sizes = [1, 4], strides = [1, 1]} : vector<25x4xf32> to vector<1x4xf32>
    %58 = vector.shape_cast %57 : vector<1x4xf32> to vector<4xf32>
    %59 = vector.shape_cast %58 : vector<4xf32> to vector<1x1x4xf32>
    %60 = vector.extract_strided_slice %5 {offsets = [18, 0], sizes = [1, 4], strides = [1, 1]} : vector<25x4xf32> to vector<1x4xf32>
    %61 = vector.shape_cast %60 : vector<1x4xf32> to vector<4xf32>
    %62 = vector.shape_cast %61 : vector<4xf32> to vector<1x1x4xf32>
    %63 = vector.extract_strided_slice %5 {offsets = [19, 0], sizes = [1, 4], strides = [1, 1]} : vector<25x4xf32> to vector<1x4xf32>
    %64 = vector.shape_cast %63 : vector<1x4xf32> to vector<4xf32>
    %65 = vector.shape_cast %64 : vector<4xf32> to vector<1x1x4xf32>
    %66 = vector.extract_strided_slice %5 {offsets = [20, 0], sizes = [1, 4], strides = [1, 1]} : vector<25x4xf32> to vector<1x4xf32>
    %67 = vector.shape_cast %66 : vector<1x4xf32> to vector<4xf32>
    %68 = vector.shape_cast %67 : vector<4xf32> to vector<1x1x4xf32>
    %69 = vector.extract_strided_slice %5 {offsets = [21, 0], sizes = [1, 4], strides = [1, 1]} : vector<25x4xf32> to vector<1x4xf32>
    %70 = vector.shape_cast %69 : vector<1x4xf32> to vector<4xf32>
    %71 = vector.shape_cast %70 : vector<4xf32> to vector<1x1x4xf32>
    %72 = vector.extract_strided_slice %5 {offsets = [22, 0], sizes = [1, 4], strides = [1, 1]} : vector<25x4xf32> to vector<1x4xf32>
    %73 = vector.shape_cast %72 : vector<1x4xf32> to vector<4xf32>
    %74 = vector.shape_cast %73 : vector<4xf32> to vector<1x1x4xf32>
    %75 = vector.extract_strided_slice %5 {offsets = [23, 0], sizes = [1, 4], strides = [1, 1]} : vector<25x4xf32> to vector<1x4xf32>
    %76 = vector.shape_cast %75 : vector<1x4xf32> to vector<4xf32>
    %77 = vector.shape_cast %76 : vector<4xf32> to vector<1x1x4xf32>
    %78 = vector.extract_strided_slice %5 {offsets = [24, 0], sizes = [1, 4], strides = [1, 1]} : vector<25x4xf32> to vector<1x4xf32>
    %79 = vector.shape_cast %78 : vector<1x4xf32> to vector<4xf32>
    %80 = vector.shape_cast %79 : vector<4xf32> to vector<1x1x4xf32>
    %cst_10 = arith.constant 0.000000e+00 : f32
    %81 = vector.broadcast %cst_10 : f32 to vector<16x16x4xf32>
    %c0_11 = arith.constant 0 : index
    %c0_12 = arith.constant 0 : index
    %c0_13 = arith.constant 0 : index
    %82 = vector.load %arg5[%c0_11, %c0_12, %c0_13] : memref<20x20x4xf32, #tpu.memory_space<vmem>>, vector<16x16x4xf32>
    %83 = vector.broadcast %8 : vector<1x1x4xf32> to vector<16x16x4xf32>
    %84 = arith.mulf %82, %83 : vector<16x16x4xf32>
    %85 = arith.addf %81, %84 : vector<16x16x4xf32>
    %c0_14 = arith.constant 0 : index
    %c1 = arith.constant 1 : index
    %c0_15 = arith.constant 0 : index
    %86 = vector.load %arg5[%c0_14, %c1, %c0_15] : memref<20x20x4xf32, #tpu.memory_space<vmem>>, vector<16x16x4xf32>
    %87 = vector.broadcast %11 : vector<1x1x4xf32> to vector<16x16x4xf32>
    %88 = arith.mulf %86, %87 : vector<16x16x4xf32>
    %89 = arith.addf %85, %88 : vector<16x16x4xf32>
    %c0_16 = arith.constant 0 : index
    %c2_17 = arith.constant 2 : index
    %c0_18 = arith.constant 0 : index
    %90 = vector.load %arg5[%c0_16, %c2_17, %c0_18] : memref<20x20x4xf32, #tpu.memory_space<vmem>>, vector<16x16x4xf32>
    %91 = vector.broadcast %14 : vector<1x1x4xf32> to vector<16x16x4xf32>
    %92 = arith.mulf %90, %91 : vector<16x16x4xf32>
    %93 = arith.addf %89, %92 : vector<16x16x4xf32>
    %c0_19 = arith.constant 0 : index
    %c3 = arith.constant 3 : index
    %c0_20 = arith.constant 0 : index
    %94 = vector.load %arg5[%c0_19, %c3, %c0_20] : memref<20x20x4xf32, #tpu.memory_space<vmem>>, vector<16x16x4xf32>
    %95 = vector.broadcast %17 : vector<1x1x4xf32> to vector<16x16x4xf32>
    %96 = arith.mulf %94, %95 : vector<16x16x4xf32>
    %97 = arith.addf %93, %96 : vector<16x16x4xf32>
    %c0_21 = arith.constant 0 : index
    %c4 = arith.constant 4 : index
    %c0_22 = arith.constant 0 : index
    %98 = vector.load %arg5[%c0_21, %c4, %c0_22] : memref<20x20x4xf32, #tpu.memory_space<vmem>>, vector<16x16x4xf32>
    %99 = vector.broadcast %20 : vector<1x1x4xf32> to vector<16x16x4xf32>
    %100 = arith.mulf %98, %99 : vector<16x16x4xf32>
    %101 = arith.addf %97, %100 : vector<16x16x4xf32>
    %c1_23 = arith.constant 1 : index
    %c0_24 = arith.constant 0 : index
    %c0_25 = arith.constant 0 : index
    %102 = vector.load %arg5[%c1_23, %c0_24, %c0_25] : memref<20x20x4xf32, #tpu.memory_space<vmem>>, vector<16x16x4xf32>
    %103 = vector.broadcast %23 : vector<1x1x4xf32> to vector<16x16x4xf32>
    %104 = arith.mulf %102, %103 : vector<16x16x4xf32>
    %105 = arith.addf %101, %104 : vector<16x16x4xf32>
    %c1_26 = arith.constant 1 : index
    %c1_27 = arith.constant 1 : index
    %c0_28 = arith.constant 0 : index
    %106 = vector.load %arg5[%c1_26, %c1_27, %c0_28] : memref<20x20x4xf32, #tpu.memory_space<vmem>>, vector<16x16x4xf32>
    %107 = vector.broadcast %26 : vector<1x1x4xf32> to vector<16x16x4xf32>
    %108 = arith.mulf %106, %107 : vector<16x16x4xf32>
    %109 = arith.addf %105, %108 : vector<16x16x4xf32>
    %c1_29 = arith.constant 1 : index
    %c2_30 = arith.constant 2 : index
    %c0_31 = arith.constant 0 : index
    %110 = vector.load %arg5[%c1_29, %c2_30, %c0_31] : memref<20x20x4xf32, #tpu.memory_space<vmem>>, vector<16x16x4xf32>
    %111 = vector.broadcast %29 : vector<1x1x4xf32> to vector<16x16x4xf32>
    %112 = arith.mulf %110, %111 : vector<16x16x4xf32>
    %113 = arith.addf %109, %112 : vector<16x16x4xf32>
    %c1_32 = arith.constant 1 : index
    %c3_33 = arith.constant 3 : index
    %c0_34 = arith.constant 0 : index
    %114 = vector.load %arg5[%c1_32, %c3_33, %c0_34] : memref<20x20x4xf32, #tpu.memory_space<vmem>>, vector<16x16x4xf32>
    %115 = vector.broadcast %32 : vector<1x1x4xf32> to vector<16x16x4xf32>
    %116 = arith.mulf %114, %115 : vector<16x16x4xf32>
    %117 = arith.addf %113, %116 : vector<16x16x4xf32>
    %c1_35 = arith.constant 1 : index
    %c4_36 = arith.constant 4 : index
    %c0_37 = arith.constant 0 : index
    %118 = vector.load %arg5[%c1_35, %c4_36, %c0_37] : memref<20x20x4xf32, #tpu.memory_space<vmem>>, vector<16x16x4xf32>
    %119 = vector.broadcast %35 : vector<1x1x4xf32> to vector<16x16x4xf32>
    %120 = arith.mulf %118, %119 : vector<16x16x4xf32>
    %121 = arith.addf %117, %120 : vector<16x16x4xf32>
    %c2_38 = arith.constant 2 : index
    %c0_39 = arith.constant 0 : index
    %c0_40 = arith.constant 0 : index
    %122 = vector.load %arg5[%c2_38, %c0_39, %c0_40] : memref<20x20x4xf32, #tpu.memory_space<vmem>>, vector<16x16x4xf32>
    %123 = vector.broadcast %38 : vector<1x1x4xf32> to vector<16x16x4xf32>
    %124 = arith.mulf %122, %123 : vector<16x16x4xf32>
    %125 = arith.addf %121, %124 : vector<16x16x4xf32>
    %c2_41 = arith.constant 2 : index
    %c1_42 = arith.constant 1 : index
    %c0_43 = arith.constant 0 : index
    %126 = vector.load %arg5[%c2_41, %c1_42, %c0_43] : memref<20x20x4xf32, #tpu.memory_space<vmem>>, vector<16x16x4xf32>
    %127 = vector.broadcast %41 : vector<1x1x4xf32> to vector<16x16x4xf32>
    %128 = arith.mulf %126, %127 : vector<16x16x4xf32>
    %129 = arith.addf %125, %128 : vector<16x16x4xf32>
    %c2_44 = arith.constant 2 : index
    %c2_45 = arith.constant 2 : index
    %c0_46 = arith.constant 0 : index
    %130 = vector.load %arg5[%c2_44, %c2_45, %c0_46] : memref<20x20x4xf32, #tpu.memory_space<vmem>>, vector<16x16x4xf32>
    %131 = vector.broadcast %44 : vector<1x1x4xf32> to vector<16x16x4xf32>
    %132 = arith.mulf %130, %131 : vector<16x16x4xf32>
    %133 = arith.addf %129, %132 : vector<16x16x4xf32>
    %c2_47 = arith.constant 2 : index
    %c3_48 = arith.constant 3 : index
    %c0_49 = arith.constant 0 : index
    %134 = vector.load %arg5[%c2_47, %c3_48, %c0_49] : memref<20x20x4xf32, #tpu.memory_space<vmem>>, vector<16x16x4xf32>
    %135 = vector.broadcast %47 : vector<1x1x4xf32> to vector<16x16x4xf32>
    %136 = arith.mulf %134, %135 : vector<16x16x4xf32>
    %137 = arith.addf %133, %136 : vector<16x16x4xf32>
    %c2_50 = arith.constant 2 : index
    %c4_51 = arith.constant 4 : index
    %c0_52 = arith.constant 0 : index
    %138 = vector.load %arg5[%c2_50, %c4_51, %c0_52] : memref<20x20x4xf32, #tpu.memory_space<vmem>>, vector<16x16x4xf32>
    %139 = vector.broadcast %50 : vector<1x1x4xf32> to vector<16x16x4xf32>
    %140 = arith.mulf %138, %139 : vector<16x16x4xf32>
    %141 = arith.addf %137, %140 : vector<16x16x4xf32>
    %c3_53 = arith.constant 3 : index
    %c0_54 = arith.constant 0 : index
    %c0_55 = arith.constant 0 : index
    %142 = vector.load %arg5[%c3_53, %c0_54, %c0_55] : memref<20x20x4xf32, #tpu.memory_space<vmem>>, vector<16x16x4xf32>
    %143 = vector.broadcast %53 : vector<1x1x4xf32> to vector<16x16x4xf32>
    %144 = arith.mulf %142, %143 : vector<16x16x4xf32>
    %145 = arith.addf %141, %144 : vector<16x16x4xf32>
    %c3_56 = arith.constant 3 : index
    %c1_57 = arith.constant 1 : index
    %c0_58 = arith.constant 0 : index
    %146 = vector.load %arg5[%c3_56, %c1_57, %c0_58] : memref<20x20x4xf32, #tpu.memory_space<vmem>>, vector<16x16x4xf32>
    %147 = vector.broadcast %56 : vector<1x1x4xf32> to vector<16x16x4xf32>
    %148 = arith.mulf %146, %147 : vector<16x16x4xf32>
    %149 = arith.addf %145, %148 : vector<16x16x4xf32>
    %c3_59 = arith.constant 3 : index
    %c2_60 = arith.constant 2 : index
    %c0_61 = arith.constant 0 : index
    %150 = vector.load %arg5[%c3_59, %c2_60, %c0_61] : memref<20x20x4xf32, #tpu.memory_space<vmem>>, vector<16x16x4xf32>
    %151 = vector.broadcast %59 : vector<1x1x4xf32> to vector<16x16x4xf32>
    %152 = arith.mulf %150, %151 : vector<16x16x4xf32>
    %153 = arith.addf %149, %152 : vector<16x16x4xf32>
    %c3_62 = arith.constant 3 : index
    %c3_63 = arith.constant 3 : index
    %c0_64 = arith.constant 0 : index
    %154 = vector.load %arg5[%c3_62, %c3_63, %c0_64] : memref<20x20x4xf32, #tpu.memory_space<vmem>>, vector<16x16x4xf32>
    %155 = vector.broadcast %62 : vector<1x1x4xf32> to vector<16x16x4xf32>
    %156 = arith.mulf %154, %155 : vector<16x16x4xf32>
    %157 = arith.addf %153, %156 : vector<16x16x4xf32>
    %c3_65 = arith.constant 3 : index
    %c4_66 = arith.constant 4 : index
    %c0_67 = arith.constant 0 : index
    %158 = vector.load %arg5[%c3_65, %c4_66, %c0_67] : memref<20x20x4xf32, #tpu.memory_space<vmem>>, vector<16x16x4xf32>
    %159 = vector.broadcast %65 : vector<1x1x4xf32> to vector<16x16x4xf32>
    %160 = arith.mulf %158, %159 : vector<16x16x4xf32>
    %161 = arith.addf %157, %160 : vector<16x16x4xf32>
    %c4_68 = arith.constant 4 : index
    %c0_69 = arith.constant 0 : index
    %c0_70 = arith.constant 0 : index
    %162 = vector.load %arg5[%c4_68, %c0_69, %c0_70] : memref<20x20x4xf32, #tpu.memory_space<vmem>>, vector<16x16x4xf32>
    %163 = vector.broadcast %68 : vector<1x1x4xf32> to vector<16x16x4xf32>
    %164 = arith.mulf %162, %163 : vector<16x16x4xf32>
    %165 = arith.addf %161, %164 : vector<16x16x4xf32>
    %c4_71 = arith.constant 4 : index
    %c1_72 = arith.constant 1 : index
    %c0_73 = arith.constant 0 : index
    %166 = vector.load %arg5[%c4_71, %c1_72, %c0_73] : memref<20x20x4xf32, #tpu.memory_space<vmem>>, vector<16x16x4xf32>
    %167 = vector.broadcast %71 : vector<1x1x4xf32> to vector<16x16x4xf32>
    %168 = arith.mulf %166, %167 : vector<16x16x4xf32>
    %169 = arith.addf %165, %168 : vector<16x16x4xf32>
    %c4_74 = arith.constant 4 : index
    %c2_75 = arith.constant 2 : index
    %c0_76 = arith.constant 0 : index
    %170 = vector.load %arg5[%c4_74, %c2_75, %c0_76] : memref<20x20x4xf32, #tpu.memory_space<vmem>>, vector<16x16x4xf32>
    %171 = vector.broadcast %74 : vector<1x1x4xf32> to vector<16x16x4xf32>
    %172 = arith.mulf %170, %171 : vector<16x16x4xf32>
    %173 = arith.addf %169, %172 : vector<16x16x4xf32>
    %c4_77 = arith.constant 4 : index
    %c3_78 = arith.constant 3 : index
    %c0_79 = arith.constant 0 : index
    %174 = vector.load %arg5[%c4_77, %c3_78, %c0_79] : memref<20x20x4xf32, #tpu.memory_space<vmem>>, vector<16x16x4xf32>
    %175 = vector.broadcast %77 : vector<1x1x4xf32> to vector<16x16x4xf32>
    %176 = arith.mulf %174, %175 : vector<16x16x4xf32>
    %177 = arith.addf %173, %176 : vector<16x16x4xf32>
    %c4_80 = arith.constant 4 : index
    %c4_81 = arith.constant 4 : index
    %c0_82 = arith.constant 0 : index
    %178 = vector.load %arg5[%c4_80, %c4_81, %c0_82] : memref<20x20x4xf32, #tpu.memory_space<vmem>>, vector<16x16x4xf32>
    %179 = vector.broadcast %80 : vector<1x1x4xf32> to vector<16x16x4xf32>
    %180 = arith.mulf %178, %179 : vector<16x16x4xf32>
    %181 = arith.addf %177, %180 : vector<16x16x4xf32>
    %c0_83 = arith.constant 0 : index
    %c0_84 = arith.constant 0 : index
    %c0_85 = arith.constant 0 : index
    %c0_86 = arith.constant 0 : index
    %182 = vector.load %arg4[%c0_83, %c0_84, %c0_85, %c0_86] : memref<1x16x16x4xf32, #tpu.memory_space<vmem>>, vector<1x16x16x4xf32>
    %183 = vector.shape_cast %182 : vector<1x16x16x4xf32> to vector<16x16x4xf32>
    %184 = vector.shape_cast %181 : vector<16x16x4xf32> to vector<1x16x16x4xf32>
    tpu.vector_store %arg4[%c0_83, %c0_84, %c0_85, %c0_86], %184 {strides = array<i32>} : memref<1x16x16x4xf32, #tpu.memory_space<vmem>>, vector<1x16x16x4xf32>,
    return
  }
  func.func @transform_0(%arg0: i32, %arg1: i32) -> (i32, i32, i32, i32) {
    %c0_i32 = arith.constant 0 : i32
    %c0_i32_0 = arith.constant 0 : i32
    %c0_i32_1 = arith.constant 0 : i32
    return %arg0, %c0_i32, %c0_i32_0, %arg1 : i32, i32, i32, i32
  }
  func.func @transform_1(%arg0: i32, %arg1: i32) -> (i32, i32) {
    %c0_i32 = arith.constant 0 : i32
    %c0_i32_0 = arith.constant 0 : i32
    return %c0_i32, %arg1 : i32, i32
  }
  func.func @transform_2(%arg0: i32, %arg1: i32) -> (i32, i32, i32, i32) {
    %c0_i32 = arith.constant 0 : i32
    %c0_i32_0 = arith.constant 0 : i32
    %c0_i32_1 = arith.constant 0 : i32
    return %arg0, %c0_i32, %c0_i32_0, %arg1 : i32, i32, i32, i32
  }
}

</mosaic_0001>

<llo_original>
// kernel: tpu_custom_call.1
$region0: #{tpu_custom_call.1}
  #allocation0 [shape = 'u32[]', space=smem, size = 0x4, offset = 0x4, fixed_abs, tag = 'smem constant byte address 0x4 - core index']
  #allocation1 [shape = 'u32[144,128]{1,0:T(1,128)}', space=vmem, size = 0x12000, scoped, tag = 'internal scratch']
  #allocation2 [shape = 'f32[20,20,4]{2,1,0:T(8,128)}', space=vmem, size = 0x3c000, scoped, tag = 'scratch operand']
  %s0 = inlined_call_operand.vmem [shape: f32[2,16,16,4], index: 0, kind: input, shape index: {}]
  %s1 = inlined_call_operand.vmem [shape: f32[25,4], index: 1, kind: input, shape index: {}]
  %s2 = inlined_call_operand.vmem [shape: f32[2,16,16,4], index: 2, kind: output, shape index: {}]
  %s3 = sld [smem:[#allocation0]]
  $region41: #{tpu_custom_call.1} parent=0
    _
  %s5 = ssub.s32 1, %s3
  %s6 = scalar_select 0, %s5, %s3
  loop: start=0, step=1, limit=4
  $region2: #{tpu_custom_call.1} parent=0 // loop_pre_header
    _
  $region3: #{tpu_custom_call.1} parent=0 // loop_header
    %s8 = sphi 0, %s12
    %p9 = scmp.ge.s32.totalorder %s8, 4
    %s15 = sphi 0, %s27
    %s16 = sphi 0, %s23
    %s17 = sphi 0, %s15
    %s18 = sphi 0, %s16
    %s19 = sphi 0, %s17
    %s20 = sphi 0, %s18
    %s32 = sphi 0, %s34
    %s35 = sphi 0, %s32
    %s36 = sphi 0, %s35
    %s52 = sphi 0, %s36
    %s58 = sphi 0, %s60
    %s61 = sphi 0, %s58
    %s62 = sphi 0, %s61
    %s78 = sphi 0, %s62
    %s86 = sphi 0, %s88
    %s89 = sphi 0, %s86
    %s90 = sphi 0, %s89
    %s106 = sphi 0, %s90
  $region4: #{tpu_custom_call.1} parent=0 // loop_header_branch
    %11 = sbr.rel (%p9) target = $region8
  $region5: #{tpu_custom_call.1} parent=0 // loop_body
    %s13 = ssub.s32 %s8, 1
    %s14 = ssub.s32 %s8, 2
    %s21 = sadd.s32 1, %s16
    %p22 = scmp.ge.s32.totalorder %s21, 1
    %s23 = scalar_select %p22, 0, %s21
    %s24 = sadd.s32 1, %s15
    %s25 = scalar_select %p22, %s24, %s15
    %p26 = scmp.ge.s32.totalorder %s25, 2
    %s27 = scalar_select %p26, 0, %s25
    %s28 = ssub.s32 %s15, %s27
    %s29 = ssub.s32 %s16, %s23
    %s30 = sor.u32 %s28, %s29
    %p31 = scmp.eq.s32.totalorder %s30, 0
    %s33 = sadd.s32 %s32, 1
    %s34 = scalar_select %p31, %s32, %s33
    %p37 = pneg %p31
    %p38 = scmp.eq.s32.totalorder %s8, 1
    %p39 = por %p37, %p38
    %p40 = scmp.ne.s32.totalorder %s32, %s35
    %p41 = scmp.eq.s32.totalorder %s8, 0
    %p42 = por %p40, %p41
    %p43 = scmp.ne.s32.totalorder %s32, %s35
    %p44 = scmp.eq.s32.totalorder %s13, 1
    %p45 = por %p43, %p44
    %p46 = scmp.ne.s32.totalorder %s35, %s36
    %p47 = scmp.eq.s32.totalorder %s13, 0
    %p48 = por %p46, %p47
    %p49 = scmp.ne.s32.totalorder %s35, %s36
    %p50 = scmp.eq.s32.totalorder %s14, 1
    %p51 = por %p49, %p50
    %p53 = scmp.ne.s32.totalorder %s36, %s52
    %p54 = scmp.eq.s32.totalorder %s14, 0
    %p55 = por %p53, %p54
    %s56 = ssub.s32 %s16, %s23
    %p57 = scmp.eq.s32.totalorder %s56, 0
    %s59 = sadd.s32 %s58, 1
    %s60 = scalar_select %p57, %s58, %s59
    %p63 = pneg %p57
    %p64 = scmp.eq.s32.totalorder %s8, 1
    %p65 = por %p63, %p64
    %p66 = scmp.ne.s32.totalorder %s58, %s61
    %p67 = scmp.eq.s32.totalorder %s8, 0
    %p68 = por %p66, %p67
    %p69 = scmp.ne.s32.totalorder %s58, %s61
    %p70 = scmp.eq.s32.totalorder %s13, 1
    %p71 = por %p69, %p70
    %p72 = scmp.ne.s32.totalorder %s61, %s62
    %p73 = scmp.eq.s32.totalorder %s13, 0
    %p74 = por %p72, %p73
    %p75 = scmp.ne.s32.totalorder %s61, %s62
    %p76 = scmp.eq.s32.totalorder %s14, 1
    %p77 = por %p75, %p76
    %p79 = scmp.ne.s32.totalorder %s62, %s78
    %p80 = scmp.eq.s32.totalorder %s14, 0
    %p81 = por %p79, %p80
    %s82 = ssub.s32 %s15, %s27
    %s83 = ssub.s32 %s16, %s23
    %s84 = sor.u32 %s82, %s83
    %p85 = scmp.eq.s32.totalorder %s84, 0
    %s87 = sadd.s32 %s86, 1
    %s88 = scalar_select %p85, %s86, %s87
    %p91 = pneg %p85
    %p92 = scmp.eq.s32.totalorder %s8, 1
    %p93 = por %p91, %p92
    %p94 = scmp.ne.s32.totalorder %s86, %s89
    %p95 = scmp.eq.s32.totalorder %s8, 0
    %p96 = por %p94, %p95
    %p97 = scmp.ne.s32.totalorder %s86, %s89
    %p98 = scmp.eq.s32.totalorder %s13, 1
    %p99 = por %p97, %p98
    %p100 = scmp.ne.s32.totalorder %s89, %s90
    %p101 = scmp.eq.s32.totalorder %s13, 0
    %p102 = por %p100, %p101
    %p103 = scmp.ne.s32.totalorder %s89, %s90
    %p104 = scmp.eq.s32.totalorder %s14, 1
    %p105 = por %p103, %p104
    %p107 = scmp.ne.s32.totalorder %s90, %s106
    %p108 = scmp.eq.s32.totalorder %s14, 0
    %p109 = por %p107, %p108
    %p110 = scmp.le.s32.totalorder 1, %s8
    %p111 = scmp.lt.s32.totalorder %s8, 3
    %p112 = pnand %p110, %p111
    %p113 = pneg %p112
    // Predicated region
    $region9: #{tpu_custom_call.1} parent=5 // pred_check
      _
    $region10: #{tpu_custom_call.1} parent=5 // pred_check_branch
      %115 = sbr.rel (%p112) target = $region12
    $region11: #{tpu_custom_call.1} parent=5 // pred_region
      %s116 = ssub.s32 %s8, 1
      // Predicated region
      $region13: #{tpu_custom_call.1} parent=11 // pred_check
        %p117 = pneg %p74
      $region14: #{tpu_custom_call.1} parent=11 // pred_check_branch
        %119 = sbr.rel (%p117) target = $region16
      $region15: #{tpu_custom_call.1} parent=11 // pred_region
        %p120 = scmp.lt.s32.totalorder %s18, 0
        %s121 = scalar_select %p120, %s18, 0
        %s122 = smul.addr %s121, 8
        %s123 = scalar_lea.vmem %s1, %s122
      $region16: #{tpu_custom_call.1} parent=11 // pred_fallthru
        _
    $region12: #{tpu_custom_call.1} parent=5 // pred_fallthru
      _
    %p124 = scmp.lt.s32.totalorder %s8, 2
    // Predicated region
    $region17: #{tpu_custom_call.1} parent=5 // pred_check
      %p125 = pneg %p124
    $region18: #{tpu_custom_call.1} parent=5 // pred_check_branch
      %127 = sbr.rel (%p125) target = $region20
    $region19: #{tpu_custom_call.1} parent=5 // pred_region
      // Predicated region
      $region21: #{tpu_custom_call.1} parent=19 // pred_check
        %p128 = pneg %p42
      $region22: #{tpu_custom_call.1} parent=19 // pred_check_branch
        %130 = sbr.rel (%p128) target = $region24
      $region23: #{tpu_custom_call.1} parent=19 // pred_region
        %p131 = scmp.lt.s32.totalorder %s15, 1
        %s132 = scalar_select %p131, %s15, 1
        %p133 = scmp.lt.s32.totalorder %s16, 0
        %s134 = scalar_select %p133, %s16, 0
        %s135 = smul.addr %s132, 32
        %s136 = sadd.s32 %s134, %s135
        %s137 = smul.addr %s136, 8
        %s138 = scalar_lea.vmem %s0, %s137
      $region24: #{tpu_custom_call.1} parent=19 // pred_fallthru
        _
    $region20: #{tpu_custom_call.1} parent=5 // pred_fallthru
      _
    %p139 = scmp.le.s32.totalorder 1, %s8
    %p140 = scmp.lt.s32.totalorder %s8, 3
    %p141 = pnand %p139, %p140
    %p142 = pneg %p141
    // Predicated region
    $region25: #{tpu_custom_call.1} parent=5 // pred_check
      _
    $region26: #{tpu_custom_call.1} parent=5 // pred_check_branch
      %144 = sbr.rel (%p141) target = $region28
    $region27: #{tpu_custom_call.1} parent=5 // pred_region
      %s145 = ssub.s32 %s8, 1
      %p146 = scmp.lt.s32.totalorder %s17, 1
      %s147 = scalar_select %p146, %s17, 1
      %p148 = scmp.lt.s32.totalorder %s18, 0
      %s149 = scalar_select %p148, %s18, 0
      %s150 = smul.addr %s147, 32
      %s151 = sadd.s32 %s149, %s150
      %s152 = smul.addr %s151, 8
      %s153 = scalar_lea.vmem %s0, %s152
      %p154 = pneg %p48
      %p155 = pneg %p45
      %p156 = scmp.lt.s32.totalorder %s18, 0
      %s157 = scalar_select %p156, %s18, 0
      %s158 = smul.addr %s157, 8
      %s159 = scalar_lea.vmem %s1, %s158
      %p160 = pneg %p74
      %p161 = pneg %p71
      %p162 = pneg %p102
      %p163 = pneg %p99
      %p164 = scmp.lt.s32.totalorder %s17, 1
      %s165 = scalar_select %p164, %s17, 1
      %p166 = scmp.lt.s32.totalorder %s18, 0
      %s167 = scalar_select %p166, %s18, 0
      %s168 = smul.addr %s165, 32
      %s169 = sadd.s32 %s167, %s168
      %s170 = smul.addr %s169, 8
      %s171 = scalar_lea.vmem %s2, %s170
      %p172 = scmp.lt.s32.totalorder %s17, 1
      %s173 = scalar_select %p172, %s17, 1
      %p174 = scmp.lt.s32.totalorder %s18, 0
      %s175 = scalar_select %p174, %s18, 0
      %s176 = smul.addr %s173, 32
      %s177 = sadd.s32 %s175, %s176
      %s178 = smul.addr %s177, 8
      %s179 = scalar_lea.vmem %s0, %s178
      %p180 = scmp.lt.s32.totalorder %s18, 0
      %s181 = scalar_select %p180, %s18, 0
      %s182 = smul.addr %s181, 8
      %s183 = scalar_lea.vmem %s1, %s182
      %p184 = scmp.lt.s32.totalorder %s17, 1
      %s185 = scalar_select %p184, %s17, 1
      %p186 = scmp.lt.s32.totalorder %s18, 0
      %s187 = scalar_select %p186, %s18, 0
      %s188 = smul.addr %s185, 32
      %s189 = sadd.s32 %s187, %s188
      %s190 = smul.addr %s189, 8
      %s191 = scalar_lea.vmem %s2, %s190
      %vm192 = vcmask 31744
      %193 = vst.msk [vmem:[#allocation2] sm:$0xff] %vm192, 0.0
      %194 = vst.msk [vmem:[#allocation2 + $0x8] sm:$0xff] %vm192, 0.0
      %vm195 = vcmask 27648
      %196 = vst.msk [vmem:[#allocation2 + $0x10] sm:$0xf] %vm195, 0.0
      %197 = vst.msk [vmem:[#allocation2 + $0x18] sm:$0xff] %vm192, 0.0
      %198 = vst.msk [vmem:[#allocation2 + $0x20] sm:$0xff] %vm192, 0.0
      %199 = vst.msk [vmem:[#allocation2 + $0x28] sm:$0xf] %vm195, 0.0
      %200 = vst.msk [vmem:[#allocation2 + $0x30] sm:$0xff] %vm192, 0.0
      %201 = vst.msk [vmem:[#allocation2 + $0x38] sm:$0xff] %vm192, 0.0
      %202 = vst.msk [vmem:[#allocation2 + $0x40] sm:$0xf] %vm195, 0.0
      %203 = vst.msk [vmem:[#allocation2 + $0x48] sm:$0xff] %vm192, 0.0
      %204 = vst.msk [vmem:[#allocation2 + $0x50] sm:$0xff] %vm192, 0.0
      %205 = vst.msk [vmem:[#allocation2 + $0x58] sm:$0xf] %vm195, 0.0
      %206 = vst.msk [vmem:[#allocation2 + $0x60] sm:$0xff] %vm192, 0.0
      %207 = vst.msk [vmem:[#allocation2 + $0x68] sm:$0xff] %vm192, 0.0
      %208 = vst.msk [vmem:[#allocation2 + $0x70] sm:$0xf] %vm195, 0.0
      %209 = vst.msk [vmem:[#allocation2 + $0x78] sm:$0xff] %vm192, 0.0
      %210 = vst.msk [vmem:[#allocation2 + $0x80] sm:$0xff] %vm192, 0.0
      %211 = vst.msk [vmem:[#allocation2 + $0x88] sm:$0xf] %vm195, 0.0
      %212 = vst.msk [vmem:[#allocation2 + $0x90] sm:$0xff] %vm192, 0.0
      %213 = vst.msk [vmem:[#allocation2 + $0x98] sm:$0xff] %vm192, 0.0
      %214 = vst.msk [vmem:[#allocation2 + $0xa0] sm:$0xf] %vm195, 0.0
      %215 = vst.msk [vmem:[#allocation2 + $0xa8] sm:$0xff] %vm192, 0.0
      %216 = vst.msk [vmem:[#allocation2 + $0xb0] sm:$0xff] %vm192, 0.0
      %217 = vst.msk [vmem:[#allocation2 + $0xb8] sm:$0xf] %vm195, 0.0
      %218 = vst.msk [vmem:[#allocation2 + $0xc0] sm:$0xff] %vm192, 0.0
      %219 = vst.msk [vmem:[#allocation2 + $0xc8] sm:$0xff] %vm192, 0.0
      %220 = vst.msk [vmem:[#allocation2 + $0xd0] sm:$0xf] %vm195, 0.0
      %221 = vst.msk [vmem:[#allocation2 + $0xd8] sm:$0xff] %vm192, 0.0
      %222 = vst.msk [vmem:[#allocation2 + $0xe0] sm:$0xff] %vm192, 0.0
      %223 = vst.msk [vmem:[#allocation2 + $0xe8] sm:$0xf] %vm195, 0.0
      %224 = vst.msk [vmem:[#allocation2 + $0xf0] sm:$0xff] %vm192, 0.0
      %225 = vst.msk [vmem:[#allocation2 + $0xf8] sm:$0xff] %vm192, 0.0
      %226 = vst.msk [vmem:[#allocation2 + $0x100] sm:$0xf] %vm195, 0.0
      %227 = vst.msk [vmem:[#allocation2 + $0x108] sm:$0xff] %vm192, 0.0
      %228 = vst.msk [vmem:[#allocation2 + $0x110] sm:$0xff] %vm192, 0.0
      %229 = vst.msk [vmem:[#allocation2 + $0x118] sm:$0xf] %vm195, 0.0
      %230 = vst.msk [vmem:[#allocation2 + $0x120] sm:$0xff] %vm192, 0.0
      %231 = vst.msk [vmem:[#allocation2 + $0x128] sm:$0xff] %vm192, 0.0
      %232 = vst.msk [vmem:[#allocation2 + $0x130] sm:$0xf] %vm195, 0.0
      %233 = vst.msk [vmem:[#allocation2 + $0x138] sm:$0xff] %vm192, 0.0
      %234 = vst.msk [vmem:[#allocation2 + $0x140] sm:$0xff] %vm192, 0.0
      %235 = vst.msk [vmem:[#allocation2 + $0x148] sm:$0xf] %vm195, 0.0
      %236 = vst.msk [vmem:[#allocation2 + $0x150] sm:$0xff] %vm192, 0.0
      %237 = vst.msk [vmem:[#allocation2 + $0x158] sm:$0xff] %vm192, 0.0
      %238 = vst.msk [vmem:[#allocation2 + $0x160] sm:$0xf] %vm195, 0.0
      %239 = vst.msk [vmem:[#allocation2 + $0x168] sm:$0xff] %vm192, 0.0
      %240 = vst.msk [vmem:[#allocation2 + $0x170] sm:$0xff] %vm192, 0.0
      %241 = vst.msk [vmem:[#allocation2 + $0x178] sm:$0xf] %vm195, 0.0
      %242 = vst.msk [vmem:[#allocation2 + $0x180] sm:$0xff] %vm192, 0.0
      %243 = vst.msk [vmem:[#allocation2 + $0x188] sm:$0xff] %vm192, 0.0
      %244 = vst.msk [vmem:[#allocation2 + $0x190] sm:$0xf] %vm195, 0.0
      %245 = vst.msk [vmem:[#allocation2 + $0x198] sm:$0xff] %vm192, 0.0
      %246 = vst.msk [vmem:[#allocation2 + $0x1a0] sm:$0xff] %vm192, 0.0
      %247 = vst.msk [vmem:[#allocation2 + $0x1a8] sm:$0xf] %vm195, 0.0
      %248 = vst.msk [vmem:[#allocation2 + $0x1b0] sm:$0xff] %vm192, 0.0
      %249 = vst.msk [vmem:[#allocation2 + $0x1b8] sm:$0xff] %vm192, 0.0
      %250 = vst.msk [vmem:[#allocation2 + $0x1c0] sm:$0xf] %vm195, 0.0
      %251 = vst.msk [vmem:[#allocation2 + $0x1c8] sm:$0xff] %vm192, 0.0
      %252 = vst.msk [vmem:[#allocation2 + $0x1d0] sm:$0xff] %vm192, 0.0
      %253 = vst.msk [vmem:[#allocation2 + $0x1d8] sm:$0xf] %vm195, 0.0
      %v254 = vld [vmem:[%s179] sm:$0xff]
      %v255 = vld [vmem:[%s179 + $0x8] sm:$0xff]
      %v256 = vld [vmem:[%s179 + $0x10] sm:$0xff]
      %v257 = vld [vmem:[%s179 + $0x18] sm:$0xff]
      %v258 = vld [vmem:[%s179 + $0x20] sm:$0xff]
      %v259 = vld [vmem:[%s179 + $0x28] sm:$0xff]
      %v260 = vld [vmem:[%s179 + $0x30] sm:$0xff]
      %v261 = vld [vmem:[%s179 + $0x38] sm:$0xff]
      %v262 = vld [vmem:[%s179 + $0x40] sm:$0xff]
      %v263 = vld [vmem:[%s179 + $0x48] sm:$0xff]
      %v264 = vld [vmem:[%s179 + $0x50] sm:$0xff]
      %v265 = vld [vmem:[%s179 + $0x58] sm:$0xff]
      %v266 = vld [vmem:[%s179 + $0x60] sm:$0xff]
      %v267 = vld [vmem:[%s179 + $0x68] sm:$0xff]
      %v268 = vld [vmem:[%s179 + $0x70] sm:$0xff]
      %v269 = vld [vmem:[%s179 + $0x78] sm:$0xff]
      %v270 = vld [vmem:[%s179 + $0x80] sm:$0xff]
      %v271 = vld [vmem:[%s179 + $0x88] sm:$0xff]
      %v272 = vld [vmem:[%s179 + $0x90] sm:$0xff]
      %v273 = vld [vmem:[%s179 + $0x98] sm:$0xff]
      %v274 = vld [vmem:[%s179 + $0xa0] sm:$0xff]
      %v275 = vld [vmem:[%s179 + $0xa8] sm:$0xff]
      %v276 = vld [vmem:[%s179 + $0xb0] sm:$0xff]
      %v277 = vld [vmem:[%s179 + $0xb8] sm:$0xff]
      %v278 = vld [vmem:[%s179 + $0xc0] sm:$0xff]
      %v279 = vld [vmem:[%s179 + $0xc8] sm:$0xff]
      %v280 = vld [vmem:[%s179 + $0xd0] sm:$0xff]
      %v281 = vld [vmem:[%s179 + $0xd8] sm:$0xff]
      %v282 = vld [vmem:[%s179 + $0xe0] sm:$0xff]
      %v283 = vld [vmem:[%s179 + $0xe8] sm:$0xff]
      %v284 = vld [vmem:[%s179 + $0xf0] sm:$0xff]
      %v285 = vld [vmem:[%s179 + $0xf8] sm:$0xff]
      %s286 = scalar_lea.vmem [#allocation2], 48
      %287 = vst.msk [vmem:[%s286 + $0x2] sm:$0xff] %vm192, %v254
      %288 = vst.msk [vmem:[%s286 + $0xa] sm:$0xff] %vm192, %v255
      %289 = vst.msk [vmem:[%s286 + $0x1a] sm:$0xff] %vm192, %v256
      %290 = vst.msk [vmem:[%s286 + $0x22] sm:$0xff] %vm192, %v257
      %291 = vst.msk [vmem:[%s286 + $0x32] sm:$0xff] %vm192, %v258
      %292 = vst.msk [vmem:[%s286 + $0x3a] sm:$0xff] %vm192, %v259
      %293 = vst.msk [vmem:[%s286 + $0x4a] sm:$0xff] %vm192, %v260
      %294 = vst.msk [vmem:[%s286 + $0x52] sm:$0xff] %vm192, %v261
      %295 = vst.msk [vmem:[%s286 + $0x62] sm:$0xff] %vm192, %v262
      %296 = vst.msk [vmem:[%s286 + $0x6a] sm:$0xff] %vm192, %v263
      %297 = vst.msk [vmem:[%s286 + $0x7a] sm:$0xff] %vm192, %v264
      %298 = vst.msk [vmem:[%s286 + $0x82] sm:$0xff] %vm192, %v265
      %299 = vst.msk [vmem:[%s286 + $0x92] sm:$0xff] %vm192, %v266
      %300 = vst.msk [vmem:[%s286 + $0x9a] sm:$0xff] %vm192, %v267
      %301 = vst.msk [vmem:[%s286 + $0xaa] sm:$0xff] %vm192, %v268
      %302 = vst.msk [vmem:[%s286 + $0xb2] sm:$0xff] %vm192, %v269
      %303 = vst.msk [vmem:[%s286 + $0xc2] sm:$0xff] %vm192, %v270
      %304 = vst.msk [vmem:[%s286 + $0xca] sm:$0xff] %vm192, %v271
      %305 = vst.msk [vmem:[%s286 + $0xda] sm:$0xff] %vm192, %v272
      %306 = vst.msk [vmem:[%s286 + $0xe2] sm:$0xff] %vm192, %v273
      %307 = vst.msk [vmem:[%s286 + $0xf2] sm:$0xff] %vm192, %v274
      %308 = vst.msk [vmem:[%s286 + $0xfa] sm:$0xff] %vm192, %v275
      %309 = vst.msk [vmem:[%s286 + $0x10a] sm:$0xff] %vm192, %v276
      %310 = vst.msk [vmem:[%s286 + $0x112] sm:$0xff] %vm192, %v277
      %311 = vst.msk [vmem:[%s286 + $0x122] sm:$0xff] %vm192, %v278
      %312 = vst.msk [vmem:[%s286 + $0x12a] sm:$0xff] %vm192, %v279
      %313 = vst.msk [vmem:[%s286 + $0x13a] sm:$0xff] %vm192, %v280
      %314 = vst.msk [vmem:[%s286 + $0x142] sm:$0xff] %vm192, %v281
      %315 = vst.msk [vmem:[%s286 + $0x152] sm:$0xff] %vm192, %v282
      %316 = vst.msk [vmem:[%s286 + $0x15a] sm:$0xff] %vm192, %v283
      %317 = vst.msk [vmem:[%s286 + $0x16a] sm:$0xff] %vm192, %v284
      %318 = vst.msk [vmem:[%s286 + $0x172] sm:$0xff] %vm192, %v285
      %v319 = vld [vmem:[%s183] sm:$0xff]
      %v320 = vld [vmem:[%s183 + $0x8] sm:$0xff]
      %v321 = vld [vmem:[%s183 + $0x10] sm:$0xff]
      %v322 = vld [vmem:[%s183 + $0x18] sm:$0x1]
      %v323 = vld [vmem:[#allocation2] sm:$0xff]
      %v324 = vld [vmem:[#allocation2 + $0x8] sm:$0xff]
      %v325 = vld [vmem:[#allocation2 + $0x18] sm:$0xff]
      %v326 = vld [vmem:[#allocation2 + $0x20] sm:$0xff]
      %v327 = vld [vmem:[#allocation2 + $0x30] sm:$0xff]
      %v328 = vld [vmem:[#allocation2 + $0x38] sm:$0xff]
      %v329 = vld [vmem:[#allocation2 + $0x48] sm:$0xff]
      %v330 = vld [vmem:[#allocation2 + $0x50] sm:$0xff]
      %v331 = vld [vmem:[#allocation2 + $0x60] sm:$0xff]
      %v332 = vld [vmem:[#allocation2 + $0x68] sm:$0xff]
      %v333 = vld [vmem:[#allocation2 + $0x78] sm:$0xff]
      %v334 = vld [vmem:[#allocation2 + $0x80] sm:$0xff]
      %v335 = vld [vmem:[#allocation2 + $0x90] sm:$0xff]
      %v336 = vld [vmem:[#allocation2 + $0x98] sm:$0xff]
      %v337 = vld [vmem:[#allocation2 + $0xa8] sm:$0xff]
      %v338 = vld [vmem:[#allocation2 + $0xb0] sm:$0xff]
      %v339 = vld [vmem:[#allocation2 + $0xc0] sm:$0xff]
      %v340 = vld [vmem:[#allocation2 + $0xc8] sm:$0xff]
      %v341 = vld [vmem:[#allocation2 + $0xd8] sm:$0xff]
      %v342 = vld [vmem:[#allocation2 + $0xe0] sm:$0xff]
      %v343 = vld [vmem:[#allocation2 + $0xf0] sm:$0xff]
      %v344 = vld [vmem:[#allocation2 + $0xf8] sm:$0xff]
      %v345 = vld [vmem:[#allocation2 + $0x108] sm:$0xff]
      %v346 = vld [vmem:[#allocation2 + $0x110] sm:$0xff]
      %v347 = vld [vmem:[#allocation2 + $0x120] sm:$0xff]
      %v348 = vld [vmem:[#allocation2 + $0x128] sm:$0xff]
      %v349 = vld [vmem:[#allocation2 + $0x138] sm:$0xff]
      %v350 = vld [vmem:[#allocation2 + $0x140] sm:$0xff]
      %v351 = vld [vmem:[#allocation2 + $0x150] sm:$0xff]
      %v352 = vld [vmem:[#allocation2 + $0x158] sm:$0xff]
      %v353 = vld [vmem:[#allocation2 + $0x168] sm:$0xff]
      %v354 = vld [vmem:[#allocation2 + $0x170] sm:$0xff]
      %v355 = vlaneseq
      %v356 = vshrl.u32 %v355, 7
      %v357 = vsub.s32 0, %v356
      %v358 = vrot.slane %v319, %v357
      %v359 = vmul.f32 %v323, %v358
      %v360 = vmul.f32 %v324, %v358
      %v361 = vmul.f32 %v325, %v358
      %v362 = vmul.f32 %v326, %v358
      %v363 = vmul.f32 %v327, %v358
      %v364 = vmul.f32 %v328, %v358
      %v365 = vmul.f32 %v329, %v358
      %v366 = vmul.f32 %v330, %v358
      %v367 = vmul.f32 %v331, %v358
      %v368 = vmul.f32 %v332, %v358
      %v369 = vmul.f32 %v333, %v358
      %v370 = vmul.f32 %v334, %v358
      %v371 = vmul.f32 %v335, %v358
      %v372 = vmul.f32 %v336, %v358
      %v373 = vmul.f32 %v337, %v358
      %v374 = vmul.f32 %v338, %v358
      %v375 = vmul.f32 %v339, %v358
      %v376 = vmul.f32 %v340, %v358
      %v377 = vmul.f32 %v341, %v358
      %v378 = vmul.f32 %v342, %v358
      %v379 = vmul.f32 %v343, %v358
      %v380 = vmul.f32 %v344, %v358
      %v381 = vmul.f32 %v345, %v358
      %v382 = vmul.f32 %v346, %v358
      %v383 = vmul.f32 %v347, %v358
      %v384 = vmul.f32 %v348, %v358
      %v385 = vmul.f32 %v349, %v358
      %v386 = vmul.f32 %v350, %v358
      %v387 = vmul.f32 %v351, %v358
      %v388 = vmul.f32 %v352, %v358
      %v389 = vmul.f32 %v353, %v358
      %v390 = vmul.f32 %v354, %v358
      %v391 = vadd.f32 %v359, 0.0
      %v392 = vadd.f32 %v360, 0.0
      %v393 = vadd.f32 %v361, 0.0
      %v394 = vadd.f32 %v362, 0.0
      %v395 = vadd.f32 %v363, 0.0
      %v396 = vadd.f32 %v364, 0.0
      %v397 = vadd.f32 %v365, 0.0
      %v398 = vadd.f32 %v366, 0.0
      %v399 = vadd.f32 %v367, 0.0
      %v400 = vadd.f32 %v368, 0.0
      %v401 = vadd.f32 %v369, 0.0
      %v402 = vadd.f32 %v370, 0.0
      %v403 = vadd.f32 %v371, 0.0
      %v404 = vadd.f32 %v372, 0.0
      %v405 = vadd.f32 %v373, 0.0
      %v406 = vadd.f32 %v374, 0.0
      %v407 = vadd.f32 %v375, 0.0
      %v408 = vadd.f32 %v376, 0.0
      %v409 = vadd.f32 %v377, 0.0
      %v410 = vadd.f32 %v378, 0.0
      %v411 = vadd.f32 %v379, 0.0
      %v412 = vadd.f32 %v380, 0.0
      %v413 = vadd.f32 %v381, 0.0
      %v414 = vadd.f32 %v382, 0.0
      %v415 = vadd.f32 %v383, 0.0
      %v416 = vadd.f32 %v384, 0.0
      %v417 = vadd.f32 %v385, 0.0
      %v418 = vadd.f32 %v386, 0.0
      %v419 = vadd.f32 %v387, 0.0
      %v420 = vadd.f32 %v388, 0.0
      %v421 = vadd.f32 %v389, 0.0
      %v422 = vadd.f32 %v390, 0.0
      %v423 = vld [vmem:[#allocation2 + $0x1] sm:$0xff]
      %v424 = vld [vmem:[#allocation2 + $0x9] sm:$0xff]
      %v425 = vld [vmem:[#allocation2 + $0x19] sm:$0xff]
      %v426 = vld [vmem:[#allocation2 + $0x21] sm:$0xff]
      %v427 = vld [vmem:[#allocation2 + $0x31] sm:$0xff]
      %v428 = vld [vmem:[#allocation2 + $0x39] sm:$0xff]
      %v429 = vld [vmem:[#allocation2 + $0x49] sm:$0xff]
      %v430 = vld [vmem:[#allocation2 + $0x51] sm:$0xff]
      %v431 = vld [vmem:[#allocation2 + $0x61] sm:$0xff]
      %v432 = vld [vmem:[#allocation2 + $0x69] sm:$0xff]
      %v433 = vld [vmem:[#allocation2 + $0x79] sm:$0xff]
      %v434 = vld [vmem:[#allocation2 + $0x81] sm:$0xff]
      %v435 = vld [vmem:[#allocation2 + $0x91] sm:$0xff]
      %v436 = vld [vmem:[#allocation2 + $0x99] sm:$0xff]
      %v437 = vld [vmem:[#allocation2 + $0xa9] sm:$0xff]
      %v438 = vld [vmem:[#allocation2 + $0xb1] sm:$0xff]
      %v439 = vld [vmem:[#allocation2 + $0xc1] sm:$0xff]
      %v440 = vld [vmem:[#allocation2 + $0xc9] sm:$0xff]
      %v441 = vld [vmem:[#allocation2 + $0xd9] sm:$0xff]
      %v442 = vld [vmem:[#allocation2 + $0xe1] sm:$0xff]
      %v443 = vld [vmem:[#allocation2 + $0xf1] sm:$0xff]
      %v444 = vld [vmem:[#allocation2 + $0xf9] sm:$0xff]
      %v445 = vld [vmem:[#allocation2 + $0x109] sm:$0xff]
      %v446 = vld [vmem:[#allocation2 + $0x111] sm:$0xff]
      %v447 = vld [vmem:[#allocation2 + $0x121] sm:$0xff]
      %v448 = vld [vmem:[#allocation2 + $0x129] sm:$0xff]
      %v449 = vld [vmem:[#allocation2 + $0x139] sm:$0xff]
      %v450 = vld [vmem:[#allocation2 + $0x141] sm:$0xff]
      %v451 = vld [vmem:[#allocation2 + $0x151] sm:$0xff]
      %v452 = vld [vmem:[#allocation2 + $0x159] sm:$0xff]
      %v453 = vld [vmem:[#allocation2 + $0x169] sm:$0xff]
      %v454 = vld [vmem:[#allocation2 + $0x171] sm:$0xff]
      %v455 = vlaneseq
      %v456 = vshrl.u32 %v455, 7
      %v457 = vsub.s32 1, %v456
      %v458 = vrot.slane %v319, %v457
      %v459 = vmul.f32 %v423, %v458
      %v460 = vmul.f32 %v424, %v458
      %v461 = vmul.f32 %v425, %v458
      %v462 = vmul.f32 %v426, %v458
      %v463 = vmul.f32 %v427, %v458
      %v464 = vmul.f32 %v428, %v458
      %v465 = vmul.f32 %v429, %v458
      %v466 = vmul.f32 %v430, %v458
      %v467 = vmul.f32 %v431, %v458
      %v468 = vmul.f32 %v432, %v458
      %v469 = vmul.f32 %v433, %v458
      %v470 = vmul.f32 %v434, %v458
      %v471 = vmul.f32 %v435, %v458
      %v472 = vmul.f32 %v436, %v458
      %v473 = vmul.f32 %v437, %v458
      %v474 = vmul.f32 %v438, %v458
      %v475 = vmul.f32 %v439, %v458
      %v476 = vmul.f32 %v440, %v458
      %v477 = vmul.f32 %v441, %v458
      %v478 = vmul.f32 %v442, %v458
      %v479 = vmul.f32 %v443, %v458
      %v480 = vmul.f32 %v444, %v458
      %v481 = vmul.f32 %v445, %v458
      %v482 = vmul.f32 %v446, %v458
      %v483 = vmul.f32 %v447, %v458
      %v484 = vmul.f32 %v448, %v458
      %v485 = vmul.f32 %v449, %v458
      %v486 = vmul.f32 %v450, %v458
      %v487 = vmul.f32 %v451, %v458
      %v488 = vmul.f32 %v452, %v458
      %v489 = vmul.f32 %v453, %v458
      %v490 = vmul.f32 %v454, %v458
      %v491 = vadd.f32 %v391, %v459
      %v492 = vadd.f32 %v392, %v460
      %v493 = vadd.f32 %v393, %v461
      %v494 = vadd.f32 %v394, %v462
      %v495 = vadd.f32 %v395, %v463
      %v496 = vadd.f32 %v396, %v464
      %v497 = vadd.f32 %v397, %v465
      %v498 = vadd.f32 %v398, %v466
      %v499 = vadd.f32 %v399, %v467
      %v500 = vadd.f32 %v400, %v468
      %v501 = vadd.f32 %v401, %v469
      %v502 = vadd.f32 %v402, %v470
      %v503 = vadd.f32 %v403, %v471
      %v504 = vadd.f32 %v404, %v472
      %v505 = vadd.f32 %v405, %v473
      %v506 = vadd.f32 %v406, %v474
      %v507 = vadd.f32 %v407, %v475
      %v508 = vadd.f32 %v408, %v476
      %v509 = vadd.f32 %v409, %v477
      %v510 = vadd.f32 %v410, %v478
      %v511 = vadd.f32 %v411, %v479
      %v512 = vadd.f32 %v412, %v480
      %v513 = vadd.f32 %v413, %v481
      %v514 = vadd.f32 %v414, %v482
      %v515 = vadd.f32 %v415, %v483
      %v516 = vadd.f32 %v416, %v484
      %v517 = vadd.f32 %v417, %v485
      %v518 = vadd.f32 %v418, %v486
      %v519 = vadd.f32 %v419, %v487
      %v520 = vadd.f32 %v420, %v488
      %v521 = vadd.f32 %v421, %v489
      %v522 = vadd.f32 %v422, %v490
      %v523 = vld [vmem:[#allocation2 + $0x2] sm:$0xff]
      %v524 = vld [vmem:[#allocation2 + $0xa] sm:$0xff]
      %v525 = vld [vmem:[#allocation2 + $0x1a] sm:$0xff]
      %v526 = vld [vmem:[#allocation2 + $0x22] sm:$0xff]
      %v527 = vld [vmem:[#allocation2 + $0x32] sm:$0xff]
      %v528 = vld [vmem:[#allocation2 + $0x3a] sm:$0xff]
      %v529 = vld [vmem:[#allocation2 + $0x4a] sm:$0xff]
      %v530 = vld [vmem:[#allocation2 + $0x52] sm:$0xff]
      %v531 = vld [vmem:[#allocation2 + $0x62] sm:$0xff]
      %v532 = vld [vmem:[#allocation2 + $0x6a] sm:$0xff]
      %v533 = vld [vmem:[#allocation2 + $0x7a] sm:$0xff]
      %v534 = vld [vmem:[#allocation2 + $0x82] sm:$0xff]
      %v535 = vld [vmem:[#allocation2 + $0x92] sm:$0xff]
      %v536 = vld [vmem:[#allocation2 + $0x9a] sm:$0xff]
      %v537 = vld [vmem:[#allocation2 + $0xaa] sm:$0xff]
      %v538 = vld [vmem:[#allocation2 + $0xb2] sm:$0xff]
      %v539 = vld [vmem:[#allocation2 + $0xc2] sm:$0xff]
      %v540 = vld [vmem:[#allocation2 + $0xca] sm:$0xff]
      %v541 = vld [vmem:[#allocation2 + $0xda] sm:$0xff]
      %v542 = vld [vmem:[#allocation2 + $0xe2] sm:$0xff]
      %v543 = vld [vmem:[#allocation2 + $0xf2] sm:$0xff]
      %v544 = vld [vmem:[#allocation2 + $0xfa] sm:$0xff]
      %v545 = vld [vmem:[#allocation2 + $0x10a] sm:$0xff]
      %v546 = vld [vmem:[#allocation2 + $0x112] sm:$0xff]
      %v547 = vld [vmem:[#allocation2 + $0x122] sm:$0xff]
      %v548 = vld [vmem:[#allocation2 + $0x12a] sm:$0xff]
      %v549 = vld [vmem:[#allocation2 + $0x13a] sm:$0xff]
      %v550 = vld [vmem:[#allocation2 + $0x142] sm:$0xff]
      %v551 = vld [vmem:[#allocation2 + $0x152] sm:$0xff]
      %v552 = vld [vmem:[#allocation2 + $0x15a] sm:$0xff]
      %v553 = vld [vmem:[#allocation2 + $0x16a] sm:$0xff]
      %v554 = vld [vmem:[#allocation2 + $0x172] sm:$0xff]
      %v555 = vlaneseq
      %v556 = vshrl.u32 %v555, 7
      %v557 = vsub.s32 2, %v556
      %v558 = vrot.slane %v319, %v557
      %v559 = vmul.f32 %v523, %v558
      %v560 = vmul.f32 %v524, %v558
      %v561 = vmul.f32 %v525, %v558
      %v562 = vmul.f32 %v526, %v558
      %v563 = vmul.f32 %v527, %v558
      %v564 = vmul.f32 %v528, %v558
      %v565 = vmul.f32 %v529, %v558
      %v566 = vmul.f32 %v530, %v558
      %v567 = vmul.f32 %v531, %v558
      %v568 = vmul.f32 %v532, %v558
      %v569 = vmul.f32 %v533, %v558
      %v570 = vmul.f32 %v534, %v558
      %v571 = vmul.f32 %v535, %v558
      %v572 = vmul.f32 %v536, %v558
      %v573 = vmul.f32 %v537, %v558
      %v574 = vmul.f32 %v538, %v558
      %v575 = vmul.f32 %v539, %v558
      %v576 = vmul.f32 %v540, %v558
      %v577 = vmul.f32 %v541, %v558
      %v578 = vmul.f32 %v542, %v558
      %v579 = vmul.f32 %v543, %v558
      %v580 = vmul.f32 %v544, %v558
      %v581 = vmul.f32 %v545, %v558
      %v582 = vmul.f32 %v546, %v558
      %v583 = vmul.f32 %v547, %v558
      %v584 = vmul.f32 %v548, %v558
      %v585 = vmul.f32 %v549, %v558
      %v586 = vmul.f32 %v550, %v558
      %v587 = vmul.f32 %v551, %v558
      %v588 = vmul.f32 %v552, %v558
      %v589 = vmul.f32 %v553, %v558
      %v590 = vmul.f32 %v554, %v558
      %v591 = vadd.f32 %v491, %v559
      %v592 = vadd.f32 %v492, %v560
      %v593 = vadd.f32 %v493, %v561
      %v594 = vadd.f32 %v494, %v562
      %v595 = vadd.f32 %v495, %v563
      %v596 = vadd.f32 %v496, %v564
      %v597 = vadd.f32 %v497, %v565
      %v598 = vadd.f32 %v498, %v566
      %v599 = vadd.f32 %v499, %v567
      %v600 = vadd.f32 %v500, %v568
      %v601 = vadd.f32 %v501, %v569
      %v602 = vadd.f32 %v502, %v570
      %v603 = vadd.f32 %v503, %v571
      %v604 = vadd.f32 %v504, %v572
      %v605 = vadd.f32 %v505, %v573
      %v606 = vadd.f32 %v506, %v574
      %v607 = vadd.f32 %v507, %v575
      %v608 = vadd.f32 %v508, %v576
      %v609 = vadd.f32 %v509, %v577
      %v610 = vadd.f32 %v510, %v578
      %v611 = vadd.f32 %v511, %v579
      %v612 = vadd.f32 %v512, %v580
      %v613 = vadd.f32 %v513, %v581
      %v614 = vadd.f32 %v514, %v582
      %v615 = vadd.f32 %v515, %v583
      %v616 = vadd.f32 %v516, %v584
      %v617 = vadd.f32 %v517, %v585
      %v618 = vadd.f32 %v518, %v586
      %v619 = vadd.f32 %v519, %v587
      %v620 = vadd.f32 %v520, %v588
      %v621 = vadd.f32 %v521, %v589
      %v622 = vadd.f32 %v522, %v590
      %v623 = vld [vmem:[#allocation2 + $0x3] sm:$0xff]
      %v624 = vld [vmem:[#allocation2 + $0xb] sm:$0xff]
      %v625 = vld [vmem:[#allocation2 + $0x1b] sm:$0xff]
      %v626 = vld [vmem:[#allocation2 + $0x23] sm:$0xff]
      %v627 = vld [vmem:[#allocation2 + $0x33] sm:$0xff]
      %v628 = vld [vmem:[#allocation2 + $0x3b] sm:$0xff]
      %v629 = vld [vmem:[#allocation2 + $0x4b] sm:$0xff]
      %v630 = vld [vmem:[#allocation2 + $0x53] sm:$0xff]
      %v631 = vld [vmem:[#allocation2 + $0x63] sm:$0xff]
      %v632 = vld [vmem:[#allocation2 + $0x6b] sm:$0xff]
      %v633 = vld [vmem:[#allocation2 + $0x7b] sm:$0xff]
      %v634 = vld [vmem:[#allocation2 + $0x83] sm:$0xff]
      %v635 = vld [vmem:[#allocation2 + $0x93] sm:$0xff]
      %v636 = vld [vmem:[#allocation2 + $0x9b] sm:$0xff]
      %v637 = vld [vmem:[#allocation2 + $0xab] sm:$0xff]
      %v638 = vld [vmem:[#allocation2 + $0xb3] sm:$0xff]
      %v639 = vld [vmem:[#allocation2 + $0xc3] sm:$0xff]
      %v640 = vld [vmem:[#allocation2 + $0xcb] sm:$0xff]
      %v641 = vld [vmem:[#allocation2 + $0xdb] sm:$0xff]
      %v642 = vld [vmem:[#allocation2 + $0xe3] sm:$0xff]
      %v643 = vld [vmem:[#allocation2 + $0xf3] sm:$0xff]
      %v644 = vld [vmem:[#allocation2 + $0xfb] sm:$0xff]
      %v645 = vld [vmem:[#allocation2 + $0x10b] sm:$0xff]
      %v646 = vld [vmem:[#allocation2 + $0x113] sm:$0xff]
      %v647 = vld [vmem:[#allocation2 + $0x123] sm:$0xff]
      %v648 = vld [vmem:[#allocation2 + $0x12b] sm:$0xff]
      %v649 = vld [vmem:[#allocation2 + $0x13b] sm:$0xff]
      %v650 = vld [vmem:[#allocation2 + $0x143] sm:$0xff]
      %v651 = vld [vmem:[#allocation2 + $0x153] sm:$0xff]
      %v652 = vld [vmem:[#allocation2 + $0x15b] sm:$0xff]
      %v653 = vld [vmem:[#allocation2 + $0x16b] sm:$0xff]
      %v654 = vld [vmem:[#allocation2 + $0x173] sm:$0xff]
      %v655 = vlaneseq
      %v656 = vshrl.u32 %v655, 7
      %v657 = vsub.s32 3, %v656
      %v658 = vrot.slane %v319, %v657
      %v659 = vmul.f32 %v623, %v658
      %v660 = vmul.f32 %v624, %v658
      %v661 = vmul.f32 %v625, %v658
      %v662 = vmul.f32 %v626, %v658
      %v663 = vmul.f32 %v627, %v658
      %v664 = vmul.f32 %v628, %v658
      %v665 = vmul.f32 %v629, %v658
      %v666 = vmul.f32 %v630, %v658
      %v667 = vmul.f32 %v631, %v658
      %v668 = vmul.f32 %v632, %v658
      %v669 = vmul.f32 %v633, %v658
      %v670 = vmul.f32 %v634, %v658
      %v671 = vmul.f32 %v635, %v658
      %v672 = vmul.f32 %v636, %v658
      %v673 = vmul.f32 %v637, %v658
      %v674 = vmul.f32 %v638, %v658
      %v675 = vmul.f32 %v639, %v658
      %v676 = vmul.f32 %v640, %v658
      %v677 = vmul.f32 %v641, %v658
      %v678 = vmul.f32 %v642, %v658
      %v679 = vmul.f32 %v643, %v658
      %v680 = vmul.f32 %v644, %v658
      %v681 = vmul.f32 %v645, %v658
      %v682 = vmul.f32 %v646, %v658
      %v683 = vmul.f32 %v647, %v658
      %v684 = vmul.f32 %v648, %v658
      %v685 = vmul.f32 %v649, %v658
      %v686 = vmul.f32 %v650, %v658
      %v687 = vmul.f32 %v651, %v658
      %v688 = vmul.f32 %v652, %v658
      %v689 = vmul.f32 %v653, %v658
      %v690 = vmul.f32 %v654, %v658
      %v691 = vadd.f32 %v591, %v659
      %v692 = vadd.f32 %v592, %v660
      %v693 = vadd.f32 %v593, %v661
      %v694 = vadd.f32 %v594, %v662
      %v695 = vadd.f32 %v595, %v663
      %v696 = vadd.f32 %v596, %v664
      %v697 = vadd.f32 %v597, %v665
      %v698 = vadd.f32 %v598, %v666
      %v699 = vadd.f32 %v599, %v667
      %v700 = vadd.f32 %v600, %v668
      %v701 = vadd.f32 %v601, %v669
      %v702 = vadd.f32 %v602, %v670
      %v703 = vadd.f32 %v603, %v671
      %v704 = vadd.f32 %v604, %v672
      %v705 = vadd.f32 %v605, %v673
      %v706 = vadd.f32 %v606, %v674
      %v707 = vadd.f32 %v607, %v675
      %v708 = vadd.f32 %v608, %v676
      %v709 = vadd.f32 %v609, %v677
      %v710 = vadd.f32 %v610, %v678
      %v711 = vadd.f32 %v611, %v679
      %v712 = vadd.f32 %v612, %v680
      %v713 = vadd.f32 %v613, %v681
      %v714 = vadd.f32 %v614, %v682
      %v715 = vadd.f32 %v615, %v683
      %v716 = vadd.f32 %v616, %v684
      %v717 = vadd.f32 %v617, %v685
      %v718 = vadd.f32 %v618, %v686
      %v719 = vadd.f32 %v619, %v687
      %v720 = vadd.f32 %v620, %v688
      %v721 = vadd.f32 %v621, %v689
      %v722 = vadd.f32 %v622, %v690
      %v723 = vld [vmem:[#allocation2 + $0x4] sm:$0xff]
      %v724 = vld [vmem:[#allocation2 + $0xc] sm:$0xff]
      %v725 = vld [vmem:[#allocation2 + $0x1c] sm:$0xff]
      %v726 = vld [vmem:[#allocation2 + $0x24] sm:$0xff]
      %v727 = vld [vmem:[#allocation2 + $0x34] sm:$0xff]
      %v728 = vld [vmem:[#allocation2 + $0x3c] sm:$0xff]
      %v729 = vld [vmem:[#allocation2 + $0x4c] sm:$0xff]
      %v730 = vld [vmem:[#allocation2 + $0x54] sm:$0xff]
      %v731 = vld [vmem:[#allocation2 + $0x64] sm:$0xff]
      %v732 = vld [vmem:[#allocation2 + $0x6c] sm:$0xff]
      %v733 = vld [vmem:[#allocation2 + $0x7c] sm:$0xff]
      %v734 = vld [vmem:[#allocation2 + $0x84] sm:$0xff]
      %v735 = vld [vmem:[#allocation2 + $0x94] sm:$0xff]
      %v736 = vld [vmem:[#allocation2 + $0x9c] sm:$0xff]
      %v737 = vld [vmem:[#allocation2 + $0xac] sm:$0xff]
      %v738 = vld [vmem:[#allocation2 + $0xb4] sm:$0xff]
      %v739 = vld [vmem:[#allocation2 + $0xc4] sm:$0xff]
      %v740 = vld [vmem:[#allocation2 + $0xcc] sm:$0xff]
      %v741 = vld [vmem:[#allocation2 + $0xdc] sm:$0xff]
      %v742 = vld [vmem:[#allocation2 + $0xe4] sm:$0xff]
      %v743 = vld [vmem:[#allocation2 + $0xf4] sm:$0xff]
      %v744 = vld [vmem:[#allocation2 + $0xfc] sm:$0xff]
      %v745 = vld [vmem:[#allocation2 + $0x10c] sm:$0xff]
      %v746 = vld [vmem:[#allocation2 + $0x114] sm:$0xff]
      %v747 = vld [vmem:[#allocation2 + $0x124] sm:$0xff]
      %v748 = vld [vmem:[#allocation2 + $0x12c] sm:$0xff]
      %v749 = vld [vmem:[#allocation2 + $0x13c] sm:$0xff]
      %v750 = vld [vmem:[#allocation2 + $0x144] sm:$0xff]
      %v751 = vld [vmem:[#allocation2 + $0x154] sm:$0xff]
      %v752 = vld [vmem:[#allocation2 + $0x15c] sm:$0xff]
      %v753 = vld [vmem:[#allocation2 + $0x16c] sm:$0xff]
      %v754 = vld [vmem:[#allocation2 + $0x174] sm:$0xff]
      %v755 = vlaneseq
      %v756 = vshrl.u32 %v755, 7
      %v757 = vsub.s32 4, %v756
      %v758 = vrot.slane %v319, %v757
      %v759 = vmul.f32 %v723, %v758
      %v760 = vmul.f32 %v724, %v758
      %v761 = vmul.f32 %v725, %v758
      %v762 = vmul.f32 %v726, %v758
      %v763 = vmul.f32 %v727, %v758
      %v764 = vmul.f32 %v728, %v758
      %v765 = vmul.f32 %v729, %v758
      %v766 = vmul.f32 %v730, %v758
      %v767 = vmul.f32 %v731, %v758
      %v768 = vmul.f32 %v732, %v758
      %v769 = vmul.f32 %v733, %v758
      %v770 = vmul.f32 %v734, %v758
      %v771 = vmul.f32 %v735, %v758
      %v772 = vmul.f32 %v736, %v758
      %v773 = vmul.f32 %v737, %v758
      %v774 = vmul.f32 %v738, %v758
      %v775 = vmul.f32 %v739, %v758
      %v776 = vmul.f32 %v740, %v758
      %v777 = vmul.f32 %v741, %v758
      %v778 = vmul.f32 %v742, %v758
      %v779 = vmul.f32 %v743, %v758
      %v780 = vmul.f32 %v744, %v758
      %v781 = vmul.f32 %v745, %v758
      %v782 = vmul.f32 %v746, %v758
      %v783 = vmul.f32 %v747, %v758
      %v784 = vmul.f32 %v748, %v758
      %v785 = vmul.f32 %v749, %v758
      %v786 = vmul.f32 %v750, %v758
      %v787 = vmul.f32 %v751, %v758
      %v788 = vmul.f32 %v752, %v758
      %v789 = vmul.f32 %v753, %v758
      %v790 = vmul.f32 %v754, %v758
      %v791 = vadd.f32 %v691, %v759
      %v792 = vadd.f32 %v692, %v760
      %v793 = vadd.f32 %v693, %v761
      %v794 = vadd.f32 %v694, %v762
      %v795 = vadd.f32 %v695, %v763
      %v796 = vadd.f32 %v696, %v764
      %v797 = vadd.f32 %v697, %v765
      %v798 = vadd.f32 %v698, %v766
      %v799 = vadd.f32 %v699, %v767
      %v800 = vadd.f32 %v700, %v768
      %v801 = vadd.f32 %v701, %v769
      %v802 = vadd.f32 %v702, %v770
      %v803 = vadd.f32 %v703, %v771
      %v804 = vadd.f32 %v704, %v772
      %v805 = vadd.f32 %v705, %v773
      %v806 = vadd.f32 %v706, %v774
      %v807 = vadd.f32 %v707, %v775
      %v808 = vadd.f32 %v708, %v776
      %v809 = vadd.f32 %v709, %v777
      %v810 = vadd.f32 %v710, %v778
      %v811 = vadd.f32 %v711, %v779
      %v812 = vadd.f32 %v712, %v780
      %v813 = vadd.f32 %v713, %v781
      %v814 = vadd.f32 %v714, %v782
      %v815 = vadd.f32 %v715, %v783
      %v816 = vadd.f32 %v716, %v784
      %v817 = vadd.f32 %v717, %v785
      %v818 = vadd.f32 %v718, %v786
      %v819 = vadd.f32 %v719, %v787
      %v820 = vadd.f32 %v720, %v788
      %v821 = vadd.f32 %v721, %v789
      %v822 = vadd.f32 %v722, %v790
      %s823 = scalar_lea.vmem [#allocation2], 24
      %v824 = vld [vmem:[%s823] sm:$0xff]
      %v825 = vld [vmem:[%s823 + $0x8] sm:$0xff]
      %v826 = vld [vmem:[%s823 + $0x18] sm:$0xff]
      %v827 = vld [vmem:[%s823 + $0x20] sm:$0xff]
      %v828 = vld [vmem:[%s823 + $0x30] sm:$0xff]
      %v829 = vld [vmem:[%s823 + $0x38] sm:$0xff]
      %v830 = vld [vmem:[%s823 + $0x48] sm:$0xff]
      %v831 = vld [vmem:[%s823 + $0x50] sm:$0xff]
      %v832 = vld [vmem:[%s823 + $0x60] sm:$0xff]
      %v833 = vld [vmem:[%s823 + $0x68] sm:$0xff]
      %v834 = vld [vmem:[%s823 + $0x78] sm:$0xff]
      %v835 = vld [vmem:[%s823 + $0x80] sm:$0xff]
      %v836 = vld [vmem:[%s823 + $0x90] sm:$0xff]
      %v837 = vld [vmem:[%s823 + $0x98] sm:$0xff]
      %v838 = vld [vmem:[%s823 + $0xa8] sm:$0xff]
      %v839 = vld [vmem:[%s823 + $0xb0] sm:$0xff]
      %v840 = vld [vmem:[%s823 + $0xc0] sm:$0xff]
      %v841 = vld [vmem:[%s823 + $0xc8] sm:$0xff]
      %v842 = vld [vmem:[%s823 + $0xd8] sm:$0xff]
      %v843 = vld [vmem:[%s823 + $0xe0] sm:$0xff]
      %v844 = vld [vmem:[%s823 + $0xf0] sm:$0xff]
      %v845 = vld [vmem:[%s823 + $0xf8] sm:$0xff]
      %v846 = vld [vmem:[%s823 + $0x108] sm:$0xff]
      %v847 = vld [vmem:[%s823 + $0x110] sm:$0xff]
      %v848 = vld [vmem:[%s823 + $0x120] sm:$0xff]
      %v849 = vld [vmem:[%s823 + $0x128] sm:$0xff]
      %v850 = vld [vmem:[%s823 + $0x138] sm:$0xff]
      %v851 = vld [vmem:[%s823 + $0x140] sm:$0xff]
      %v852 = vld [vmem:[%s823 + $0x150] sm:$0xff]
      %v853 = vld [vmem:[%s823 + $0x158] sm:$0xff]
      %v854 = vld [vmem:[%s823 + $0x168] sm:$0xff]
      %v855 = vld [vmem:[%s823 + $0x170] sm:$0xff]
      %v856 = vlaneseq
      %v857 = vshrl.u32 %v856, 7
      %v858 = vsub.s32 5, %v857
      %v859 = vrot.slane %v319, %v858
      %v860 = vmul.f32 %v824, %v859
      %v861 = vmul.f32 %v825, %v859
      %v862 = vmul.f32 %v826, %v859
      %v863 = vmul.f32 %v827, %v859
      %v864 = vmul.f32 %v828, %v859
      %v865 = vmul.f32 %v829, %v859
      %v866 = vmul.f32 %v830, %v859
      %v867 = vmul.f32 %v831, %v859
      %v868 = vmul.f32 %v832, %v859
      %v869 = vmul.f32 %v833, %v859
      %v870 = vmul.f32 %v834, %v859
      %v871 = vmul.f32 %v835, %v859
      %v872 = vmul.f32 %v836, %v859
      %v873 = vmul.f32 %v837, %v859
      %v874 = vmul.f32 %v838, %v859
      %v875 = vmul.f32 %v839, %v859
      %v876 = vmul.f32 %v840, %v859
      %v877 = vmul.f32 %v841, %v859
      %v878 = vmul.f32 %v842, %v859
      %v879 = vmul.f32 %v843, %v859
      %v880 = vmul.f32 %v844, %v859
      %v881 = vmul.f32 %v845, %v859
      %v882 = vmul.f32 %v846, %v859
      %v883 = vmul.f32 %v847, %v859
      %v884 = vmul.f32 %v848, %v859
      %v885 = vmul.f32 %v849, %v859
      %v886 = vmul.f32 %v850, %v859
      %v887 = vmul.f32 %v851, %v859
      %v888 = vmul.f32 %v852, %v859
      %v889 = vmul.f32 %v853, %v859
      %v890 = vmul.f32 %v854, %v859
      %v891 = vmul.f32 %v855, %v859
      %v892 = vadd.f32 %v791, %v860
      %v893 = vadd.f32 %v792, %v861
      %v894 = vadd.f32 %v793, %v862
      %v895 = vadd.f32 %v794, %v863
      %v896 = vadd.f32 %v795, %v864
      %v897 = vadd.f32 %v796, %v865
      %v898 = vadd.f32 %v797, %v866
      %v899 = vadd.f32 %v798, %v867
      %v900 = vadd.f32 %v799, %v868
      %v901 = vadd.f32 %v800, %v869
      %v902 = vadd.f32 %v801, %v870
      %v903 = vadd.f32 %v802, %v871
      %v904 = vadd.f32 %v803, %v872
      %v905 = vadd.f32 %v804, %v873
      %v906 = vadd.f32 %v805, %v874
      %v907 = vadd.f32 %v806, %v875
      %v908 = vadd.f32 %v807, %v876
      %v909 = vadd.f32 %v808, %v877
      %v910 = vadd.f32 %v809, %v878
      %v911 = vadd.f32 %v810, %v879
      %v912 = vadd.f32 %v811, %v880
      %v913 = vadd.f32 %v812, %v881
      %v914 = vadd.f32 %v813, %v882
      %v915 = vadd.f32 %v814, %v883
      %v916 = vadd.f32 %v815, %v884
      %v917 = vadd.f32 %v816, %v885
      %v918 = vadd.f32 %v817, %v886
      %v919 = vadd.f32 %v818, %v887
      %v920 = vadd.f32 %v819, %v888
      %v921 = vadd.f32 %v820, %v889
      %v922 = vadd.f32 %v821, %v890
      %v923 = vadd.f32 %v822, %v891
      %v924 = vld [vmem:[%s823 + $0x1] sm:$0xff]
      %v925 = vld [vmem:[%s823 + $0x9] sm:$0xff]
      %v926 = vld [vmem:[%s823 + $0x19] sm:$0xff]
      %v927 = vld [vmem:[%s823 + $0x21] sm:$0xff]
      %v928 = vld [vmem:[%s823 + $0x31] sm:$0xff]
      %v929 = vld [vmem:[%s823 + $0x39] sm:$0xff]
      %v930 = vld [vmem:[%s823 + $0x49] sm:$0xff]
      %v931 = vld [vmem:[%s823 + $0x51] sm:$0xff]
      %v932 = vld [vmem:[%s823 + $0x61] sm:$0xff]
      %v933 = vld [vmem:[%s823 + $0x69] sm:$0xff]
      %v934 = vld [vmem:[%s823 + $0x79] sm:$0xff]
      %v935 = vld [vmem:[%s823 + $0x81] sm:$0xff]
      %v936 = vld [vmem:[%s823 + $0x91] sm:$0xff]
      %v937 = vld [vmem:[%s823 + $0x99] sm:$0xff]
      %v938 = vld [vmem:[%s823 + $0xa9] sm:$0xff]
      %v939 = vld [vmem:[%s823 + $0xb1] sm:$0xff]
      %v940 = vld [vmem:[%s823 + $0xc1] sm:$0xff]
      %v941 = vld [vmem:[%s823 + $0xc9] sm:$0xff]
      %v942 = vld [vmem:[%s823 + $0xd9] sm:$0xff]
      %v943 = vld [vmem:[%s823 + $0xe1] sm:$0xff]
      %v944 = vld [vmem:[%s823 + $0xf1] sm:$0xff]
      %v945 = vld [vmem:[%s823 + $0xf9] sm:$0xff]
      %v946 = vld [vmem:[%s823 + $0x109] sm:$0xff]
      %v947 = vld [vmem:[%s823 + $0x111] sm:$0xff]
      %v948 = vld [vmem:[%s823 + $0x121] sm:$0xff]
      %v949 = vld [vmem:[%s823 + $0x129] sm:$0xff]
      %v950 = vld [vmem:[%s823 + $0x139] sm:$0xff]
      %v951 = vld [vmem:[%s823 + $0x141] sm:$0xff]
      %v952 = vld [vmem:[%s823 + $0x151] sm:$0xff]
      %v953 = vld [vmem:[%s823 + $0x159] sm:$0xff]
      %v954 = vld [vmem:[%s823 + $0x169] sm:$0xff]
      %v955 = vld [vmem:[%s823 + $0x171] sm:$0xff]
      %v956 = vlaneseq
      %v957 = vshrl.u32 %v956, 7
      %v958 = vsub.s32 6, %v957
      %v959 = vrot.slane %v319, %v958
      %v960 = vmul.f32 %v924, %v959
      %v961 = vmul.f32 %v925, %v959
      %v962 = vmul.f32 %v926, %v959
      %v963 = vmul.f32 %v927, %v959
      %v964 = vmul.f32 %v928, %v959
      %v965 = vmul.f32 %v929, %v959
      %v966 = vmul.f32 %v930, %v959
      %v967 = vmul.f32 %v931, %v959
      %v968 = vmul.f32 %v932, %v959
      %v969 = vmul.f32 %v933, %v959
      %v970 = vmul.f32 %v934, %v959
      %v971 = vmul.f32 %v935, %v959
      %v972 = vmul.f32 %v936, %v959
      %v973 = vmul.f32 %v937, %v959
      %v974 = vmul.f32 %v938, %v959
      %v975 = vmul.f32 %v939, %v959
      %v976 = vmul.f32 %v940, %v959
      %v977 = vmul.f32 %v941, %v959
      %v978 = vmul.f32 %v942, %v959
      %v979 = vmul.f32 %v943, %v959
      %v980 = vmul.f32 %v944, %v959
      %v981 = vmul.f32 %v945, %v959
      %v982 = vmul.f32 %v946, %v959
      %v983 = vmul.f32 %v947, %v959
      %v984 = vmul.f32 %v948, %v959
      %v985 = vmul.f32 %v949, %v959
      %v986 = vmul.f32 %v950, %v959
      %v987 = vmul.f32 %v951, %v959
      %v988 = vmul.f32 %v952, %v959
      %v989 = vmul.f32 %v953, %v959
      %v990 = vmul.f32 %v954, %v959
      %v991 = vmul.f32 %v955, %v959
      %v992 = vadd.f32 %v892, %v960
      %v993 = vadd.f32 %v893, %v961
      %v994 = vadd.f32 %v894, %v962
      %v995 = vadd.f32 %v895, %v963
      %v996 = vadd.f32 %v896, %v964
      %v997 = vadd.f32 %v897, %v965
      %v998 = vadd.f32 %v898, %v966
      %v999 = vadd.f32 %v899, %v967
      %v1000 = vadd.f32 %v900, %v968
      %v1001 = vadd.f32 %v901, %v969
      %v1002 = vadd.f32 %v902, %v970
      %v1003 = vadd.f32 %v903, %v971
      %v1004 = vadd.f32 %v904, %v972
      %v1005 = vadd.f32 %v905, %v973
      %v1006 = vadd.f32 %v906, %v974
      %v1007 = vadd.f32 %v907, %v975
      %v1008 = vadd.f32 %v908, %v976
      %v1009 = vadd.f32 %v909, %v977
      %v1010 = vadd.f32 %v910, %v978
      %v1011 = vadd.f32 %v911, %v979
      %v1012 = vadd.f32 %v912, %v980
      %v1013 = vadd.f32 %v913, %v981
      %v1014 = vadd.f32 %v914, %v982
      %v1015 = vadd.f32 %v915, %v983
      %v1016 = vadd.f32 %v916, %v984
      %v1017 = vadd.f32 %v917, %v985
      %v1018 = vadd.f32 %v918, %v986
      %v1019 = vadd.f32 %v919, %v987
      %v1020 = vadd.f32 %v920, %v988
      %v1021 = vadd.f32 %v921, %v989
      %v1022 = vadd.f32 %v922, %v990
      %v1023 = vadd.f32 %v923, %v991
      %v1024 = vld [vmem:[%s823 + $0x2] sm:$0xff]
      %v1025 = vld [vmem:[%s823 + $0xa] sm:$0xff]
      %v1026 = vld [vmem:[%s823 + $0x1a] sm:$0xff]
      %v1027 = vld [vmem:[%s823 + $0x22] sm:$0xff]
      %v1028 = vld [vmem:[%s823 + $0x32] sm:$0xff]
      %v1029 = vld [vmem:[%s823 + $0x3a] sm:$0xff]
      %v1030 = vld [vmem:[%s823 + $0x4a] sm:$0xff]
      %v1031 = vld [vmem:[%s823 + $0x52] sm:$0xff]
      %v1032 = vld [vmem:[%s823 + $0x62] sm:$0xff]
      %v1033 = vld [vmem:[%s823 + $0x6a] sm:$0xff]
      %v1034 = vld [vmem:[%s823 + $0x7a] sm:$0xff]
      %v1035 = vld [vmem:[%s823 + $0x82] sm:$0xff]
      %v1036 = vld [vmem:[%s823 + $0x92] sm:$0xff]
      %v1037 = vld [vmem:[%s823 + $0x9a] sm:$0xff]
      %v1038 = vld [vmem:[%s823 + $0xaa] sm:$0xff]
      %v1039 = vld [vmem:[%s823 + $0xb2] sm:$0xff]
      %v1040 = vld [vmem:[%s823 + $0xc2] sm:$0xff]
      %v1041 = vld [vmem:[%s823 + $0xca] sm:$0xff]
      %v1042 = vld [vmem:[%s823 + $0xda] sm:$0xff]
      %v1043 = vld [vmem:[%s823 + $0xe2] sm:$0xff]
      %v1044 = vld [vmem:[%s823 + $0xf2] sm:$0xff]
      %v1045 = vld [vmem:[%s823 + $0xfa] sm:$0xff]
      %v1046 = vld [vmem:[%s823 + $0x10a] sm:$0xff]
      %v1047 = vld [vmem:[%s823 + $0x112] sm:$0xff]
      %v1048 = vld [vmem:[%s823 + $0x122] sm:$0xff]
      %v1049 = vld [vmem:[%s823 + $0x12a] sm:$0xff]
      %v1050 = vld [vmem:[%s823 + $0x13a] sm:$0xff]
      %v1051 = vld [vmem:[%s823 + $0x142] sm:$0xff]
      %v1052 = vld [vmem:[%s823 + $0x152] sm:$0xff]
      %v1053 = vld [vmem:[%s823 + $0x15a] sm:$0xff]
      %v1054 = vld [vmem:[%s823 + $0x16a] sm:$0xff]
      %v1055 = vld [vmem:[%s823 + $0x172] sm:$0xff]
      %v1056 = vlaneseq
      %v1057 = vshrl.u32 %v1056, 7
      %v1058 = vsub.s32 7, %v1057
      %v1059 = vrot.slane %v319, %v1058
      %v1060 = vmul.f32 %v1024, %v1059
      %v1061 = vmul.f32 %v1025, %v1059
      %v1062 = vmul.f32 %v1026, %v1059
      %v1063 = vmul.f32 %v1027, %v1059
      %v1064 = vmul.f32 %v1028, %v1059
      %v1065 = vmul.f32 %v1029, %v1059
      %v1066 = vmul.f32 %v1030, %v1059
      %v1067 = vmul.f32 %v1031, %v1059
      %v1068 = vmul.f32 %v1032, %v1059
      %v1069 = vmul.f32 %v1033, %v1059
      %v1070 = vmul.f32 %v1034, %v1059
      %v1071 = vmul.f32 %v1035, %v1059
      %v1072 = vmul.f32 %v1036, %v1059
      %v1073 = vmul.f32 %v1037, %v1059
      %v1074 = vmul.f32 %v1038, %v1059
      %v1075 = vmul.f32 %v1039, %v1059
      %v1076 = vmul.f32 %v1040, %v1059
      %v1077 = vmul.f32 %v1041, %v1059
      %v1078 = vmul.f32 %v1042, %v1059
      %v1079 = vmul.f32 %v1043, %v1059
      %v1080 = vmul.f32 %v1044, %v1059
      %v1081 = vmul.f32 %v1045, %v1059
      %v1082 = vmul.f32 %v1046, %v1059
      %v1083 = vmul.f32 %v1047, %v1059
      %v1084 = vmul.f32 %v1048, %v1059
      %v1085 = vmul.f32 %v1049, %v1059
      %v1086 = vmul.f32 %v1050, %v1059
      %v1087 = vmul.f32 %v1051, %v1059
      %v1088 = vmul.f32 %v1052, %v1059
      %v1089 = vmul.f32 %v1053, %v1059
      %v1090 = vmul.f32 %v1054, %v1059
      %v1091 = vmul.f32 %v1055, %v1059
      %v1092 = vadd.f32 %v992, %v1060
      %v1093 = vadd.f32 %v993, %v1061
      %v1094 = vadd.f32 %v994, %v1062
      %v1095 = vadd.f32 %v995, %v1063
      %v1096 = vadd.f32 %v996, %v1064
      %v1097 = vadd.f32 %v997, %v1065
      %v1098 = vadd.f32 %v998, %v1066
      %v1099 = vadd.f32 %v999, %v1067
      %v1100 = vadd.f32 %v1000, %v1068
      %v1101 = vadd.f32 %v1001, %v1069
      %v1102 = vadd.f32 %v1002, %v1070
      %v1103 = vadd.f32 %v1003, %v1071
      %v1104 = vadd.f32 %v1004, %v1072
      %v1105 = vadd.f32 %v1005, %v1073
      %v1106 = vadd.f32 %v1006, %v1074
      %v1107 = vadd.f32 %v1007, %v1075
      %v1108 = vadd.f32 %v1008, %v1076
      %v1109 = vadd.f32 %v1009, %v1077
      %v1110 = vadd.f32 %v1010, %v1078
      %v1111 = vadd.f32 %v1011, %v1079
      %v1112 = vadd.f32 %v1012, %v1080
      %v1113 = vadd.f32 %v1013, %v1081
      %v1114 = vadd.f32 %v1014, %v1082
      %v1115 = vadd.f32 %v1015, %v1083
      %v1116 = vadd.f32 %v1016, %v1084
      %v1117 = vadd.f32 %v1017, %v1085
      %v1118 = vadd.f32 %v1018, %v1086
      %v1119 = vadd.f32 %v1019, %v1087
      %v1120 = vadd.f32 %v1020, %v1088
      %v1121 = vadd.f32 %v1021, %v1089
      %v1122 = vadd.f32 %v1022, %v1090
      %v1123 = vadd.f32 %v1023, %v1091
      %v1124 = vld [vmem:[%s823 + $0x3] sm:$0xff]
      %v1125 = vld [vmem:[%s823 + $0xb] sm:$0xff]
      %v1126 = vld [vmem:[%s823 + $0x1b] sm:$0xff]
      %v1127 = vld [vmem:[%s823 + $0x23] sm:$0xff]
      %v1128 = vld [vmem:[%s823 + $0x33] sm:$0xff]
      %v1129 = vld [vmem:[%s823 + $0x3b] sm:$0xff]
      %v1130 = vld [vmem:[%s823 + $0x4b] sm:$0xff]
      %v1131 = vld [vmem:[%s823 + $0x53] sm:$0xff]
      %v1132 = vld [vmem:[%s823 + $0x63] sm:$0xff]
      %v1133 = vld [vmem:[%s823 + $0x6b] sm:$0xff]
      %v1134 = vld [vmem:[%s823 + $0x7b] sm:$0xff]
      %v1135 = vld [vmem:[%s823 + $0x83] sm:$0xff]
      %v1136 = vld [vmem:[%s823 + $0x93] sm:$0xff]
      %v1137 = vld [vmem:[%s823 + $0x9b] sm:$0xff]
      %v1138 = vld [vmem:[%s823 + $0xab] sm:$0xff]
      %v1139 = vld [vmem:[%s823 + $0xb3] sm:$0xff]
      %v1140 = vld [vmem:[%s823 + $0xc3] sm:$0xff]
      %v1141 = vld [vmem:[%s823 + $0xcb] sm:$0xff]
      %v1142 = vld [vmem:[%s823 + $0xdb] sm:$0xff]
      %v1143 = vld [vmem:[%s823 + $0xe3] sm:$0xff]
      %v1144 = vld [vmem:[%s823 + $0xf3] sm:$0xff]
      %v1145 = vld [vmem:[%s823 + $0xfb] sm:$0xff]
      %v1146 = vld [vmem:[%s823 + $0x10b] sm:$0xff]
      %v1147 = vld [vmem:[%s823 + $0x113] sm:$0xff]
      %v1148 = vld [vmem:[%s823 + $0x123] sm:$0xff]
      %v1149 = vld [vmem:[%s823 + $0x12b] sm:$0xff]
      %v1150 = vld [vmem:[%s823 + $0x13b] sm:$0xff]
      %v1151 = vld [vmem:[%s823 + $0x143] sm:$0xff]
      %v1152 = vld [vmem:[%s823 + $0x153] sm:$0xff]
      %v1153 = vld [vmem:[%s823 + $0x15b] sm:$0xff]
      %v1154 = vld [vmem:[%s823 + $0x16b] sm:$0xff]
      %v1155 = vld [vmem:[%s823 + $0x173] sm:$0xff]
      %v1156 = vlaneseq
      %v1157 = vshrl.u32 %v1156, 7
      %v1158 = vsub.s32 0, %v1157
      %v1159 = vrot.slane %v320, %v1158
      %v1160 = vmul.f32 %v1124, %v1159
      %v1161 = vmul.f32 %v1125, %v1159
      %v1162 = vmul.f32 %v1126, %v1159
      %v1163 = vmul.f32 %v1127, %v1159
      %v1164 = vmul.f32 %v1128, %v1159
      %v1165 = vmul.f32 %v1129, %v1159
      %v1166 = vmul.f32 %v1130, %v1159
      %v1167 = vmul.f32 %v1131, %v1159
      %v1168 = vmul.f32 %v1132, %v1159
      %v1169 = vmul.f32 %v1133, %v1159
      %v1170 = vmul.f32 %v1134, %v1159
      %v1171 = vmul.f32 %v1135, %v1159
      %v1172 = vmul.f32 %v1136, %v1159
      %v1173 = vmul.f32 %v1137, %v1159
      %v1174 = vmul.f32 %v1138, %v1159
      %v1175 = vmul.f32 %v1139, %v1159
      %v1176 = vmul.f32 %v1140, %v1159
      %v1177 = vmul.f32 %v1141, %v1159
      %v1178 = vmul.f32 %v1142, %v1159
      %v1179 = vmul.f32 %v1143, %v1159
      %v1180 = vmul.f32 %v1144, %v1159
      %v1181 = vmul.f32 %v1145, %v1159
      %v1182 = vmul.f32 %v1146, %v1159
      %v1183 = vmul.f32 %v1147, %v1159
      %v1184 = vmul.f32 %v1148, %v1159
      %v1185 = vmul.f32 %v1149, %v1159
      %v1186 = vmul.f32 %v1150, %v1159
      %v1187 = vmul.f32 %v1151, %v1159
      %v1188 = vmul.f32 %v1152, %v1159
      %v1189 = vmul.f32 %v1153, %v1159
      %v1190 = vmul.f32 %v1154, %v1159
      %v1191 = vmul.f32 %v1155, %v1159
      %v1192 = vadd.f32 %v1092, %v1160
      %v1193 = vadd.f32 %v1093, %v1161
      %v1194 = vadd.f32 %v1094, %v1162
      %v1195 = vadd.f32 %v1095, %v1163
      %v1196 = vadd.f32 %v1096, %v1164
      %v1197 = vadd.f32 %v1097, %v1165
      %v1198 = vadd.f32 %v1098, %v1166
      %v1199 = vadd.f32 %v1099, %v1167
      %v1200 = vadd.f32 %v1100, %v1168
      %v1201 = vadd.f32 %v1101, %v1169
      %v1202 = vadd.f32 %v1102, %v1170
      %v1203 = vadd.f32 %v1103, %v1171
      %v1204 = vadd.f32 %v1104, %v1172
      %v1205 = vadd.f32 %v1105, %v1173
      %v1206 = vadd.f32 %v1106, %v1174
      %v1207 = vadd.f32 %v1107, %v1175
      %v1208 = vadd.f32 %v1108, %v1176
      %v1209 = vadd.f32 %v1109, %v1177
      %v1210 = vadd.f32 %v1110, %v1178
      %v1211 = vadd.f32 %v1111, %v1179
      %v1212 = vadd.f32 %v1112, %v1180
      %v1213 = vadd.f32 %v1113, %v1181
      %v1214 = vadd.f32 %v1114, %v1182
      %v1215 = vadd.f32 %v1115, %v1183
      %v1216 = vadd.f32 %v1116, %v1184
      %v1217 = vadd.f32 %v1117, %v1185
      %v1218 = vadd.f32 %v1118, %v1186
      %v1219 = vadd.f32 %v1119, %v1187
      %v1220 = vadd.f32 %v1120, %v1188
      %v1221 = vadd.f32 %v1121, %v1189
      %v1222 = vadd.f32 %v1122, %v1190
      %v1223 = vadd.f32 %v1123, %v1191
      %v1224 = vld [vmem:[%s823 + $0x4] sm:$0xff]
      %v1225 = vld [vmem:[%s823 + $0xc] sm:$0xff]
      %v1226 = vld [vmem:[%s823 + $0x1c] sm:$0xff]
      %v1227 = vld [vmem:[%s823 + $0x24] sm:$0xff]
      %v1228 = vld [vmem:[%s823 + $0x34] sm:$0xff]
      %v1229 = vld [vmem:[%s823 + $0x3c] sm:$0xff]
      %v1230 = vld [vmem:[%s823 + $0x4c] sm:$0xff]
      %v1231 = vld [vmem:[%s823 + $0x54] sm:$0xff]
      %v1232 = vld [vmem:[%s823 + $0x64] sm:$0xff]
      %v1233 = vld [vmem:[%s823 + $0x6c] sm:$0xff]
      %v1234 = vld [vmem:[%s823 + $0x7c] sm:$0xff]
      %v1235 = vld [vmem:[%s823 + $0x84] sm:$0xff]
      %v1236 = vld [vmem:[%s823 + $0x94] sm:$0xff]
      %v1237 = vld [vmem:[%s823 + $0x9c] sm:$0xff]
      %v1238 = vld [vmem:[%s823 + $0xac] sm:$0xff]
      %v1239 = vld [vmem:[%s823 + $0xb4] sm:$0xff]
      %v1240 = vld [vmem:[%s823 + $0xc4] sm:$0xff]
      %v1241 = vld [vmem:[%s823 + $0xcc] sm:$0xff]
      %v1242 = vld [vmem:[%s823 + $0xdc] sm:$0xff]
      %v1243 = vld [vmem:[%s823 + $0xe4] sm:$0xff]
      %v1244 = vld [vmem:[%s823 + $0xf4] sm:$0xff]
      %v1245 = vld [vmem:[%s823 + $0xfc] sm:$0xff]
      %v1246 = vld [vmem:[%s823 + $0x10c] sm:$0xff]
      %v1247 = vld [vmem:[%s823 + $0x114] sm:$0xff]
      %v1248 = vld [vmem:[%s823 + $0x124] sm:$0xff]
      %v1249 = vld [vmem:[%s823 + $0x12c] sm:$0xff]
      %v1250 = vld [vmem:[%s823 + $0x13c] sm:$0xff]
      %v1251 = vld [vmem:[%s823 + $0x144] sm:$0xff]
      %v1252 = vld [vmem:[%s823 + $0x154] sm:$0xff]
      %v1253 = vld [vmem:[%s823 + $0x15c] sm:$0xff]
      %v1254 = vld [vmem:[%s823 + $0x16c] sm:$0xff]
      %v1255 = vld [vmem:[%s823 + $0x174] sm:$0xff]
      %v1256 = vlaneseq
      %v1257 = vshrl.u32 %v1256, 7
      %v1258 = vsub.s32 1, %v1257
      %v1259 = vrot.slane %v320, %v1258
      %v1260 = vmul.f32 %v1224, %v1259
      %v1261 = vmul.f32 %v1225, %v1259
      %v1262 = vmul.f32 %v1226, %v1259
      %v1263 = vmul.f32 %v1227, %v1259
      %v1264 = vmul.f32 %v1228, %v1259
      %v1265 = vmul.f32 %v1229, %v1259
      %v1266 = vmul.f32 %v1230, %v1259
      %v1267 = vmul.f32 %v1231, %v1259
      %v1268 = vmul.f32 %v1232, %v1259
      %v1269 = vmul.f32 %v1233, %v1259
      %v1270 = vmul.f32 %v1234, %v1259
      %v1271 = vmul.f32 %v1235, %v1259
      %v1272 = vmul.f32 %v1236, %v1259
      %v1273 = vmul.f32 %v1237, %v1259
      %v1274 = vmul.f32 %v1238, %v1259
      %v1275 = vmul.f32 %v1239, %v1259
      %v1276 = vmul.f32 %v1240, %v1259
      %v1277 = vmul.f32 %v1241, %v1259
      %v1278 = vmul.f32 %v1242, %v1259
      %v1279 = vmul.f32 %v1243, %v1259
      %v1280 = vmul.f32 %v1244, %v1259
      %v1281 = vmul.f32 %v1245, %v1259
      %v1282 = vmul.f32 %v1246, %v1259
      %v1283 = vmul.f32 %v1247, %v1259
      %v1284 = vmul.f32 %v1248, %v1259
      %v1285 = vmul.f32 %v1249, %v1259
      %v1286 = vmul.f32 %v1250, %v1259
      %v1287 = vmul.f32 %v1251, %v1259
      %v1288 = vmul.f32 %v1252, %v1259
      %v1289 = vmul.f32 %v1253, %v1259
      %v1290 = vmul.f32 %v1254, %v1259
      %v1291 = vmul.f32 %v1255, %v1259
      %v1292 = vadd.f32 %v1192, %v1260
      %v1293 = vadd.f32 %v1193, %v1261
      %v1294 = vadd.f32 %v1194, %v1262
      %v1295 = vadd.f32 %v1195, %v1263
      %v1296 = vadd.f32 %v1196, %v1264
      %v1297 = vadd.f32 %v1197, %v1265
      %v1298 = vadd.f32 %v1198, %v1266
      %v1299 = vadd.f32 %v1199, %v1267
      %v1300 = vadd.f32 %v1200, %v1268
      %v1301 = vadd.f32 %v1201, %v1269
      %v1302 = vadd.f32 %v1202, %v1270
      %v1303 = vadd.f32 %v1203, %v1271
      %v1304 = vadd.f32 %v1204, %v1272
      %v1305 = vadd.f32 %v1205, %v1273
      %v1306 = vadd.f32 %v1206, %v1274
      %v1307 = vadd.f32 %v1207, %v1275
      %v1308 = vadd.f32 %v1208, %v1276
      %v1309 = vadd.f32 %v1209, %v1277
      %v1310 = vadd.f32 %v1210, %v1278
      %v1311 = vadd.f32 %v1211, %v1279
      %v1312 = vadd.f32 %v1212, %v1280
      %v1313 = vadd.f32 %v1213, %v1281
      %v1314 = vadd.f32 %v1214, %v1282
      %v1315 = vadd.f32 %v1215, %v1283
      %v1316 = vadd.f32 %v1216, %v1284
      %v1317 = vadd.f32 %v1217, %v1285
      %v1318 = vadd.f32 %v1218, %v1286
      %v1319 = vadd.f32 %v1219, %v1287
      %v1320 = vadd.f32 %v1220, %v1288
      %v1321 = vadd.f32 %v1221, %v1289
      %v1322 = vadd.f32 %v1222, %v1290
      %v1323 = vadd.f32 %v1223, %v1291
      %v1324 = vld [vmem:[%s286] sm:$0xff]
      %v1325 = vld [vmem:[%s286 + $0x8] sm:$0xff]
      %v1326 = vld [vmem:[%s286 + $0x18] sm:$0xff]
      %v1327 = vld [vmem:[%s286 + $0x20] sm:$0xff]
      %v1328 = vld [vmem:[%s286 + $0x30] sm:$0xff]
      %v1329 = vld [vmem:[%s286 + $0x38] sm:$0xff]
      %v1330 = vld [vmem:[%s286 + $0x48] sm:$0xff]
      %v1331 = vld [vmem:[%s286 + $0x50] sm:$0xff]
      %v1332 = vld [vmem:[%s286 + $0x60] sm:$0xff]
      %v1333 = vld [vmem:[%s286 + $0x68] sm:$0xff]
      %v1334 = vld [vmem:[%s286 + $0x78] sm:$0xff]
      %v1335 = vld [vmem:[%s286 + $0x80] sm:$0xff]
      %v1336 = vld [vmem:[%s286 + $0x90] sm:$0xff]
      %v1337 = vld [vmem:[%s286 + $0x98] sm:$0xff]
      %v1338 = vld [vmem:[%s286 + $0xa8] sm:$0xff]
      %v1339 = vld [vmem:[%s286 + $0xb0] sm:$0xff]
      %v1340 = vld [vmem:[%s286 + $0xc0] sm:$0xff]
      %v1341 = vld [vmem:[%s286 + $0xc8] sm:$0xff]
      %v1342 = vld [vmem:[%s286 + $0xd8] sm:$0xff]
      %v1343 = vld [vmem:[%s286 + $0xe0] sm:$0xff]
      %v1344 = vld [vmem:[%s286 + $0xf0] sm:$0xff]
      %v1345 = vld [vmem:[%s286 + $0xf8] sm:$0xff]
      %v1346 = vld [vmem:[%s286 + $0x108] sm:$0xff]
      %v1347 = vld [vmem:[%s286 + $0x110] sm:$0xff]
      %v1348 = vld [vmem:[%s286 + $0x120] sm:$0xff]
      %v1349 = vld [vmem:[%s286 + $0x128] sm:$0xff]
      %v1350 = vld [vmem:[%s286 + $0x138] sm:$0xff]
      %v1351 = vld [vmem:[%s286 + $0x140] sm:$0xff]
      %v1352 = vld [vmem:[%s286 + $0x150] sm:$0xff]
      %v1353 = vld [vmem:[%s286 + $0x158] sm:$0xff]
      %v1354 = vld [vmem:[%s286 + $0x168] sm:$0xff]
      %v1355 = vld [vmem:[%s286 + $0x170] sm:$0xff]
      %v1356 = vlaneseq
      %v1357 = vshrl.u32 %v1356, 7
      %v1358 = vsub.s32 2, %v1357
      %v1359 = vrot.slane %v320, %v1358
      %v1360 = vmul.f32 %v1324, %v1359
      %v1361 = vmul.f32 %v1325, %v1359
      %v1362 = vmul.f32 %v1326, %v1359
      %v1363 = vmul.f32 %v1327, %v1359
      %v1364 = vmul.f32 %v1328, %v1359
      %v1365 = vmul.f32 %v1329, %v1359
      %v1366 = vmul.f32 %v1330, %v1359
      %v1367 = vmul.f32 %v1331, %v1359
      %v1368 = vmul.f32 %v1332, %v1359
      %v1369 = vmul.f32 %v1333, %v1359
      %v1370 = vmul.f32 %v1334, %v1359
      %v1371 = vmul.f32 %v1335, %v1359
      %v1372 = vmul.f32 %v1336, %v1359
      %v1373 = vmul.f32 %v1337, %v1359
      %v1374 = vmul.f32 %v1338, %v1359
      %v1375 = vmul.f32 %v1339, %v1359
      %v1376 = vmul.f32 %v1340, %v1359
      %v1377 = vmul.f32 %v1341, %v1359
      %v1378 = vmul.f32 %v1342, %v1359
      %v1379 = vmul.f32 %v1343, %v1359
      %v1380 = vmul.f32 %v1344, %v1359
      %v1381 = vmul.f32 %v1345, %v1359
      %v1382 = vmul.f32 %v1346, %v1359
      %v1383 = vmul.f32 %v1347, %v1359
      %v1384 = vmul.f32 %v1348, %v1359
      %v1385 = vmul.f32 %v1349, %v1359
      %v1386 = vmul.f32 %v1350, %v1359
      %v1387 = vmul.f32 %v1351, %v1359
      %v1388 = vmul.f32 %v1352, %v1359
      %v1389 = vmul.f32 %v1353, %v1359
      %v1390 = vmul.f32 %v1354, %v1359
      %v1391 = vmul.f32 %v1355, %v1359
      %v1392 = vadd.f32 %v1292, %v1360
      %v1393 = vadd.f32 %v1293, %v1361
      %v1394 = vadd.f32 %v1294, %v1362
      %v1395 = vadd.f32 %v1295, %v1363
      %v1396 = vadd.f32 %v1296, %v1364
      %v1397 = vadd.f32 %v1297, %v1365
      %v1398 = vadd.f32 %v1298, %v1366
      %v1399 = vadd.f32 %v1299, %v1367
      %v1400 = vadd.f32 %v1300, %v1368
      %v1401 = vadd.f32 %v1301, %v1369
      %v1402 = vadd.f32 %v1302, %v1370
      %v1403 = vadd.f32 %v1303, %v1371
      %v1404 = vadd.f32 %v1304, %v1372
      %v1405 = vadd.f32 %v1305, %v1373
      %v1406 = vadd.f32 %v1306, %v1374
      %v1407 = vadd.f32 %v1307, %v1375
      %v1408 = vadd.f32 %v1308, %v1376
      %v1409 = vadd.f32 %v1309, %v1377
      %v1410 = vadd.f32 %v1310, %v1378
      %v1411 = vadd.f32 %v1311, %v1379
      %v1412 = vadd.f32 %v1312, %v1380
      %v1413 = vadd.f32 %v1313, %v1381
      %v1414 = vadd.f32 %v1314, %v1382
      %v1415 = vadd.f32 %v1315, %v1383
      %v1416 = vadd.f32 %v1316, %v1384
      %v1417 = vadd.f32 %v1317, %v1385
      %v1418 = vadd.f32 %v1318, %v1386
      %v1419 = vadd.f32 %v1319, %v1387
      %v1420 = vadd.f32 %v1320, %v1388
      %v1421 = vadd.f32 %v1321, %v1389
      %v1422 = vadd.f32 %v1322, %v1390
      %v1423 = vadd.f32 %v1323, %v1391
      %v1424 = vld [vmem:[%s286 + $0x1] sm:$0xff]
      %v1425 = vld [vmem:[%s286 + $0x9] sm:$0xff]
      %v1426 = vld [vmem:[%s286 + $0x19] sm:$0xff]
      %v1427 = vld [vmem:[%s286 + $0x21] sm:$0xff]
      %v1428 = vld [vmem:[%s286 + $0x31] sm:$0xff]
      %v1429 = vld [vmem:[%s286 + $0x39] sm:$0xff]
      %v1430 = vld [vmem:[%s286 + $0x49] sm:$0xff]
      %v1431 = vld [vmem:[%s286 + $0x51] sm:$0xff]
      %v1432 = vld [vmem:[%s286 + $0x61] sm:$0xff]
      %v1433 = vld [vmem:[%s286 + $0x69] sm:$0xff]
      %v1434 = vld [vmem:[%s286 + $0x79] sm:$0xff]
      %v1435 = vld [vmem:[%s286 + $0x81] sm:$0xff]
      %v1436 = vld [vmem:[%s286 + $0x91] sm:$0xff]
      %v1437 = vld [vmem:[%s286 + $0x99] sm:$0xff]
      %v1438 = vld [vmem:[%s286 + $0xa9] sm:$0xff]
      %v1439 = vld [vmem:[%s286 + $0xb1] sm:$0xff]
      %v1440 = vld [vmem:[%s286 + $0xc1] sm:$0xff]
      %v1441 = vld [vmem:[%s286 + $0xc9] sm:$0xff]
      %v1442 = vld [vmem:[%s286 + $0xd9] sm:$0xff]
      %v1443 = vld [vmem:[%s286 + $0xe1] sm:$0xff]
      %v1444 = vld [vmem:[%s286 + $0xf1] sm:$0xff]
      %v1445 = vld [vmem:[%s286 + $0xf9] sm:$0xff]
      %v1446 = vld [vmem:[%s286 + $0x109] sm:$0xff]
      %v1447 = vld [vmem:[%s286 + $0x111] sm:$0xff]
      %v1448 = vld [vmem:[%s286 + $0x121] sm:$0xff]
      %v1449 = vld [vmem:[%s286 + $0x129] sm:$0xff]
      %v1450 = vld [vmem:[%s286 + $0x139] sm:$0xff]
      %v1451 = vld [vmem:[%s286 + $0x141] sm:$0xff]
      %v1452 = vld [vmem:[%s286 + $0x151] sm:$0xff]
      %v1453 = vld [vmem:[%s286 + $0x159] sm:$0xff]
      %v1454 = vld [vmem:[%s286 + $0x169] sm:$0xff]
      %v1455 = vld [vmem:[%s286 + $0x171] sm:$0xff]
      %v1456 = vlaneseq
      %v1457 = vshrl.u32 %v1456, 7
      %v1458 = vsub.s32 3, %v1457
      %v1459 = vrot.slane %v320, %v1458
      %v1460 = vmul.f32 %v1424, %v1459
      %v1461 = vmul.f32 %v1425, %v1459
      %v1462 = vmul.f32 %v1426, %v1459
      %v1463 = vmul.f32 %v1427, %v1459
      %v1464 = vmul.f32 %v1428, %v1459
      %v1465 = vmul.f32 %v1429, %v1459
      %v1466 = vmul.f32 %v1430, %v1459
      %v1467 = vmul.f32 %v1431, %v1459
      %v1468 = vmul.f32 %v1432, %v1459
      %v1469 = vmul.f32 %v1433, %v1459
      %v1470 = vmul.f32 %v1434, %v1459
      %v1471 = vmul.f32 %v1435, %v1459
      %v1472 = vmul.f32 %v1436, %v1459
      %v1473 = vmul.f32 %v1437, %v1459
      %v1474 = vmul.f32 %v1438, %v1459
      %v1475 = vmul.f32 %v1439, %v1459
      %v1476 = vmul.f32 %v1440, %v1459
      %v1477 = vmul.f32 %v1441, %v1459
      %v1478 = vmul.f32 %v1442, %v1459
      %v1479 = vmul.f32 %v1443, %v1459
      %v1480 = vmul.f32 %v1444, %v1459
      %v1481 = vmul.f32 %v1445, %v1459
      %v1482 = vmul.f32 %v1446, %v1459
      %v1483 = vmul.f32 %v1447, %v1459
      %v1484 = vmul.f32 %v1448, %v1459
      %v1485 = vmul.f32 %v1449, %v1459
      %v1486 = vmul.f32 %v1450, %v1459
      %v1487 = vmul.f32 %v1451, %v1459
      %v1488 = vmul.f32 %v1452, %v1459
      %v1489 = vmul.f32 %v1453, %v1459
      %v1490 = vmul.f32 %v1454, %v1459
      %v1491 = vmul.f32 %v1455, %v1459
      %v1492 = vadd.f32 %v1392, %v1460
      %v1493 = vadd.f32 %v1393, %v1461
      %v1494 = vadd.f32 %v1394, %v1462
      %v1495 = vadd.f32 %v1395, %v1463
      %v1496 = vadd.f32 %v1396, %v1464
      %v1497 = vadd.f32 %v1397, %v1465
      %v1498 = vadd.f32 %v1398, %v1466
      %v1499 = vadd.f32 %v1399, %v1467
      %v1500 = vadd.f32 %v1400, %v1468
      %v1501 = vadd.f32 %v1401, %v1469
      %v1502 = vadd.f32 %v1402, %v1470
      %v1503 = vadd.f32 %v1403, %v1471
      %v1504 = vadd.f32 %v1404, %v1472
      %v1505 = vadd.f32 %v1405, %v1473
      %v1506 = vadd.f32 %v1406, %v1474
      %v1507 = vadd.f32 %v1407, %v1475
      %v1508 = vadd.f32 %v1408, %v1476
      %v1509 = vadd.f32 %v1409, %v1477
      %v1510 = vadd.f32 %v1410, %v1478
      %v1511 = vadd.f32 %v1411, %v1479
      %v1512 = vadd.f32 %v1412, %v1480
      %v1513 = vadd.f32 %v1413, %v1481
      %v1514 = vadd.f32 %v1414, %v1482
      %v1515 = vadd.f32 %v1415, %v1483
      %v1516 = vadd.f32 %v1416, %v1484
      %v1517 = vadd.f32 %v1417, %v1485
      %v1518 = vadd.f32 %v1418, %v1486
      %v1519 = vadd.f32 %v1419, %v1487
      %v1520 = vadd.f32 %v1420, %v1488
      %v1521 = vadd.f32 %v1421, %v1489
      %v1522 = vadd.f32 %v1422, %v1490
      %v1523 = vadd.f32 %v1423, %v1491
      %v1524 = vld [vmem:[%s286 + $0x2] sm:$0xff]
      %v1525 = vld [vmem:[%s286 + $0xa] sm:$0xff]
      %v1526 = vld [vmem:[%s286 + $0x1a] sm:$0xff]
      %v1527 = vld [vmem:[%s286 + $0x22] sm:$0xff]
      %v1528 = vld [vmem:[%s286 + $0x32] sm:$0xff]
      %v1529 = vld [vmem:[%s286 + $0x3a] sm:$0xff]
      %v1530 = vld [vmem:[%s286 + $0x4a] sm:$0xff]
      %v1531 = vld [vmem:[%s286 + $0x52] sm:$0xff]
      %v1532 = vld [vmem:[%s286 + $0x62] sm:$0xff]
      %v1533 = vld [vmem:[%s286 + $0x6a] sm:$0xff]
      %v1534 = vld [vmem:[%s286 + $0x7a] sm:$0xff]
      %v1535 = vld [vmem:[%s286 + $0x82] sm:$0xff]
      %v1536 = vld [vmem:[%s286 + $0x92] sm:$0xff]
      %v1537 = vld [vmem:[%s286 + $0x9a] sm:$0xff]
      %v1538 = vld [vmem:[%s286 + $0xaa] sm:$0xff]
      %v1539 = vld [vmem:[%s286 + $0xb2] sm:$0xff]
      %v1540 = vld [vmem:[%s286 + $0xc2] sm:$0xff]
      %v1541 = vld [vmem:[%s286 + $0xca] sm:$0xff]
      %v1542 = vld [vmem:[%s286 + $0xda] sm:$0xff]
      %v1543 = vld [vmem:[%s286 + $0xe2] sm:$0xff]
      %v1544 = vld [vmem:[%s286 + $0xf2] sm:$0xff]
      %v1545 = vld [vmem:[%s286 + $0xfa] sm:$0xff]
      %v1546 = vld [vmem:[%s286 + $0x10a] sm:$0xff]
      %v1547 = vld [vmem:[%s286 + $0x112] sm:$0xff]
      %v1548 = vld [vmem:[%s286 + $0x122] sm:$0xff]
      %v1549 = vld [vmem:[%s286 + $0x12a] sm:$0xff]
      %v1550 = vld [vmem:[%s286 + $0x13a] sm:$0xff]
      %v1551 = vld [vmem:[%s286 + $0x142] sm:$0xff]
      %v1552 = vld [vmem:[%s286 + $0x152] sm:$0xff]
      %v1553 = vld [vmem:[%s286 + $0x15a] sm:$0xff]
      %v1554 = vld [vmem:[%s286 + $0x16a] sm:$0xff]
      %v1555 = vld [vmem:[%s286 + $0x172] sm:$0xff]
      %v1556 = vlaneseq
      %v1557 = vshrl.u32 %v1556, 7
      %v1558 = vsub.s32 4, %v1557
      %v1559 = vrot.slane %v320, %v1558
      %v1560 = vmul.f32 %v1524, %v1559
      %v1561 = vmul.f32 %v1525, %v1559
      %v1562 = vmul.f32 %v1526, %v1559
      %v1563 = vmul.f32 %v1527, %v1559
      %v1564 = vmul.f32 %v1528, %v1559
      %v1565 = vmul.f32 %v1529, %v1559
      %v1566 = vmul.f32 %v1530, %v1559
      %v1567 = vmul.f32 %v1531, %v1559
      %v1568 = vmul.f32 %v1532, %v1559
      %v1569 = vmul.f32 %v1533, %v1559
      %v1570 = vmul.f32 %v1534, %v1559
      %v1571 = vmul.f32 %v1535, %v1559
      %v1572 = vmul.f32 %v1536, %v1559
      %v1573 = vmul.f32 %v1537, %v1559
      %v1574 = vmul.f32 %v1538, %v1559
      %v1575 = vmul.f32 %v1539, %v1559
      %v1576 = vmul.f32 %v1540, %v1559
      %v1577 = vmul.f32 %v1541, %v1559
      %v1578 = vmul.f32 %v1542, %v1559
      %v1579 = vmul.f32 %v1543, %v1559
      %v1580 = vmul.f32 %v1544, %v1559
      %v1581 = vmul.f32 %v1545, %v1559
      %v1582 = vmul.f32 %v1546, %v1559
      %v1583 = vmul.f32 %v1547, %v1559
      %v1584 = vmul.f32 %v1548, %v1559
      %v1585 = vmul.f32 %v1549, %v1559
      %v1586 = vmul.f32 %v1550, %v1559
      %v1587 = vmul.f32 %v1551, %v1559
      %v1588 = vmul.f32 %v1552, %v1559
      %v1589 = vmul.f32 %v1553, %v1559
      %v1590 = vmul.f32 %v1554, %v1559
      %v1591 = vmul.f32 %v1555, %v1559
      %v1592 = vadd.f32 %v1492, %v1560
      %v1593 = vadd.f32 %v1493, %v1561
      %v1594 = vadd.f32 %v1494, %v1562
      %v1595 = vadd.f32 %v1495, %v1563
      %v1596 = vadd.f32 %v1496, %v1564
      %v1597 = vadd.f32 %v1497, %v1565
      %v1598 = vadd.f32 %v1498, %v1566
      %v1599 = vadd.f32 %v1499, %v1567
      %v1600 = vadd.f32 %v1500, %v1568
      %v1601 = vadd.f32 %v1501, %v1569
      %v1602 = vadd.f32 %v1502, %v1570
      %v1603 = vadd.f32 %v1503, %v1571
      %v1604 = vadd.f32 %v1504, %v1572
      %v1605 = vadd.f32 %v1505, %v1573
      %v1606 = vadd.f32 %v1506, %v1574
      %v1607 = vadd.f32 %v1507, %v1575
      %v1608 = vadd.f32 %v1508, %v1576
      %v1609 = vadd.f32 %v1509, %v1577
      %v1610 = vadd.f32 %v1510, %v1578
      %v1611 = vadd.f32 %v1511, %v1579
      %v1612 = vadd.f32 %v1512, %v1580
      %v1613 = vadd.f32 %v1513, %v1581
      %v1614 = vadd.f32 %v1514, %v1582
      %v1615 = vadd.f32 %v1515, %v1583
      %v1616 = vadd.f32 %v1516, %v1584
      %v1617 = vadd.f32 %v1517, %v1585
      %v1618 = vadd.f32 %v1518, %v1586
      %v1619 = vadd.f32 %v1519, %v1587
      %v1620 = vadd.f32 %v1520, %v1588
      %v1621 = vadd.f32 %v1521, %v1589
      %v1622 = vadd.f32 %v1522, %v1590
      %v1623 = vadd.f32 %v1523, %v1591
      %v1624 = vld [vmem:[%s286 + $0x3] sm:$0xff]
      %v1625 = vld [vmem:[%s286 + $0xb] sm:$0xff]
      %v1626 = vld [vmem:[%s286 + $0x1b] sm:$0xff]
      %v1627 = vld [vmem:[%s286 + $0x23] sm:$0xff]
      %v1628 = vld [vmem:[%s286 + $0x33] sm:$0xff]
      %v1629 = vld [vmem:[%s286 + $0x3b] sm:$0xff]
      %v1630 = vld [vmem:[%s286 + $0x4b] sm:$0xff]
      %v1631 = vld [vmem:[%s286 + $0x53] sm:$0xff]
      %v1632 = vld [vmem:[%s286 + $0x63] sm:$0xff]
      %v1633 = vld [vmem:[%s286 + $0x6b] sm:$0xff]
      %v1634 = vld [vmem:[%s286 + $0x7b] sm:$0xff]
      %v1635 = vld [vmem:[%s286 + $0x83] sm:$0xff]
      %v1636 = vld [vmem:[%s286 + $0x93] sm:$0xff]
      %v1637 = vld [vmem:[%s286 + $0x9b] sm:$0xff]
      %v1638 = vld [vmem:[%s286 + $0xab] sm:$0xff]
      %v1639 = vld [vmem:[%s286 + $0xb3] sm:$0xff]
      %v1640 = vld [vmem:[%s286 + $0xc3] sm:$0xff]
      %v1641 = vld [vmem:[%s286 + $0xcb] sm:$0xff]
      %v1642 = vld [vmem:[%s286 + $0xdb] sm:$0xff]
      %v1643 = vld [vmem:[%s286 + $0xe3] sm:$0xff]
      %v1644 = vld [vmem:[%s286 + $0xf3] sm:$0xff]
      %v1645 = vld [vmem:[%s286 + $0xfb] sm:$0xff]
      %v1646 = vld [vmem:[%s286 + $0x10b] sm:$0xff]
      %v1647 = vld [vmem:[%s286 + $0x113] sm:$0xff]
      %v1648 = vld [vmem:[%s286 + $0x123] sm:$0xff]
      %v1649 = vld [vmem:[%s286 + $0x12b] sm:$0xff]
      %v1650 = vld [vmem:[%s286 + $0x13b] sm:$0xff]
      %v1651 = vld [vmem:[%s286 + $0x143] sm:$0xff]
      %v1652 = vld [vmem:[%s286 + $0x153] sm:$0xff]
      %v1653 = vld [vmem:[%s286 + $0x15b] sm:$0xff]
      %v1654 = vld [vmem:[%s286 + $0x16b] sm:$0xff]
      %v1655 = vld [vmem:[%s286 + $0x173] sm:$0xff]
      %v1656 = vlaneseq
      %v1657 = vshrl.u32 %v1656, 7
      %v1658 = vsub.s32 5, %v1657
      %v1659 = vrot.slane %v320, %v1658
      %v1660 = vmul.f32 %v1624, %v1659
      %v1661 = vmul.f32 %v1625, %v1659
      %v1662 = vmul.f32 %v1626, %v1659
      %v1663 = vmul.f32 %v1627, %v1659
      %v1664 = vmul.f32 %v1628, %v1659
      %v1665 = vmul.f32 %v1629, %v1659
      %v1666 = vmul.f32 %v1630, %v1659
      %v1667 = vmul.f32 %v1631, %v1659
      %v1668 = vmul.f32 %v1632, %v1659
      %v1669 = vmul.f32 %v1633, %v1659
      %v1670 = vmul.f32 %v1634, %v1659
      %v1671 = vmul.f32 %v1635, %v1659
      %v1672 = vmul.f32 %v1636, %v1659
      %v1673 = vmul.f32 %v1637, %v1659
      %v1674 = vmul.f32 %v1638, %v1659
      %v1675 = vmul.f32 %v1639, %v1659
      %v1676 = vmul.f32 %v1640, %v1659
      %v1677 = vmul.f32 %v1641, %v1659
      %v1678 = vmul.f32 %v1642, %v1659
      %v1679 = vmul.f32 %v1643, %v1659
      %v1680 = vmul.f32 %v1644, %v1659
      %v1681 = vmul.f32 %v1645, %v1659
      %v1682 = vmul.f32 %v1646, %v1659
      %v1683 = vmul.f32 %v1647, %v1659
      %v1684 = vmul.f32 %v1648, %v1659
      %v1685 = vmul.f32 %v1649, %v1659
      %v1686 = vmul.f32 %v1650, %v1659
      %v1687 = vmul.f32 %v1651, %v1659
      %v1688 = vmul.f32 %v1652, %v1659
      %v1689 = vmul.f32 %v1653, %v1659
      %v1690 = vmul.f32 %v1654, %v1659
      %v1691 = vmul.f32 %v1655, %v1659
      %v1692 = vadd.f32 %v1592, %v1660
      %v1693 = vadd.f32 %v1593, %v1661
      %v1694 = vadd.f32 %v1594, %v1662
      %v1695 = vadd.f32 %v1595, %v1663
      %v1696 = vadd.f32 %v1596, %v1664
      %v1697 = vadd.f32 %v1597, %v1665
      %v1698 = vadd.f32 %v1598, %v1666
      %v1699 = vadd.f32 %v1599, %v1667
      %v1700 = vadd.f32 %v1600, %v1668
      %v1701 = vadd.f32 %v1601, %v1669
      %v1702 = vadd.f32 %v1602, %v1670
      %v1703 = vadd.f32 %v1603, %v1671
      %v1704 = vadd.f32 %v1604, %v1672
      %v1705 = vadd.f32 %v1605, %v1673
      %v1706 = vadd.f32 %v1606, %v1674
      %v1707 = vadd.f32 %v1607, %v1675
      %v1708 = vadd.f32 %v1608, %v1676
      %v1709 = vadd.f32 %v1609, %v1677
      %v1710 = vadd.f32 %v1610, %v1678
      %v1711 = vadd.f32 %v1611, %v1679
      %v1712 = vadd.f32 %v1612, %v1680
      %v1713 = vadd.f32 %v1613, %v1681
      %v1714 = vadd.f32 %v1614, %v1682
      %v1715 = vadd.f32 %v1615, %v1683
      %v1716 = vadd.f32 %v1616, %v1684
      %v1717 = vadd.f32 %v1617, %v1685
      %v1718 = vadd.f32 %v1618, %v1686
      %v1719 = vadd.f32 %v1619, %v1687
      %v1720 = vadd.f32 %v1620, %v1688
      %v1721 = vadd.f32 %v1621, %v1689
      %v1722 = vadd.f32 %v1622, %v1690
      %v1723 = vadd.f32 %v1623, %v1691
      %v1724 = vld [vmem:[%s286 + $0x4] sm:$0xff]
      %v1725 = vld [vmem:[%s286 + $0xc] sm:$0xff]
      %v1726 = vld [vmem:[%s286 + $0x1c] sm:$0xff]
      %v1727 = vld [vmem:[%s286 + $0x24] sm:$0xff]
      %v1728 = vld [vmem:[%s286 + $0x34] sm:$0xff]
      %v1729 = vld [vmem:[%s286 + $0x3c] sm:$0xff]
      %v1730 = vld [vmem:[%s286 + $0x4c] sm:$0xff]
      %v1731 = vld [vmem:[%s286 + $0x54] sm:$0xff]
      %v1732 = vld [vmem:[%s286 + $0x64] sm:$0xff]
      %v1733 = vld [vmem:[%s286 + $0x6c] sm:$0xff]
      %v1734 = vld [vmem:[%s286 + $0x7c] sm:$0xff]
      %v1735 = vld [vmem:[%s286 + $0x84] sm:$0xff]
      %v1736 = vld [vmem:[%s286 + $0x94] sm:$0xff]
      %v1737 = vld [vmem:[%s286 + $0x9c] sm:$0xff]
      %v1738 = vld [vmem:[%s286 + $0xac] sm:$0xff]
      %v1739 = vld [vmem:[%s286 + $0xb4] sm:$0xff]
      %v1740 = vld [vmem:[%s286 + $0xc4] sm:$0xff]
      %v1741 = vld [vmem:[%s286 + $0xcc] sm:$0xff]
      %v1742 = vld [vmem:[%s286 + $0xdc] sm:$0xff]
      %v1743 = vld [vmem:[%s286 + $0xe4] sm:$0xff]
      %v1744 = vld [vmem:[%s286 + $0xf4] sm:$0xff]
      %v1745 = vld [vmem:[%s286 + $0xfc] sm:$0xff]
      %v1746 = vld [vmem:[%s286 + $0x10c] sm:$0xff]
      %v1747 = vld [vmem:[%s286 + $0x114] sm:$0xff]
      %v1748 = vld [vmem:[%s286 + $0x124] sm:$0xff]
      %v1749 = vld [vmem:[%s286 + $0x12c] sm:$0xff]
      %v1750 = vld [vmem:[%s286 + $0x13c] sm:$0xff]
      %v1751 = vld [vmem:[%s286 + $0x144] sm:$0xff]
      %v1752 = vld [vmem:[%s286 + $0x154] sm:$0xff]
      %v1753 = vld [vmem:[%s286 + $0x15c] sm:$0xff]
      %v1754 = vld [vmem:[%s286 + $0x16c] sm:$0xff]
      %v1755 = vld [vmem:[%s286 + $0x174] sm:$0xff]
      %v1756 = vlaneseq
      %v1757 = vshrl.u32 %v1756, 7
      %v1758 = vsub.s32 6, %v1757
      %v1759 = vrot.slane %v320, %v1758
      %v1760 = vmul.f32 %v1724, %v1759
      %v1761 = vmul.f32 %v1725, %v1759
      %v1762 = vmul.f32 %v1726, %v1759
      %v1763 = vmul.f32 %v1727, %v1759
      %v1764 = vmul.f32 %v1728, %v1759
      %v1765 = vmul.f32 %v1729, %v1759
      %v1766 = vmul.f32 %v1730, %v1759
      %v1767 = vmul.f32 %v1731, %v1759
      %v1768 = vmul.f32 %v1732, %v1759
      %v1769 = vmul.f32 %v1733, %v1759
      %v1770 = vmul.f32 %v1734, %v1759
      %v1771 = vmul.f32 %v1735, %v1759
      %v1772 = vmul.f32 %v1736, %v1759
      %v1773 = vmul.f32 %v1737, %v1759
      %v1774 = vmul.f32 %v1738, %v1759
      %v1775 = vmul.f32 %v1739, %v1759
      %v1776 = vmul.f32 %v1740, %v1759
      %v1777 = vmul.f32 %v1741, %v1759
      %v1778 = vmul.f32 %v1742, %v1759
      %v1779 = vmul.f32 %v1743, %v1759
      %v1780 = vmul.f32 %v1744, %v1759
      %v1781 = vmul.f32 %v1745, %v1759
      %v1782 = vmul.f32 %v1746, %v1759
      %v1783 = vmul.f32 %v1747, %v1759
      %v1784 = vmul.f32 %v1748, %v1759
      %v1785 = vmul.f32 %v1749, %v1759
      %v1786 = vmul.f32 %v1750, %v1759
      %v1787 = vmul.f32 %v1751, %v1759
      %v1788 = vmul.f32 %v1752, %v1759
      %v1789 = vmul.f32 %v1753, %v1759
      %v1790 = vmul.f32 %v1754, %v1759
      %v1791 = vmul.f32 %v1755, %v1759
      %v1792 = vadd.f32 %v1692, %v1760
      %v1793 = vadd.f32 %v1693, %v1761
      %v1794 = vadd.f32 %v1694, %v1762
      %v1795 = vadd.f32 %v1695, %v1763
      %v1796 = vadd.f32 %v1696, %v1764
      %v1797 = vadd.f32 %v1697, %v1765
      %v1798 = vadd.f32 %v1698, %v1766
      %v1799 = vadd.f32 %v1699, %v1767
      %v1800 = vadd.f32 %v1700, %v1768
      %v1801 = vadd.f32 %v1701, %v1769
      %v1802 = vadd.f32 %v1702, %v1770
      %v1803 = vadd.f32 %v1703, %v1771
      %v1804 = vadd.f32 %v1704, %v1772
      %v1805 = vadd.f32 %v1705, %v1773
      %v1806 = vadd.f32 %v1706, %v1774
      %v1807 = vadd.f32 %v1707, %v1775
      %v1808 = vadd.f32 %v1708, %v1776
      %v1809 = vadd.f32 %v1709, %v1777
      %v1810 = vadd.f32 %v1710, %v1778
      %v1811 = vadd.f32 %v1711, %v1779
      %v1812 = vadd.f32 %v1712, %v1780
      %v1813 = vadd.f32 %v1713, %v1781
      %v1814 = vadd.f32 %v1714, %v1782
      %v1815 = vadd.f32 %v1715, %v1783
      %v1816 = vadd.f32 %v1716, %v1784
      %v1817 = vadd.f32 %v1717, %v1785
      %v1818 = vadd.f32 %v1718, %v1786
      %v1819 = vadd.f32 %v1719, %v1787
      %v1820 = vadd.f32 %v1720, %v1788
      %v1821 = vadd.f32 %v1721, %v1789
      %v1822 = vadd.f32 %v1722, %v1790
      %v1823 = vadd.f32 %v1723, %v1791
      %s1824 = scalar_lea.vmem [#allocation2], 72
      %v1825 = vld [vmem:[%s1824] sm:$0xff]
      %v1826 = vld [vmem:[%s1824 + $0x8] sm:$0xff]
      %v1827 = vld [vmem:[%s1824 + $0x18] sm:$0xff]
      %v1828 = vld [vmem:[%s1824 + $0x20] sm:$0xff]
      %v1829 = vld [vmem:[%s1824 + $0x30] sm:$0xff]
      %v1830 = vld [vmem:[%s1824 + $0x38] sm:$0xff]
      %v1831 = vld [vmem:[%s1824 + $0x48] sm:$0xff]
      %v1832 = vld [vmem:[%s1824 + $0x50] sm:$0xff]
      %v1833 = vld [vmem:[%s1824 + $0x60] sm:$0xff]
      %v1834 = vld [vmem:[%s1824 + $0x68] sm:$0xff]
      %v1835 = vld [vmem:[%s1824 + $0x78] sm:$0xff]
      %v1836 = vld [vmem:[%s1824 + $0x80] sm:$0xff]
      %v1837 = vld [vmem:[%s1824 + $0x90] sm:$0xff]
      %v1838 = vld [vmem:[%s1824 + $0x98] sm:$0xff]
      %v1839 = vld [vmem:[%s1824 + $0xa8] sm:$0xff]
      %v1840 = vld [vmem:[%s1824 + $0xb0] sm:$0xff]
      %v1841 = vld [vmem:[%s1824 + $0xc0] sm:$0xff]
      %v1842 = vld [vmem:[%s1824 + $0xc8] sm:$0xff]
      %v1843 = vld [vmem:[%s1824 + $0xd8] sm:$0xff]
      %v1844 = vld [vmem:[%s1824 + $0xe0] sm:$0xff]
      %v1845 = vld [vmem:[%s1824 + $0xf0] sm:$0xff]
      %v1846 = vld [vmem:[%s1824 + $0xf8] sm:$0xff]
      %v1847 = vld [vmem:[%s1824 + $0x108] sm:$0xff]
      %v1848 = vld [vmem:[%s1824 + $0x110] sm:$0xff]
      %v1849 = vld [vmem:[%s1824 + $0x120] sm:$0xff]
      %v1850 = vld [vmem:[%s1824 + $0x128] sm:$0xff]
      %v1851 = vld [vmem:[%s1824 + $0x138] sm:$0xff]
      %v1852 = vld [vmem:[%s1824 + $0x140] sm:$0xff]
      %v1853 = vld [vmem:[%s1824 + $0x150] sm:$0xff]
      %v1854 = vld [vmem:[%s1824 + $0x158] sm:$0xff]
      %v1855 = vld [vmem:[%s1824 + $0x168] sm:$0xff]
      %v1856 = vld [vmem:[%s1824 + $0x170] sm:$0xff]
      %v1857 = vlaneseq
      %v1858 = vshrl.u32 %v1857, 7
      %v1859 = vsub.s32 7, %v1858
      %v1860 = vrot.slane %v320, %v1859
      %v1861 = vmul.f32 %v1825, %v1860
      %v1862 = vmul.f32 %v1826, %v1860
      %v1863 = vmul.f32 %v1827, %v1860
      %v1864 = vmul.f32 %v1828, %v1860
      %v1865 = vmul.f32 %v1829, %v1860
      %v1866 = vmul.f32 %v1830, %v1860
      %v1867 = vmul.f32 %v1831, %v1860
      %v1868 = vmul.f32 %v1832, %v1860
      %v1869 = vmul.f32 %v1833, %v1860
      %v1870 = vmul.f32 %v1834, %v1860
      %v1871 = vmul.f32 %v1835, %v1860
      %v1872 = vmul.f32 %v1836, %v1860
      %v1873 = vmul.f32 %v1837, %v1860
      %v1874 = vmul.f32 %v1838, %v1860
      %v1875 = vmul.f32 %v1839, %v1860
      %v1876 = vmul.f32 %v1840, %v1860
      %v1877 = vmul.f32 %v1841, %v1860
      %v1878 = vmul.f32 %v1842, %v1860
      %v1879 = vmul.f32 %v1843, %v1860
      %v1880 = vmul.f32 %v1844, %v1860
      %v1881 = vmul.f32 %v1845, %v1860
      %v1882 = vmul.f32 %v1846, %v1860
      %v1883 = vmul.f32 %v1847, %v1860
      %v1884 = vmul.f32 %v1848, %v1860
      %v1885 = vmul.f32 %v1849, %v1860
      %v1886 = vmul.f32 %v1850, %v1860
      %v1887 = vmul.f32 %v1851, %v1860
      %v1888 = vmul.f32 %v1852, %v1860
      %v1889 = vmul.f32 %v1853, %v1860
      %v1890 = vmul.f32 %v1854, %v1860
      %v1891 = vmul.f32 %v1855, %v1860
      %v1892 = vmul.f32 %v1856, %v1860
      %v1893 = vadd.f32 %v1792, %v1861
      %v1894 = vadd.f32 %v1793, %v1862
      %v1895 = vadd.f32 %v1794, %v1863
      %v1896 = vadd.f32 %v1795, %v1864
      %v1897 = vadd.f32 %v1796, %v1865
      %v1898 = vadd.f32 %v1797, %v1866
      %v1899 = vadd.f32 %v1798, %v1867
      %v1900 = vadd.f32 %v1799, %v1868
      %v1901 = vadd.f32 %v1800, %v1869
      %v1902 = vadd.f32 %v1801, %v1870
      %v1903 = vadd.f32 %v1802, %v1871
      %v1904 = vadd.f32 %v1803, %v1872
      %v1905 = vadd.f32 %v1804, %v1873
      %v1906 = vadd.f32 %v1805, %v1874
      %v1907 = vadd.f32 %v1806, %v1875
      %v1908 = vadd.f32 %v1807, %v1876
      %v1909 = vadd.f32 %v1808, %v1877
      %v1910 = vadd.f32 %v1809, %v1878
      %v1911 = vadd.f32 %v1810, %v1879
      %v1912 = vadd.f32 %v1811, %v1880
      %v1913 = vadd.f32 %v1812, %v1881
      %v1914 = vadd.f32 %v1813, %v1882
      %v1915 = vadd.f32 %v1814, %v1883
      %v1916 = vadd.f32 %v1815, %v1884
      %v1917 = vadd.f32 %v1816, %v1885
      %v1918 = vadd.f32 %v1817, %v1886
      %v1919 = vadd.f32 %v1818, %v1887
      %v1920 = vadd.f32 %v1819, %v1888
      %v1921 = vadd.f32 %v1820, %v1889
      %v1922 = vadd.f32 %v1821, %v1890
      %v1923 = vadd.f32 %v1822, %v1891
      %v1924 = vadd.f32 %v1823, %v1892
      %v1925 = vld [vmem:[%s1824 + $0x1] sm:$0xff]
      %v1926 = vld [vmem:[%s1824 + $0x9] sm:$0xff]
      %v1927 = vld [vmem:[%s1824 + $0x19] sm:$0xff]
      %v1928 = vld [vmem:[%s1824 + $0x21] sm:$0xff]
      %v1929 = vld [vmem:[%s1824 + $0x31] sm:$0xff]
      %v1930 = vld [vmem:[%s1824 + $0x39] sm:$0xff]
      %v1931 = vld [vmem:[%s1824 + $0x49] sm:$0xff]
      %v1932 = vld [vmem:[%s1824 + $0x51] sm:$0xff]
      %v1933 = vld [vmem:[%s1824 + $0x61] sm:$0xff]
      %v1934 = vld [vmem:[%s1824 + $0x69] sm:$0xff]
      %v1935 = vld [vmem:[%s1824 + $0x79] sm:$0xff]
      %v1936 = vld [vmem:[%s1824 + $0x81] sm:$0xff]
      %v1937 = vld [vmem:[%s1824 + $0x91] sm:$0xff]
      %v1938 = vld [vmem:[%s1824 + $0x99] sm:$0xff]
      %v1939 = vld [vmem:[%s1824 + $0xa9] sm:$0xff]
      %v1940 = vld [vmem:[%s1824 + $0xb1] sm:$0xff]
      %v1941 = vld [vmem:[%s1824 + $0xc1] sm:$0xff]
      %v1942 = vld [vmem:[%s1824 + $0xc9] sm:$0xff]
      %v1943 = vld [vmem:[%s1824 + $0xd9] sm:$0xff]
      %v1944 = vld [vmem:[%s1824 + $0xe1] sm:$0xff]
      %v1945 = vld [vmem:[%s1824 + $0xf1] sm:$0xff]
      %v1946 = vld [vmem:[%s1824 + $0xf9] sm:$0xff]
      %v1947 = vld [vmem:[%s1824 + $0x109] sm:$0xff]
      %v1948 = vld [vmem:[%s1824 + $0x111] sm:$0xff]
      %v1949 = vld [vmem:[%s1824 + $0x121] sm:$0xff]
      %v1950 = vld [vmem:[%s1824 + $0x129] sm:$0xff]
      %v1951 = vld [vmem:[%s1824 + $0x139] sm:$0xff]
      %v1952 = vld [vmem:[%s1824 + $0x141] sm:$0xff]
      %v1953 = vld [vmem:[%s1824 + $0x151] sm:$0xff]
      %v1954 = vld [vmem:[%s1824 + $0x159] sm:$0xff]
      %v1955 = vld [vmem:[%s1824 + $0x169] sm:$0xff]
      %v1956 = vld [vmem:[%s1824 + $0x171] sm:$0xff]
      %v1957 = vlaneseq
      %v1958 = vshrl.u32 %v1957, 7
      %v1959 = vsub.s32 0, %v1958
      %v1960 = vrot.slane %v321, %v1959
      %v1961 = vmul.f32 %v1925, %v1960
      %v1962 = vmul.f32 %v1926, %v1960
      %v1963 = vmul.f32 %v1927, %v1960
      %v1964 = vmul.f32 %v1928, %v1960
      %v1965 = vmul.f32 %v1929, %v1960
      %v1966 = vmul.f32 %v1930, %v1960
      %v1967 = vmul.f32 %v1931, %v1960
      %v1968 = vmul.f32 %v1932, %v1960
      %v1969 = vmul.f32 %v1933, %v1960
      %v1970 = vmul.f32 %v1934, %v1960
      %v1971 = vmul.f32 %v1935, %v1960
      %v1972 = vmul.f32 %v1936, %v1960
      %v1973 = vmul.f32 %v1937, %v1960
      %v1974 = vmul.f32 %v1938, %v1960
      %v1975 = vmul.f32 %v1939, %v1960
      %v1976 = vmul.f32 %v1940, %v1960
      %v1977 = vmul.f32 %v1941, %v1960
      %v1978 = vmul.f32 %v1942, %v1960
      %v1979 = vmul.f32 %v1943, %v1960
      %v1980 = vmul.f32 %v1944, %v1960
      %v1981 = vmul.f32 %v1945, %v1960
      %v1982 = vmul.f32 %v1946, %v1960
      %v1983 = vmul.f32 %v1947, %v1960
      %v1984 = vmul.f32 %v1948, %v1960
      %v1985 = vmul.f32 %v1949, %v1960
      %v1986 = vmul.f32 %v1950, %v1960
      %v1987 = vmul.f32 %v1951, %v1960
      %v1988 = vmul.f32 %v1952, %v1960
      %v1989 = vmul.f32 %v1953, %v1960
      %v1990 = vmul.f32 %v1954, %v1960
      %v1991 = vmul.f32 %v1955, %v1960
      %v1992 = vmul.f32 %v1956, %v1960
      %v1993 = vadd.f32 %v1893, %v1961
      %v1994 = vadd.f32 %v1894, %v1962
      %v1995 = vadd.f32 %v1895, %v1963
      %v1996 = vadd.f32 %v1896, %v1964
      %v1997 = vadd.f32 %v1897, %v1965
      %v1998 = vadd.f32 %v1898, %v1966
      %v1999 = vadd.f32 %v1899, %v1967
      %v2000 = vadd.f32 %v1900, %v1968
      %v2001 = vadd.f32 %v1901, %v1969
      %v2002 = vadd.f32 %v1902, %v1970
      %v2003 = vadd.f32 %v1903, %v1971
      %v2004 = vadd.f32 %v1904, %v1972
      %v2005 = vadd.f32 %v1905, %v1973
      %v2006 = vadd.f32 %v1906, %v1974
      %v2007 = vadd.f32 %v1907, %v1975
      %v2008 = vadd.f32 %v1908, %v1976
      %v2009 = vadd.f32 %v1909, %v1977
      %v2010 = vadd.f32 %v1910, %v1978
      %v2011 = vadd.f32 %v1911, %v1979
      %v2012 = vadd.f32 %v1912, %v1980
      %v2013 = vadd.f32 %v1913, %v1981
      %v2014 = vadd.f32 %v1914, %v1982
      %v2015 = vadd.f32 %v1915, %v1983
      %v2016 = vadd.f32 %v1916, %v1984
      %v2017 = vadd.f32 %v1917, %v1985
      %v2018 = vadd.f32 %v1918, %v1986
      %v2019 = vadd.f32 %v1919, %v1987
      %v2020 = vadd.f32 %v1920, %v1988
      %v2021 = vadd.f32 %v1921, %v1989
      %v2022 = vadd.f32 %v1922, %v1990
      %v2023 = vadd.f32 %v1923, %v1991
      %v2024 = vadd.f32 %v1924, %v1992
      %v2025 = vld [vmem:[%s1824 + $0x2] sm:$0xff]
      %v2026 = vld [vmem:[%s1824 + $0xa] sm:$0xff]
      %v2027 = vld [vmem:[%s1824 + $0x1a] sm:$0xff]
      %v2028 = vld [vmem:[%s1824 + $0x22] sm:$0xff]
      %v2029 = vld [vmem:[%s1824 + $0x32] sm:$0xff]
      %v2030 = vld [vmem:[%s1824 + $0x3a] sm:$0xff]
      %v2031 = vld [vmem:[%s1824 + $0x4a] sm:$0xff]
      %v2032 = vld [vmem:[%s1824 + $0x52] sm:$0xff]
      %v2033 = vld [vmem:[%s1824 + $0x62] sm:$0xff]
      %v2034 = vld [vmem:[%s1824 + $0x6a] sm:$0xff]
      %v2035 = vld [vmem:[%s1824 + $0x7a] sm:$0xff]
      %v2036 = vld [vmem:[%s1824 + $0x82] sm:$0xff]
      %v2037 = vld [vmem:[%s1824 + $0x92] sm:$0xff]
      %v2038 = vld [vmem:[%s1824 + $0x9a] sm:$0xff]
      %v2039 = vld [vmem:[%s1824 + $0xaa] sm:$0xff]
      %v2040 = vld [vmem:[%s1824 + $0xb2] sm:$0xff]
      %v2041 = vld [vmem:[%s1824 + $0xc2] sm:$0xff]
      %v2042 = vld [vmem:[%s1824 + $0xca] sm:$0xff]
      %v2043 = vld [vmem:[%s1824 + $0xda] sm:$0xff]
      %v2044 = vld [vmem:[%s1824 + $0xe2] sm:$0xff]
      %v2045 = vld [vmem:[%s1824 + $0xf2] sm:$0xff]
      %v2046 = vld [vmem:[%s1824 + $0xfa] sm:$0xff]
      %v2047 = vld [vmem:[%s1824 + $0x10a] sm:$0xff]
      %v2048 = vld [vmem:[%s1824 + $0x112] sm:$0xff]
      %v2049 = vld [vmem:[%s1824 + $0x122] sm:$0xff]
      %v2050 = vld [vmem:[%s1824 + $0x12a] sm:$0xff]
      %v2051 = vld [vmem:[%s1824 + $0x13a] sm:$0xff]
      %v2052 = vld [vmem:[%s1824 + $0x142] sm:$0xff]
      %v2053 = vld [vmem:[%s1824 + $0x152] sm:$0xff]
      %v2054 = vld [vmem:[%s1824 + $0x15a] sm:$0xff]
      %v2055 = vld [vmem:[%s1824 + $0x16a] sm:$0xff]
      %v2056 = vld [vmem:[%s1824 + $0x172] sm:$0xff]
      %v2057 = vlaneseq
      %v2058 = vshrl.u32 %v2057, 7
      %v2059 = vsub.s32 1, %v2058
      %v2060 = vrot.slane %v321, %v2059
      %v2061 = vmul.f32 %v2025, %v2060
      %v2062 = vmul.f32 %v2026, %v2060
      %v2063 = vmul.f32 %v2027, %v2060
      %v2064 = vmul.f32 %v2028, %v2060
      %v2065 = vmul.f32 %v2029, %v2060
      %v2066 = vmul.f32 %v2030, %v2060
      %v2067 = vmul.f32 %v2031, %v2060
      %v2068 = vmul.f32 %v2032, %v2060
      %v2069 = vmul.f32 %v2033, %v2060
      %v2070 = vmul.f32 %v2034, %v2060
      %v2071 = vmul.f32 %v2035, %v2060
      %v2072 = vmul.f32 %v2036, %v2060
      %v2073 = vmul.f32 %v2037, %v2060
      %v2074 = vmul.f32 %v2038, %v2060
      %v2075 = vmul.f32 %v2039, %v2060
      %v2076 = vmul.f32 %v2040, %v2060
      %v2077 = vmul.f32 %v2041, %v2060
      %v2078 = vmul.f32 %v2042, %v2060
      %v2079 = vmul.f32 %v2043, %v2060
      %v2080 = vmul.f32 %v2044, %v2060
      %v2081 = vmul.f32 %v2045, %v2060
      %v2082 = vmul.f32 %v2046, %v2060
      %v2083 = vmul.f32 %v2047, %v2060
      %v2084 = vmul.f32 %v2048, %v2060
      %v2085 = vmul.f32 %v2049, %v2060
      %v2086 = vmul.f32 %v2050, %v2060
      %v2087 = vmul.f32 %v2051, %v2060
      %v2088 = vmul.f32 %v2052, %v2060
      %v2089 = vmul.f32 %v2053, %v2060
      %v2090 = vmul.f32 %v2054, %v2060
      %v2091 = vmul.f32 %v2055, %v2060
      %v2092 = vmul.f32 %v2056, %v2060
      %v2093 = vadd.f32 %v1993, %v2061
      %v2094 = vadd.f32 %v1994, %v2062
      %v2095 = vadd.f32 %v1995, %v2063
      %v2096 = vadd.f32 %v1996, %v2064
      %v2097 = vadd.f32 %v1997, %v2065
      %v2098 = vadd.f32 %v1998, %v2066
      %v2099 = vadd.f32 %v1999, %v2067
      %v2100 = vadd.f32 %v2000, %v2068
      %v2101 = vadd.f32 %v2001, %v2069
      %v2102 = vadd.f32 %v2002, %v2070
      %v2103 = vadd.f32 %v2003, %v2071
      %v2104 = vadd.f32 %v2004, %v2072
      %v2105 = vadd.f32 %v2005, %v2073
      %v2106 = vadd.f32 %v2006, %v2074
      %v2107 = vadd.f32 %v2007, %v2075
      %v2108 = vadd.f32 %v2008, %v2076
      %v2109 = vadd.f32 %v2009, %v2077
      %v2110 = vadd.f32 %v2010, %v2078
      %v2111 = vadd.f32 %v2011, %v2079
      %v2112 = vadd.f32 %v2012, %v2080
      %v2113 = vadd.f32 %v2013, %v2081
      %v2114 = vadd.f32 %v2014, %v2082
      %v2115 = vadd.f32 %v2015, %v2083
      %v2116 = vadd.f32 %v2016, %v2084
      %v2117 = vadd.f32 %v2017, %v2085
      %v2118 = vadd.f32 %v2018, %v2086
      %v2119 = vadd.f32 %v2019, %v2087
      %v2120 = vadd.f32 %v2020, %v2088
      %v2121 = vadd.f32 %v2021, %v2089
      %v2122 = vadd.f32 %v2022, %v2090
      %v2123 = vadd.f32 %v2023, %v2091
      %v2124 = vadd.f32 %v2024, %v2092
      %v2125 = vld [vmem:[%s1824 + $0x3] sm:$0xff]
      %v2126 = vld [vmem:[%s1824 + $0xb] sm:$0xff]
      %v2127 = vld [vmem:[%s1824 + $0x1b] sm:$0xff]
      %v2128 = vld [vmem:[%s1824 + $0x23] sm:$0xff]
      %v2129 = vld [vmem:[%s1824 + $0x33] sm:$0xff]
      %v2130 = vld [vmem:[%s1824 + $0x3b] sm:$0xff]
      %v2131 = vld [vmem:[%s1824 + $0x4b] sm:$0xff]
      %v2132 = vld [vmem:[%s1824 + $0x53] sm:$0xff]
      %v2133 = vld [vmem:[%s1824 + $0x63] sm:$0xff]
      %v2134 = vld [vmem:[%s1824 + $0x6b] sm:$0xff]
      %v2135 = vld [vmem:[%s1824 + $0x7b] sm:$0xff]
      %v2136 = vld [vmem:[%s1824 + $0x83] sm:$0xff]
      %v2137 = vld [vmem:[%s1824 + $0x93] sm:$0xff]
      %v2138 = vld [vmem:[%s1824 + $0x9b] sm:$0xff]
      %v2139 = vld [vmem:[%s1824 + $0xab] sm:$0xff]
      %v2140 = vld [vmem:[%s1824 + $0xb3] sm:$0xff]
      %v2141 = vld [vmem:[%s1824 + $0xc3] sm:$0xff]
      %v2142 = vld [vmem:[%s1824 + $0xcb] sm:$0xff]
      %v2143 = vld [vmem:[%s1824 + $0xdb] sm:$0xff]
      %v2144 = vld [vmem:[%s1824 + $0xe3] sm:$0xff]
      %v2145 = vld [vmem:[%s1824 + $0xf3] sm:$0xff]
      %v2146 = vld [vmem:[%s1824 + $0xfb] sm:$0xff]
      %v2147 = vld [vmem:[%s1824 + $0x10b] sm:$0xff]
      %v2148 = vld [vmem:[%s1824 + $0x113] sm:$0xff]
      %v2149 = vld [vmem:[%s1824 + $0x123] sm:$0xff]
      %v2150 = vld [vmem:[%s1824 + $0x12b] sm:$0xff]
      %v2151 = vld [vmem:[%s1824 + $0x13b] sm:$0xff]
      %v2152 = vld [vmem:[%s1824 + $0x143] sm:$0xff]
      %v2153 = vld [vmem:[%s1824 + $0x153] sm:$0xff]
      %v2154 = vld [vmem:[%s1824 + $0x15b] sm:$0xff]
      %v2155 = vld [vmem:[%s1824 + $0x16b] sm:$0xff]
      %v2156 = vld [vmem:[%s1824 + $0x173] sm:$0xff]
      %v2157 = vlaneseq
      %v2158 = vshrl.u32 %v2157, 7
      %v2159 = vsub.s32 2, %v2158
      %v2160 = vrot.slane %v321, %v2159
      %v2161 = vmul.f32 %v2125, %v2160
      %v2162 = vmul.f32 %v2126, %v2160
      %v2163 = vmul.f32 %v2127, %v2160
      %v2164 = vmul.f32 %v2128, %v2160
      %v2165 = vmul.f32 %v2129, %v2160
      %v2166 = vmul.f32 %v2130, %v2160
      %v2167 = vmul.f32 %v2131, %v2160
      %v2168 = vmul.f32 %v2132, %v2160
      %v2169 = vmul.f32 %v2133, %v2160
      %v2170 = vmul.f32 %v2134, %v2160
      %v2171 = vmul.f32 %v2135, %v2160
      %v2172 = vmul.f32 %v2136, %v2160
      %v2173 = vmul.f32 %v2137, %v2160
      %v2174 = vmul.f32 %v2138, %v2160
      %v2175 = vmul.f32 %v2139, %v2160
      %v2176 = vmul.f32 %v2140, %v2160
      %v2177 = vmul.f32 %v2141, %v2160
      %v2178 = vmul.f32 %v2142, %v2160
      %v2179 = vmul.f32 %v2143, %v2160
      %v2180 = vmul.f32 %v2144, %v2160
      %v2181 = vmul.f32 %v2145, %v2160
      %v2182 = vmul.f32 %v2146, %v2160
      %v2183 = vmul.f32 %v2147, %v2160
      %v2184 = vmul.f32 %v2148, %v2160
      %v2185 = vmul.f32 %v2149, %v2160
      %v2186 = vmul.f32 %v2150, %v2160
      %v2187 = vmul.f32 %v2151, %v2160
      %v2188 = vmul.f32 %v2152, %v2160
      %v2189 = vmul.f32 %v2153, %v2160
      %v2190 = vmul.f32 %v2154, %v2160
      %v2191 = vmul.f32 %v2155, %v2160
      %v2192 = vmul.f32 %v2156, %v2160
      %v2193 = vadd.f32 %v2093, %v2161
      %v2194 = vadd.f32 %v2094, %v2162
      %v2195 = vadd.f32 %v2095, %v2163
      %v2196 = vadd.f32 %v2096, %v2164
      %v2197 = vadd.f32 %v2097, %v2165
      %v2198 = vadd.f32 %v2098, %v2166
      %v2199 = vadd.f32 %v2099, %v2167
      %v2200 = vadd.f32 %v2100, %v2168
      %v2201 = vadd.f32 %v2101, %v2169
      %v2202 = vadd.f32 %v2102, %v2170
      %v2203 = vadd.f32 %v2103, %v2171
      %v2204 = vadd.f32 %v2104, %v2172
      %v2205 = vadd.f32 %v2105, %v2173
      %v2206 = vadd.f32 %v2106, %v2174
      %v2207 = vadd.f32 %v2107, %v2175
      %v2208 = vadd.f32 %v2108, %v2176
      %v2209 = vadd.f32 %v2109, %v2177
      %v2210 = vadd.f32 %v2110, %v2178
      %v2211 = vadd.f32 %v2111, %v2179
      %v2212 = vadd.f32 %v2112, %v2180
      %v2213 = vadd.f32 %v2113, %v2181
      %v2214 = vadd.f32 %v2114, %v2182
      %v2215 = vadd.f32 %v2115, %v2183
      %v2216 = vadd.f32 %v2116, %v2184
      %v2217 = vadd.f32 %v2117, %v2185
      %v2218 = vadd.f32 %v2118, %v2186
      %v2219 = vadd.f32 %v2119, %v2187
      %v2220 = vadd.f32 %v2120, %v2188
      %v2221 = vadd.f32 %v2121, %v2189
      %v2222 = vadd.f32 %v2122, %v2190
      %v2223 = vadd.f32 %v2123, %v2191
      %v2224 = vadd.f32 %v2124, %v2192
      %v2225 = vld [vmem:[%s1824 + $0x4] sm:$0xff]
      %v2226 = vld [vmem:[%s1824 + $0xc] sm:$0xff]
      %v2227 = vld [vmem:[%s1824 + $0x1c] sm:$0xff]
      %v2228 = vld [vmem:[%s1824 + $0x24] sm:$0xff]
      %v2229 = vld [vmem:[%s1824 + $0x34] sm:$0xff]
      %v2230 = vld [vmem:[%s1824 + $0x3c] sm:$0xff]
      %v2231 = vld [vmem:[%s1824 + $0x4c] sm:$0xff]
      %v2232 = vld [vmem:[%s1824 + $0x54] sm:$0xff]
      %v2233 = vld [vmem:[%s1824 + $0x64] sm:$0xff]
      %v2234 = vld [vmem:[%s1824 + $0x6c] sm:$0xff]
      %v2235 = vld [vmem:[%s1824 + $0x7c] sm:$0xff]
      %v2236 = vld [vmem:[%s1824 + $0x84] sm:$0xff]
      %v2237 = vld [vmem:[%s1824 + $0x94] sm:$0xff]
      %v2238 = vld [vmem:[%s1824 + $0x9c] sm:$0xff]
      %v2239 = vld [vmem:[%s1824 + $0xac] sm:$0xff]
      %v2240 = vld [vmem:[%s1824 + $0xb4] sm:$0xff]
      %v2241 = vld [vmem:[%s1824 + $0xc4] sm:$0xff]
      %v2242 = vld [vmem:[%s1824 + $0xcc] sm:$0xff]
      %v2243 = vld [vmem:[%s1824 + $0xdc] sm:$0xff]
      %v2244 = vld [vmem:[%s1824 + $0xe4] sm:$0xff]
      %v2245 = vld [vmem:[%s1824 + $0xf4] sm:$0xff]
      %v2246 = vld [vmem:[%s1824 + $0xfc] sm:$0xff]
      %v2247 = vld [vmem:[%s1824 + $0x10c] sm:$0xff]
      %v2248 = vld [vmem:[%s1824 + $0x114] sm:$0xff]
      %v2249 = vld [vmem:[%s1824 + $0x124] sm:$0xff]
      %v2250 = vld [vmem:[%s1824 + $0x12c] sm:$0xff]
      %v2251 = vld [vmem:[%s1824 + $0x13c] sm:$0xff]
      %v2252 = vld [vmem:[%s1824 + $0x144] sm:$0xff]
      %v2253 = vld [vmem:[%s1824 + $0x154] sm:$0xff]
      %v2254 = vld [vmem:[%s1824 + $0x15c] sm:$0xff]
      %v2255 = vld [vmem:[%s1824 + $0x16c] sm:$0xff]
      %v2256 = vld [vmem:[%s1824 + $0x174] sm:$0xff]
      %v2257 = vlaneseq
      %v2258 = vshrl.u32 %v2257, 7
      %v2259 = vsub.s32 3, %v2258
      %v2260 = vrot.slane %v321, %v2259
      %v2261 = vmul.f32 %v2225, %v2260
      %v2262 = vmul.f32 %v2226, %v2260
      %v2263 = vmul.f32 %v2227, %v2260
      %v2264 = vmul.f32 %v2228, %v2260
      %v2265 = vmul.f32 %v2229, %v2260
      %v2266 = vmul.f32 %v2230, %v2260
      %v2267 = vmul.f32 %v2231, %v2260
      %v2268 = vmul.f32 %v2232, %v2260
      %v2269 = vmul.f32 %v2233, %v2260
      %v2270 = vmul.f32 %v2234, %v2260
      %v2271 = vmul.f32 %v2235, %v2260
      %v2272 = vmul.f32 %v2236, %v2260
      %v2273 = vmul.f32 %v2237, %v2260
      %v2274 = vmul.f32 %v2238, %v2260
      %v2275 = vmul.f32 %v2239, %v2260
      %v2276 = vmul.f32 %v2240, %v2260
      %v2277 = vmul.f32 %v2241, %v2260
      %v2278 = vmul.f32 %v2242, %v2260
      %v2279 = vmul.f32 %v2243, %v2260
      %v2280 = vmul.f32 %v2244, %v2260
      %v2281 = vmul.f32 %v2245, %v2260
      %v2282 = vmul.f32 %v2246, %v2260
      %v2283 = vmul.f32 %v2247, %v2260
      %v2284 = vmul.f32 %v2248, %v2260
      %v2285 = vmul.f32 %v2249, %v2260
      %v2286 = vmul.f32 %v2250, %v2260
      %v2287 = vmul.f32 %v2251, %v2260
      %v2288 = vmul.f32 %v2252, %v2260
      %v2289 = vmul.f32 %v2253, %v2260
      %v2290 = vmul.f32 %v2254, %v2260
      %v2291 = vmul.f32 %v2255, %v2260
      %v2292 = vmul.f32 %v2256, %v2260
      %v2293 = vadd.f32 %v2193, %v2261
      %v2294 = vadd.f32 %v2194, %v2262
      %v2295 = vadd.f32 %v2195, %v2263
      %v2296 = vadd.f32 %v2196, %v2264
      %v2297 = vadd.f32 %v2197, %v2265
      %v2298 = vadd.f32 %v2198, %v2266
      %v2299 = vadd.f32 %v2199, %v2267
      %v2300 = vadd.f32 %v2200, %v2268
      %v2301 = vadd.f32 %v2201, %v2269
      %v2302 = vadd.f32 %v2202, %v2270
      %v2303 = vadd.f32 %v2203, %v2271
      %v2304 = vadd.f32 %v2204, %v2272
      %v2305 = vadd.f32 %v2205, %v2273
      %v2306 = vadd.f32 %v2206, %v2274
      %v2307 = vadd.f32 %v2207, %v2275
      %v2308 = vadd.f32 %v2208, %v2276
      %v2309 = vadd.f32 %v2209, %v2277
      %v2310 = vadd.f32 %v2210, %v2278
      %v2311 = vadd.f32 %v2211, %v2279
      %v2312 = vadd.f32 %v2212, %v2280
      %v2313 = vadd.f32 %v2213, %v2281
      %v2314 = vadd.f32 %v2214, %v2282
      %v2315 = vadd.f32 %v2215, %v2283
      %v2316 = vadd.f32 %v2216, %v2284
      %v2317 = vadd.f32 %v2217, %v2285
      %v2318 = vadd.f32 %v2218, %v2286
      %v2319 = vadd.f32 %v2219, %v2287
      %v2320 = vadd.f32 %v2220, %v2288
      %v2321 = vadd.f32 %v2221, %v2289
      %v2322 = vadd.f32 %v2222, %v2290
      %v2323 = vadd.f32 %v2223, %v2291
      %v2324 = vadd.f32 %v2224, %v2292
      %s2325 = scalar_lea.vmem [#allocation2], 96
      %v2326 = vld [vmem:[%s2325] sm:$0xff]
      %v2327 = vld [vmem:[%s2325 + $0x8] sm:$0xff]
      %v2328 = vld [vmem:[%s2325 + $0x18] sm:$0xff]
      %v2329 = vld [vmem:[%s2325 + $0x20] sm:$0xff]
      %v2330 = vld [vmem:[%s2325 + $0x30] sm:$0xff]
      %v2331 = vld [vmem:[%s2325 + $0x38] sm:$0xff]
      %v2332 = vld [vmem:[%s2325 + $0x48] sm:$0xff]
      %v2333 = vld [vmem:[%s2325 + $0x50] sm:$0xff]
      %v2334 = vld [vmem:[%s2325 + $0x60] sm:$0xff]
      %v2335 = vld [vmem:[%s2325 + $0x68] sm:$0xff]
      %v2336 = vld [vmem:[%s2325 + $0x78] sm:$0xff]
      %v2337 = vld [vmem:[%s2325 + $0x80] sm:$0xff]
      %v2338 = vld [vmem:[%s2325 + $0x90] sm:$0xff]
      %v2339 = vld [vmem:[%s2325 + $0x98] sm:$0xff]
      %v2340 = vld [vmem:[%s2325 + $0xa8] sm:$0xff]
      %v2341 = vld [vmem:[%s2325 + $0xb0] sm:$0xff]
      %v2342 = vld [vmem:[%s2325 + $0xc0] sm:$0xff]
      %v2343 = vld [vmem:[%s2325 + $0xc8] sm:$0xff]
      %v2344 = vld [vmem:[%s2325 + $0xd8] sm:$0xff]
      %v2345 = vld [vmem:[%s2325 + $0xe0] sm:$0xff]
      %v2346 = vld [vmem:[%s2325 + $0xf0] sm:$0xff]
      %v2347 = vld [vmem:[%s2325 + $0xf8] sm:$0xff]
      %v2348 = vld [vmem:[%s2325 + $0x108] sm:$0xff]
      %v2349 = vld [vmem:[%s2325 + $0x110] sm:$0xff]
      %v2350 = vld [vmem:[%s2325 + $0x120] sm:$0xff]
      %v2351 = vld [vmem:[%s2325 + $0x128] sm:$0xff]
      %v2352 = vld [vmem:[%s2325 + $0x138] sm:$0xff]
      %v2353 = vld [vmem:[%s2325 + $0x140] sm:$0xff]
      %v2354 = vld [vmem:[%s2325 + $0x150] sm:$0xff]
      %v2355 = vld [vmem:[%s2325 + $0x158] sm:$0xff]
      %v2356 = vld [vmem:[%s2325 + $0x168] sm:$0xff]
      %v2357 = vld [vmem:[%s2325 + $0x170] sm:$0xff]
      %v2358 = vlaneseq
      %v2359 = vshrl.u32 %v2358, 7
      %v2360 = vsub.s32 4, %v2359
      %v2361 = vrot.slane %v321, %v2360
      %v2362 = vmul.f32 %v2326, %v2361
      %v2363 = vmul.f32 %v2327, %v2361
      %v2364 = vmul.f32 %v2328, %v2361
      %v2365 = vmul.f32 %v2329, %v2361
      %v2366 = vmul.f32 %v2330, %v2361
      %v2367 = vmul.f32 %v2331, %v2361
      %v2368 = vmul.f32 %v2332, %v2361
      %v2369 = vmul.f32 %v2333, %v2361
      %v2370 = vmul.f32 %v2334, %v2361
      %v2371 = vmul.f32 %v2335, %v2361
      %v2372 = vmul.f32 %v2336, %v2361
      %v2373 = vmul.f32 %v2337, %v2361
      %v2374 = vmul.f32 %v2338, %v2361
      %v2375 = vmul.f32 %v2339, %v2361
      %v2376 = vmul.f32 %v2340, %v2361
      %v2377 = vmul.f32 %v2341, %v2361
      %v2378 = vmul.f32 %v2342, %v2361
      %v2379 = vmul.f32 %v2343, %v2361
      %v2380 = vmul.f32 %v2344, %v2361
      %v2381 = vmul.f32 %v2345, %v2361
      %v2382 = vmul.f32 %v2346, %v2361
      %v2383 = vmul.f32 %v2347, %v2361
      %v2384 = vmul.f32 %v2348, %v2361
      %v2385 = vmul.f32 %v2349, %v2361
      %v2386 = vmul.f32 %v2350, %v2361
      %v2387 = vmul.f32 %v2351, %v2361
      %v2388 = vmul.f32 %v2352, %v2361
      %v2389 = vmul.f32 %v2353, %v2361
      %v2390 = vmul.f32 %v2354, %v2361
      %v2391 = vmul.f32 %v2355, %v2361
      %v2392 = vmul.f32 %v2356, %v2361
      %v2393 = vmul.f32 %v2357, %v2361
      %v2394 = vadd.f32 %v2293, %v2362
      %v2395 = vadd.f32 %v2294, %v2363
      %v2396 = vadd.f32 %v2295, %v2364
      %v2397 = vadd.f32 %v2296, %v2365
      %v2398 = vadd.f32 %v2297, %v2366
      %v2399 = vadd.f32 %v2298, %v2367
      %v2400 = vadd.f32 %v2299, %v2368
      %v2401 = vadd.f32 %v2300, %v2369
      %v2402 = vadd.f32 %v2301, %v2370
      %v2403 = vadd.f32 %v2302, %v2371
      %v2404 = vadd.f32 %v2303, %v2372
      %v2405 = vadd.f32 %v2304, %v2373
      %v2406 = vadd.f32 %v2305, %v2374
      %v2407 = vadd.f32 %v2306, %v2375
      %v2408 = vadd.f32 %v2307, %v2376
      %v2409 = vadd.f32 %v2308, %v2377
      %v2410 = vadd.f32 %v2309, %v2378
      %v2411 = vadd.f32 %v2310, %v2379
      %v2412 = vadd.f32 %v2311, %v2380
      %v2413 = vadd.f32 %v2312, %v2381
      %v2414 = vadd.f32 %v2313, %v2382
      %v2415 = vadd.f32 %v2314, %v2383
      %v2416 = vadd.f32 %v2315, %v2384
      %v2417 = vadd.f32 %v2316, %v2385
      %v2418 = vadd.f32 %v2317, %v2386
      %v2419 = vadd.f32 %v2318, %v2387
      %v2420 = vadd.f32 %v2319, %v2388
      %v2421 = vadd.f32 %v2320, %v2389
      %v2422 = vadd.f32 %v2321, %v2390
      %v2423 = vadd.f32 %v2322, %v2391
      %v2424 = vadd.f32 %v2323, %v2392
      %v2425 = vadd.f32 %v2324, %v2393
      %v2426 = vld [vmem:[%s2325 + $0x1] sm:$0xff]
      %v2427 = vld [vmem:[%s2325 + $0x9] sm:$0xff]
      %v2428 = vld [vmem:[%s2325 + $0x19] sm:$0xff]
      %v2429 = vld [vmem:[%s2325 + $0x21] sm:$0xff]
      %v2430 = vld [vmem:[%s2325 + $0x31] sm:$0xff]
      %v2431 = vld [vmem:[%s2325 + $0x39] sm:$0xff]
      %v2432 = vld [vmem:[%s2325 + $0x49] sm:$0xff]
      %v2433 = vld [vmem:[%s2325 + $0x51] sm:$0xff]
      %v2434 = vld [vmem:[%s2325 + $0x61] sm:$0xff]
      %v2435 = vld [vmem:[%s2325 + $0x69] sm:$0xff]
      %v2436 = vld [vmem:[%s2325 + $0x79] sm:$0xff]
      %v2437 = vld [vmem:[%s2325 + $0x81] sm:$0xff]
      %v2438 = vld [vmem:[%s2325 + $0x91] sm:$0xff]
      %v2439 = vld [vmem:[%s2325 + $0x99] sm:$0xff]
      %v2440 = vld [vmem:[%s2325 + $0xa9] sm:$0xff]
      %v2441 = vld [vmem:[%s2325 + $0xb1] sm:$0xff]
      %v2442 = vld [vmem:[%s2325 + $0xc1] sm:$0xff]
      %v2443 = vld [vmem:[%s2325 + $0xc9] sm:$0xff]
      %v2444 = vld [vmem:[%s2325 + $0xd9] sm:$0xff]
      %v2445 = vld [vmem:[%s2325 + $0xe1] sm:$0xff]
      %v2446 = vld [vmem:[%s2325 + $0xf1] sm:$0xff]
      %v2447 = vld [vmem:[%s2325 + $0xf9] sm:$0xff]
      %v2448 = vld [vmem:[%s2325 + $0x109] sm:$0xff]
      %v2449 = vld [vmem:[%s2325 + $0x111] sm:$0xff]
      %v2450 = vld [vmem:[%s2325 + $0x121] sm:$0xff]
      %v2451 = vld [vmem:[%s2325 + $0x129] sm:$0xff]
      %v2452 = vld [vmem:[%s2325 + $0x139] sm:$0xff]
      %v2453 = vld [vmem:[%s2325 + $0x141] sm:$0xff]
      %v2454 = vld [vmem:[%s2325 + $0x151] sm:$0xff]
      %v2455 = vld [vmem:[%s2325 + $0x159] sm:$0xff]
      %v2456 = vld [vmem:[%s2325 + $0x169] sm:$0xff]
      %v2457 = vld [vmem:[%s2325 + $0x171] sm:$0xff]
      %v2458 = vlaneseq
      %v2459 = vshrl.u32 %v2458, 7
      %v2460 = vsub.s32 5, %v2459
      %v2461 = vrot.slane %v321, %v2460
      %v2462 = vmul.f32 %v2426, %v2461
      %v2463 = vmul.f32 %v2427, %v2461
      %v2464 = vmul.f32 %v2428, %v2461
      %v2465 = vmul.f32 %v2429, %v2461
      %v2466 = vmul.f32 %v2430, %v2461
      %v2467 = vmul.f32 %v2431, %v2461
      %v2468 = vmul.f32 %v2432, %v2461
      %v2469 = vmul.f32 %v2433, %v2461
      %v2470 = vmul.f32 %v2434, %v2461
      %v2471 = vmul.f32 %v2435, %v2461
      %v2472 = vmul.f32 %v2436, %v2461
      %v2473 = vmul.f32 %v2437, %v2461
      %v2474 = vmul.f32 %v2438, %v2461
      %v2475 = vmul.f32 %v2439, %v2461
      %v2476 = vmul.f32 %v2440, %v2461
      %v2477 = vmul.f32 %v2441, %v2461
      %v2478 = vmul.f32 %v2442, %v2461
      %v2479 = vmul.f32 %v2443, %v2461
      %v2480 = vmul.f32 %v2444, %v2461
      %v2481 = vmul.f32 %v2445, %v2461
      %v2482 = vmul.f32 %v2446, %v2461
      %v2483 = vmul.f32 %v2447, %v2461
      %v2484 = vmul.f32 %v2448, %v2461
      %v2485 = vmul.f32 %v2449, %v2461
      %v2486 = vmul.f32 %v2450, %v2461
      %v2487 = vmul.f32 %v2451, %v2461
      %v2488 = vmul.f32 %v2452, %v2461
      %v2489 = vmul.f32 %v2453, %v2461
      %v2490 = vmul.f32 %v2454, %v2461
      %v2491 = vmul.f32 %v2455, %v2461
      %v2492 = vmul.f32 %v2456, %v2461
      %v2493 = vmul.f32 %v2457, %v2461
      %v2494 = vadd.f32 %v2394, %v2462
      %v2495 = vadd.f32 %v2395, %v2463
      %v2496 = vadd.f32 %v2396, %v2464
      %v2497 = vadd.f32 %v2397, %v2465
      %v2498 = vadd.f32 %v2398, %v2466
      %v2499 = vadd.f32 %v2399, %v2467
      %v2500 = vadd.f32 %v2400, %v2468
      %v2501 = vadd.f32 %v2401, %v2469
      %v2502 = vadd.f32 %v2402, %v2470
      %v2503 = vadd.f32 %v2403, %v2471
      %v2504 = vadd.f32 %v2404, %v2472
      %v2505 = vadd.f32 %v2405, %v2473
      %v2506 = vadd.f32 %v2406, %v2474
      %v2507 = vadd.f32 %v2407, %v2475
      %v2508 = vadd.f32 %v2408, %v2476
      %v2509 = vadd.f32 %v2409, %v2477
      %v2510 = vadd.f32 %v2410, %v2478
      %v2511 = vadd.f32 %v2411, %v2479
      %v2512 = vadd.f32 %v2412, %v2480
      %v2513 = vadd.f32 %v2413, %v2481
      %v2514 = vadd.f32 %v2414, %v2482
      %v2515 = vadd.f32 %v2415, %v2483
      %v2516 = vadd.f32 %v2416, %v2484
      %v2517 = vadd.f32 %v2417, %v2485
      %v2518 = vadd.f32 %v2418, %v2486
      %v2519 = vadd.f32 %v2419, %v2487
      %v2520 = vadd.f32 %v2420, %v2488
      %v2521 = vadd.f32 %v2421, %v2489
      %v2522 = vadd.f32 %v2422, %v2490
      %v2523 = vadd.f32 %v2423, %v2491
      %v2524 = vadd.f32 %v2424, %v2492
      %v2525 = vadd.f32 %v2425, %v2493
      %v2526 = vld [vmem:[%s2325 + $0x2] sm:$0xff]
      %v2527 = vld [vmem:[%s2325 + $0xa] sm:$0xff]
      %v2528 = vld [vmem:[%s2325 + $0x1a] sm:$0xff]
      %v2529 = vld [vmem:[%s2325 + $0x22] sm:$0xff]
      %v2530 = vld [vmem:[%s2325 + $0x32] sm:$0xff]
      %v2531 = vld [vmem:[%s2325 + $0x3a] sm:$0xff]
      %v2532 = vld [vmem:[%s2325 + $0x4a] sm:$0xff]
      %v2533 = vld [vmem:[%s2325 + $0x52] sm:$0xff]
      %v2534 = vld [vmem:[%s2325 + $0x62] sm:$0xff]
      %v2535 = vld [vmem:[%s2325 + $0x6a] sm:$0xff]
      %v2536 = vld [vmem:[%s2325 + $0x7a] sm:$0xff]
      %v2537 = vld [vmem:[%s2325 + $0x82] sm:$0xff]
      %v2538 = vld [vmem:[%s2325 + $0x92] sm:$0xff]
      %v2539 = vld [vmem:[%s2325 + $0x9a] sm:$0xff]
      %v2540 = vld [vmem:[%s2325 + $0xaa] sm:$0xff]
      %v2541 = vld [vmem:[%s2325 + $0xb2] sm:$0xff]
      %v2542 = vld [vmem:[%s2325 + $0xc2] sm:$0xff]
      %v2543 = vld [vmem:[%s2325 + $0xca] sm:$0xff]
      %v2544 = vld [vmem:[%s2325 + $0xda] sm:$0xff]
      %v2545 = vld [vmem:[%s2325 + $0xe2] sm:$0xff]
      %v2546 = vld [vmem:[%s2325 + $0xf2] sm:$0xff]
      %v2547 = vld [vmem:[%s2325 + $0xfa] sm:$0xff]
      %v2548 = vld [vmem:[%s2325 + $0x10a] sm:$0xff]
      %v2549 = vld [vmem:[%s2325 + $0x112] sm:$0xff]
      %v2550 = vld [vmem:[%s2325 + $0x122] sm:$0xff]
      %v2551 = vld [vmem:[%s2325 + $0x12a] sm:$0xff]
      %v2552 = vld [vmem:[%s2325 + $0x13a] sm:$0xff]
      %v2553 = vld [vmem:[%s2325 + $0x142] sm:$0xff]
      %v2554 = vld [vmem:[%s2325 + $0x152] sm:$0xff]
      %v2555 = vld [vmem:[%s2325 + $0x15a] sm:$0xff]
      %v2556 = vld [vmem:[%s2325 + $0x16a] sm:$0xff]
      %v2557 = vld [vmem:[%s2325 + $0x172] sm:$0xff]
      %v2558 = vlaneseq
      %v2559 = vshrl.u32 %v2558, 7
      %v2560 = vsub.s32 6, %v2559
      %v2561 = vrot.slane %v321, %v2560
      %v2562 = vmul.f32 %v2526, %v2561
      %v2563 = vmul.f32 %v2527, %v2561
      %v2564 = vmul.f32 %v2528, %v2561
      %v2565 = vmul.f32 %v2529, %v2561
      %v2566 = vmul.f32 %v2530, %v2561
      %v2567 = vmul.f32 %v2531, %v2561
      %v2568 = vmul.f32 %v2532, %v2561
      %v2569 = vmul.f32 %v2533, %v2561
      %v2570 = vmul.f32 %v2534, %v2561
      %v2571 = vmul.f32 %v2535, %v2561
      %v2572 = vmul.f32 %v2536, %v2561
      %v2573 = vmul.f32 %v2537, %v2561
      %v2574 = vmul.f32 %v2538, %v2561
      %v2575 = vmul.f32 %v2539, %v2561
      %v2576 = vmul.f32 %v2540, %v2561
      %v2577 = vmul.f32 %v2541, %v2561
      %v2578 = vmul.f32 %v2542, %v2561
      %v2579 = vmul.f32 %v2543, %v2561
      %v2580 = vmul.f32 %v2544, %v2561
      %v2581 = vmul.f32 %v2545, %v2561
      %v2582 = vmul.f32 %v2546, %v2561
      %v2583 = vmul.f32 %v2547, %v2561
      %v2584 = vmul.f32 %v2548, %v2561
      %v2585 = vmul.f32 %v2549, %v2561
      %v2586 = vmul.f32 %v2550, %v2561
      %v2587 = vmul.f32 %v2551, %v2561
      %v2588 = vmul.f32 %v2552, %v2561
      %v2589 = vmul.f32 %v2553, %v2561
      %v2590 = vmul.f32 %v2554, %v2561
      %v2591 = vmul.f32 %v2555, %v2561
      %v2592 = vmul.f32 %v2556, %v2561
      %v2593 = vmul.f32 %v2557, %v2561
      %v2594 = vadd.f32 %v2494, %v2562
      %v2595 = vadd.f32 %v2495, %v2563
      %v2596 = vadd.f32 %v2496, %v2564
      %v2597 = vadd.f32 %v2497, %v2565
      %v2598 = vadd.f32 %v2498, %v2566
      %v2599 = vadd.f32 %v2499, %v2567
      %v2600 = vadd.f32 %v2500, %v2568
      %v2601 = vadd.f32 %v2501, %v2569
      %v2602 = vadd.f32 %v2502, %v2570
      %v2603 = vadd.f32 %v2503, %v2571
      %v2604 = vadd.f32 %v2504, %v2572
      %v2605 = vadd.f32 %v2505, %v2573
      %v2606 = vadd.f32 %v2506, %v2574
      %v2607 = vadd.f32 %v2507, %v2575
      %v2608 = vadd.f32 %v2508, %v2576
      %v2609 = vadd.f32 %v2509, %v2577
      %v2610 = vadd.f32 %v2510, %v2578
      %v2611 = vadd.f32 %v2511, %v2579
      %v2612 = vadd.f32 %v2512, %v2580
      %v2613 = vadd.f32 %v2513, %v2581
      %v2614 = vadd.f32 %v2514, %v2582
      %v2615 = vadd.f32 %v2515, %v2583
      %v2616 = vadd.f32 %v2516, %v2584
      %v2617 = vadd.f32 %v2517, %v2585
      %v2618 = vadd.f32 %v2518, %v2586
      %v2619 = vadd.f32 %v2519, %v2587
      %v2620 = vadd.f32 %v2520, %v2588
      %v2621 = vadd.f32 %v2521, %v2589
      %v2622 = vadd.f32 %v2522, %v2590
      %v2623 = vadd.f32 %v2523, %v2591
      %v2624 = vadd.f32 %v2524, %v2592
      %v2625 = vadd.f32 %v2525, %v2593
      %v2626 = vld [vmem:[%s2325 + $0x3] sm:$0xff]
      %v2627 = vld [vmem:[%s2325 + $0xb] sm:$0xff]
      %v2628 = vld [vmem:[%s2325 + $0x1b] sm:$0xff]
      %v2629 = vld [vmem:[%s2325 + $0x23] sm:$0xff]
      %v2630 = vld [vmem:[%s2325 + $0x33] sm:$0xff]
      %v2631 = vld [vmem:[%s2325 + $0x3b] sm:$0xff]
      %v2632 = vld [vmem:[%s2325 + $0x4b] sm:$0xff]
      %v2633 = vld [vmem:[%s2325 + $0x53] sm:$0xff]
      %v2634 = vld [vmem:[%s2325 + $0x63] sm:$0xff]
      %v2635 = vld [vmem:[%s2325 + $0x6b] sm:$0xff]
      %v2636 = vld [vmem:[%s2325 + $0x7b] sm:$0xff]
      %v2637 = vld [vmem:[%s2325 + $0x83] sm:$0xff]
      %v2638 = vld [vmem:[%s2325 + $0x93] sm:$0xff]
      %v2639 = vld [vmem:[%s2325 + $0x9b] sm:$0xff]
      %v2640 = vld [vmem:[%s2325 + $0xab] sm:$0xff]
      %v2641 = vld [vmem:[%s2325 + $0xb3] sm:$0xff]
      %v2642 = vld [vmem:[%s2325 + $0xc3] sm:$0xff]
      %v2643 = vld [vmem:[%s2325 + $0xcb] sm:$0xff]
      %v2644 = vld [vmem:[%s2325 + $0xdb] sm:$0xff]
      %v2645 = vld [vmem:[%s2325 + $0xe3] sm:$0xff]
      %v2646 = vld [vmem:[%s2325 + $0xf3] sm:$0xff]
      %v2647 = vld [vmem:[%s2325 + $0xfb] sm:$0xff]
      %v2648 = vld [vmem:[%s2325 + $0x10b] sm:$0xff]
      %v2649 = vld [vmem:[%s2325 + $0x113] sm:$0xff]
      %v2650 = vld [vmem:[%s2325 + $0x123] sm:$0xff]
      %v2651 = vld [vmem:[%s2325 + $0x12b] sm:$0xff]
      %v2652 = vld [vmem:[%s2325 + $0x13b] sm:$0xff]
      %v2653 = vld [vmem:[%s2325 + $0x143] sm:$0xff]
      %v2654 = vld [vmem:[%s2325 + $0x153] sm:$0xff]
      %v2655 = vld [vmem:[%s2325 + $0x15b] sm:$0xff]
      %v2656 = vld [vmem:[%s2325 + $0x16b] sm:$0xff]
      %v2657 = vld [vmem:[%s2325 + $0x173] sm:$0xff]
      %v2658 = vlaneseq
      %v2659 = vshrl.u32 %v2658, 7
      %v2660 = vsub.s32 7, %v2659
      %v2661 = vrot.slane %v321, %v2660
      %v2662 = vmul.f32 %v2626, %v2661
      %v2663 = vmul.f32 %v2627, %v2661
      %v2664 = vmul.f32 %v2628, %v2661
      %v2665 = vmul.f32 %v2629, %v2661
      %v2666 = vmul.f32 %v2630, %v2661
      %v2667 = vmul.f32 %v2631, %v2661
      %v2668 = vmul.f32 %v2632, %v2661
      %v2669 = vmul.f32 %v2633, %v2661
      %v2670 = vmul.f32 %v2634, %v2661
      %v2671 = vmul.f32 %v2635, %v2661
      %v2672 = vmul.f32 %v2636, %v2661
      %v2673 = vmul.f32 %v2637, %v2661
      %v2674 = vmul.f32 %v2638, %v2661
      %v2675 = vmul.f32 %v2639, %v2661
      %v2676 = vmul.f32 %v2640, %v2661
      %v2677 = vmul.f32 %v2641, %v2661
      %v2678 = vmul.f32 %v2642, %v2661
      %v2679 = vmul.f32 %v2643, %v2661
      %v2680 = vmul.f32 %v2644, %v2661
      %v2681 = vmul.f32 %v2645, %v2661
      %v2682 = vmul.f32 %v2646, %v2661
      %v2683 = vmul.f32 %v2647, %v2661
      %v2684 = vmul.f32 %v2648, %v2661
      %v2685 = vmul.f32 %v2649, %v2661
      %v2686 = vmul.f32 %v2650, %v2661
      %v2687 = vmul.f32 %v2651, %v2661
      %v2688 = vmul.f32 %v2652, %v2661
      %v2689 = vmul.f32 %v2653, %v2661
      %v2690 = vmul.f32 %v2654, %v2661
      %v2691 = vmul.f32 %v2655, %v2661
      %v2692 = vmul.f32 %v2656, %v2661
      %v2693 = vmul.f32 %v2657, %v2661
      %v2694 = vadd.f32 %v2594, %v2662
      %v2695 = vadd.f32 %v2595, %v2663
      %v2696 = vadd.f32 %v2596, %v2664
      %v2697 = vadd.f32 %v2597, %v2665
      %v2698 = vadd.f32 %v2598, %v2666
      %v2699 = vadd.f32 %v2599, %v2667
      %v2700 = vadd.f32 %v2600, %v2668
      %v2701 = vadd.f32 %v2601, %v2669
      %v2702 = vadd.f32 %v2602, %v2670
      %v2703 = vadd.f32 %v2603, %v2671
      %v2704 = vadd.f32 %v2604, %v2672
      %v2705 = vadd.f32 %v2605, %v2673
      %v2706 = vadd.f32 %v2606, %v2674
      %v2707 = vadd.f32 %v2607, %v2675
      %v2708 = vadd.f32 %v2608, %v2676
      %v2709 = vadd.f32 %v2609, %v2677
      %v2710 = vadd.f32 %v2610, %v2678
      %v2711 = vadd.f32 %v2611, %v2679
      %v2712 = vadd.f32 %v2612, %v2680
      %v2713 = vadd.f32 %v2613, %v2681
      %v2714 = vadd.f32 %v2614, %v2682
      %v2715 = vadd.f32 %v2615, %v2683
      %v2716 = vadd.f32 %v2616, %v2684
      %v2717 = vadd.f32 %v2617, %v2685
      %v2718 = vadd.f32 %v2618, %v2686
      %v2719 = vadd.f32 %v2619, %v2687
      %v2720 = vadd.f32 %v2620, %v2688
      %v2721 = vadd.f32 %v2621, %v2689
      %v2722 = vadd.f32 %v2622, %v2690
      %v2723 = vadd.f32 %v2623, %v2691
      %v2724 = vadd.f32 %v2624, %v2692
      %v2725 = vadd.f32 %v2625, %v2693
      %v2726 = vld [vmem:[%s2325 + $0x4] sm:$0xff]
      %v2727 = vld [vmem:[%s2325 + $0xc] sm:$0xff]
      %v2728 = vld [vmem:[%s2325 + $0x1c] sm:$0xff]
      %v2729 = vld [vmem:[%s2325 + $0x24] sm:$0xff]
      %v2730 = vld [vmem:[%s2325 + $0x34] sm:$0xff]
      %v2731 = vld [vmem:[%s2325 + $0x3c] sm:$0xff]
      %v2732 = vld [vmem:[%s2325 + $0x4c] sm:$0xff]
      %v2733 = vld [vmem:[%s2325 + $0x54] sm:$0xff]
      %v2734 = vld [vmem:[%s2325 + $0x64] sm:$0xff]
      %v2735 = vld [vmem:[%s2325 + $0x6c] sm:$0xff]
      %v2736 = vld [vmem:[%s2325 + $0x7c] sm:$0xff]
      %v2737 = vld [vmem:[%s2325 + $0x84] sm:$0xff]
      %v2738 = vld [vmem:[%s2325 + $0x94] sm:$0xff]
      %v2739 = vld [vmem:[%s2325 + $0x9c] sm:$0xff]
      %v2740 = vld [vmem:[%s2325 + $0xac] sm:$0xff]
      %v2741 = vld [vmem:[%s2325 + $0xb4] sm:$0xff]
      %v2742 = vld [vmem:[%s2325 + $0xc4] sm:$0xff]
      %v2743 = vld [vmem:[%s2325 + $0xcc] sm:$0xff]
      %v2744 = vld [vmem:[%s2325 + $0xdc] sm:$0xff]
      %v2745 = vld [vmem:[%s2325 + $0xe4] sm:$0xff]
      %v2746 = vld [vmem:[%s2325 + $0xf4] sm:$0xff]
      %v2747 = vld [vmem:[%s2325 + $0xfc] sm:$0xff]
      %v2748 = vld [vmem:[%s2325 + $0x10c] sm:$0xff]
      %v2749 = vld [vmem:[%s2325 + $0x114] sm:$0xff]
      %v2750 = vld [vmem:[%s2325 + $0x124] sm:$0xff]
      %v2751 = vld [vmem:[%s2325 + $0x12c] sm:$0xff]
      %v2752 = vld [vmem:[%s2325 + $0x13c] sm:$0xff]
      %v2753 = vld [vmem:[%s2325 + $0x144] sm:$0xff]
      %v2754 = vld [vmem:[%s2325 + $0x154] sm:$0xff]
      %v2755 = vld [vmem:[%s2325 + $0x15c] sm:$0xff]
      %v2756 = vld [vmem:[%s2325 + $0x16c] sm:$0xff]
      %v2757 = vld [vmem:[%s2325 + $0x174] sm:$0xff]
      %v2758 = vlaneseq
      %v2759 = vshrl.u32 %v2758, 7
      %v2760 = vsub.s32 0, %v2759
      %v2761 = vrot.slane %v322, %v2760
      %v2762 = vmul.f32 %v2726, %v2761
      %v2763 = vmul.f32 %v2727, %v2761
      %v2764 = vmul.f32 %v2728, %v2761
      %v2765 = vmul.f32 %v2729, %v2761
      %v2766 = vmul.f32 %v2730, %v2761
      %v2767 = vmul.f32 %v2731, %v2761
      %v2768 = vmul.f32 %v2732, %v2761
      %v2769 = vmul.f32 %v2733, %v2761
      %v2770 = vmul.f32 %v2734, %v2761
      %v2771 = vmul.f32 %v2735, %v2761
      %v2772 = vmul.f32 %v2736, %v2761
      %v2773 = vmul.f32 %v2737, %v2761
      %v2774 = vmul.f32 %v2738, %v2761
      %v2775 = vmul.f32 %v2739, %v2761
      %v2776 = vmul.f32 %v2740, %v2761
      %v2777 = vmul.f32 %v2741, %v2761
      %v2778 = vmul.f32 %v2742, %v2761
      %v2779 = vmul.f32 %v2743, %v2761
      %v2780 = vmul.f32 %v2744, %v2761
      %v2781 = vmul.f32 %v2745, %v2761
      %v2782 = vmul.f32 %v2746, %v2761
      %v2783 = vmul.f32 %v2747, %v2761
      %v2784 = vmul.f32 %v2748, %v2761
      %v2785 = vmul.f32 %v2749, %v2761
      %v2786 = vmul.f32 %v2750, %v2761
      %v2787 = vmul.f32 %v2751, %v2761
      %v2788 = vmul.f32 %v2752, %v2761
      %v2789 = vmul.f32 %v2753, %v2761
      %v2790 = vmul.f32 %v2754, %v2761
      %v2791 = vmul.f32 %v2755, %v2761
      %v2792 = vmul.f32 %v2756, %v2761
      %v2793 = vmul.f32 %v2757, %v2761
      %v2794 = vadd.f32 %v2694, %v2762
      %v2795 = vadd.f32 %v2695, %v2763
      %v2796 = vadd.f32 %v2696, %v2764
      %v2797 = vadd.f32 %v2697, %v2765
      %v2798 = vadd.f32 %v2698, %v2766
      %v2799 = vadd.f32 %v2699, %v2767
      %v2800 = vadd.f32 %v2700, %v2768
      %v2801 = vadd.f32 %v2701, %v2769
      %v2802 = vadd.f32 %v2702, %v2770
      %v2803 = vadd.f32 %v2703, %v2771
      %v2804 = vadd.f32 %v2704, %v2772
      %v2805 = vadd.f32 %v2705, %v2773
      %v2806 = vadd.f32 %v2706, %v2774
      %v2807 = vadd.f32 %v2707, %v2775
      %v2808 = vadd.f32 %v2708, %v2776
      %v2809 = vadd.f32 %v2709, %v2777
      %v2810 = vadd.f32 %v2710, %v2778
      %v2811 = vadd.f32 %v2711, %v2779
      %v2812 = vadd.f32 %v2712, %v2780
      %v2813 = vadd.f32 %v2713, %v2781
      %v2814 = vadd.f32 %v2714, %v2782
      %v2815 = vadd.f32 %v2715, %v2783
      %v2816 = vadd.f32 %v2716, %v2784
      %v2817 = vadd.f32 %v2717, %v2785
      %v2818 = vadd.f32 %v2718, %v2786
      %v2819 = vadd.f32 %v2719, %v2787
      %v2820 = vadd.f32 %v2720, %v2788
      %v2821 = vadd.f32 %v2721, %v2789
      %v2822 = vadd.f32 %v2722, %v2790
      %v2823 = vadd.f32 %v2723, %v2791
      %v2824 = vadd.f32 %v2724, %v2792
      %v2825 = vadd.f32 %v2725, %v2793
      %2826 = vst.msk [vmem:[%s191] sm:$0xff] %vm192, %v2794
      %2827 = vst.msk [vmem:[%s191 + $0x8] sm:$0xff] %vm192, %v2795
      %2828 = vst.msk [vmem:[%s191 + $0x10] sm:$0xff] %vm192, %v2796
      %2829 = vst.msk [vmem:[%s191 + $0x18] sm:$0xff] %vm192, %v2797
      %2830 = vst.msk [vmem:[%s191 + $0x20] sm:$0xff] %vm192, %v2798
      %2831 = vst.msk [vmem:[%s191 + $0x28] sm:$0xff] %vm192, %v2799
      %2832 = vst.msk [vmem:[%s191 + $0x30] sm:$0xff] %vm192, %v2800
      %2833 = vst.msk [vmem:[%s191 + $0x38] sm:$0xff] %vm192, %v2801
      %2834 = vst.msk [vmem:[%s191 + $0x40] sm:$0xff] %vm192, %v2802
      %2835 = vst.msk [vmem:[%s191 + $0x48] sm:$0xff] %vm192, %v2803
      %2836 = vst.msk [vmem:[%s191 + $0x50] sm:$0xff] %vm192, %v2804
      %2837 = vst.msk [vmem:[%s191 + $0x58] sm:$0xff] %vm192, %v2805
      %2838 = vst.msk [vmem:[%s191 + $0x60] sm:$0xff] %vm192, %v2806
      %2839 = vst.msk [vmem:[%s191 + $0x68] sm:$0xff] %vm192, %v2807
      %2840 = vst.msk [vmem:[%s191 + $0x70] sm:$0xff] %vm192, %v2808
      %2841 = vst.msk [vmem:[%s191 + $0x78] sm:$0xff] %vm192, %v2809
      %2842 = vst.msk [vmem:[%s191 + $0x80] sm:$0xff] %vm192, %v2810
      %2843 = vst.msk [vmem:[%s191 + $0x88] sm:$0xff] %vm192, %v2811
      %2844 = vst.msk [vmem:[%s191 + $0x90] sm:$0xff] %vm192, %v2812
      %2845 = vst.msk [vmem:[%s191 + $0x98] sm:$0xff] %vm192, %v2813
      %2846 = vst.msk [vmem:[%s191 + $0xa0] sm:$0xff] %vm192, %v2814
      %2847 = vst.msk [vmem:[%s191 + $0xa8] sm:$0xff] %vm192, %v2815
      %2848 = vst.msk [vmem:[%s191 + $0xb0] sm:$0xff] %vm192, %v2816
      %2849 = vst.msk [vmem:[%s191 + $0xb8] sm:$0xff] %vm192, %v2817
      %2850 = vst.msk [vmem:[%s191 + $0xc0] sm:$0xff] %vm192, %v2818
      %2851 = vst.msk [vmem:[%s191 + $0xc8] sm:$0xff] %vm192, %v2819
      %2852 = vst.msk [vmem:[%s191 + $0xd0] sm:$0xff] %vm192, %v2820
      %2853 = vst.msk [vmem:[%s191 + $0xd8] sm:$0xff] %vm192, %v2821
      %2854 = vst.msk [vmem:[%s191 + $0xe0] sm:$0xff] %vm192, %v2822
      %2855 = vst.msk [vmem:[%s191 + $0xe8] sm:$0xff] %vm192, %v2823
      %2856 = vst.msk [vmem:[%s191 + $0xf0] sm:$0xff] %vm192, %v2824
      %2857 = vst.msk [vmem:[%s191 + $0xf8] sm:$0xff] %vm192, %v2825
      %p2858 = scmp.lt.s32.totalorder %s17, 1
      %s2859 = scalar_select %p2858, %s17, 1
      %p2860 = scmp.lt.s32.totalorder %s18, 0
      %s2861 = scalar_select %p2860, %s18, 0
      %s2862 = smul.addr %s2859, 32
      %s2863 = sadd.s32 %s2861, %s2862
      %s2864 = smul.addr %s2863, 8
      %s2865 = scalar_lea.vmem %s2, %s2864
      // Predicated region
      $region29: #{tpu_custom_call.1} parent=27 // pred_check
        %p2866 = pneg %p99
      $region30: #{tpu_custom_call.1} parent=27 // pred_check_branch
        %2868 = sbr.rel (%p2866) target = $region32
      $region31: #{tpu_custom_call.1} parent=27 // pred_region
        _
      $region32: #{tpu_custom_call.1} parent=27 // pred_fallthru
        _
    $region28: #{tpu_custom_call.1} parent=5 // pred_fallthru
      _
    %p2869 = scmp.le.s32.totalorder 2, %s8
    // Predicated region
    $region33: #{tpu_custom_call.1} parent=5 // pred_check
      %p2870 = pneg %p2869
    $region34: #{tpu_custom_call.1} parent=5 // pred_check_branch
      %2872 = sbr.rel (%p2870) target = $region36
    $region35: #{tpu_custom_call.1} parent=5 // pred_region
      %s2873 = ssub.s32 %s8, 2
      // Predicated region
      $region37: #{tpu_custom_call.1} parent=35 // pred_check
        %p2874 = pneg %p105
      $region38: #{tpu_custom_call.1} parent=35 // pred_check_branch
        %2876 = sbr.rel (%p2874) target = $region40
      $region39: #{tpu_custom_call.1} parent=35 // pred_region
        %p2877 = scmp.lt.s32.totalorder %s19, 1
        %s2878 = scalar_select %p2877, %s19, 1
        %p2879 = scmp.lt.s32.totalorder %s20, 0
        %s2880 = scalar_select %p2879, %s20, 0
        %s2881 = smul.addr %s2878, 32
        %s2882 = sadd.s32 %s2880, %s2881
        %s2883 = smul.addr %s2882, 8
        %s2884 = scalar_lea.vmem %s2, %s2883
      $region40: #{tpu_custom_call.1} parent=35 // pred_fallthru
        _
    $region36: #{tpu_custom_call.1} parent=5 // pred_fallthru
      _
  $region6: #{tpu_custom_call.1} parent=0 // loop_footer
    %s12 = sadd.s32 1, %s8
  $region7: #{tpu_custom_call.1} parent=0 // loop_footer_branch
    %7 = sbr.rel target = $region3
  $region8: #{tpu_custom_call.1} parent=0 // loop_exit
    _

</llo_original>
